<compile_context>
chip_gen: v6e
topology: v6e:2x2x1
jax: 0.10.0
libtpu: 0.0.40
codegen_flags: <defaults>
</compile_context>

<pallas_src>
import functools

import jax
import jax.numpy as jnp
from jax.experimental import pallas as pl
from jax.experimental.pallas import tpu as pltpu

BN_EPS = 1e-5
CONV_K = 108
CONV_STRIDE = 54
NUM_CLASSES = 256


def _vmem_spec():
    return pl.BlockSpec(memory_space=pltpu.MemorySpace.VMEM)


# ----------------------------------------------------------------------------
# Fused kernel: conv+BN1 (folded) -> fw/bw LSTM -> attention x2 -> fc+BN2 (folded) -> softmax
# ----------------------------------------------------------------------------
def aes_hd_fused_kernel(x_ref, convmat_ref, convb_ref,
                        fw_ginmat_ref, fw_ginb_ref, fw_whh_ref,
                        bw_ginmat_ref, bw_ginb_ref, bw_whh_ref,
                        fw_attnmat_ref, bw_attnmat_ref,
                        fc_w1_ref, fc_w2_ref, fc_b_ref,
                        out_ref, *, seq_len, hidden):
    T, H = seq_len, hidden
    x = x_ref[...]                                                     # (B, L)
    B = x.shape[0]

    # Conv1d(1->1, k=108, s=54) + BatchNorm1d(1), folded into one MXU matmul.
    seq = jnp.dot(x, convmat_ref[...],
                  preferred_element_type=jnp.float32) + convb_ref[...]  # (B, T)

    def run_lstm(ginmat, ginb, w_hh, reverse):
        # Input contributions of all timesteps at once, lane-dense (B, T*4H).
        # Per-step slices below sit at multiples of 4H = 128 lanes (vreg-aligned).
        gin = jnp.dot(seq, ginmat, preferred_element_type=jnp.float32) + ginb
        h = jnp.zeros((B, H), jnp.float32)
        c = jnp.zeros((B, H), jnp.float32)
        hs = [None] * T
        steps = range(T - 1, -1, -1) if reverse else range(T)
        for t in steps:                                                # static unroll; T is small
            gates = gin[:, t * 4 * H:(t + 1) * 4 * H] + jnp.dot(
                h, w_hh, preferred_element_type=jnp.float32)           # (B, 4H), order i|f|g|o
            sg = jax.nn.sigmoid(gates)                                 # full-width EUP
            th = jnp.tanh(gates)
            i_g = sg[:, 0:H]
            f_g = sg[:, H:2 * H]
            g_g = th[:, 2 * H:3 * H]
            o_g = sg[:, 3 * H:4 * H]
            c = f_g * c + i_g * g_g
            h = o_g * jnp.tanh(c)
            hs[t] = h
        return hs

    hs_f = run_lstm(fw_ginmat_ref[...], fw_ginb_ref[...], fw_whh_ref[...], reverse=False)
    # Backward direction: in-kernel time reversal replaces the flip(x)/flip(out) pair;
    # hs_b[t] is already time-aligned with hs_f[t].
    hs_b = run_lstm(bw_ginmat_ref[...], bw_ginb_ref[...], bw_whh_ref[...], reverse=True)

    def attend(hs, attnmat):
        h_flat = jnp.concatenate(hs, axis=1)                           # (B, T*H) lane-dense
        scores = jnp.dot(h_flat, attnmat,
                         preferred_element_type=jnp.float32)           # (B, T) via MXU
        scores = scores - jnp.max(scores, axis=1, keepdims=True)
        e = jnp.exp(scores)
        p = e / jnp.sum(e, axis=1, keepdims=True)                      # softmax over time
        ctx = jnp.zeros((B, H), jnp.float32)
        for t in range(T):
            ctx = ctx + p[:, t:t + 1] * hs[t]
        return ctx

    ctx_f = attend(hs_f, fw_attnmat_ref[...])
    ctx_b = attend(hs_b, bw_attnmat_ref[...])

    # fc_out on cat([ctx_f, ctx_b], dim=1) as split matmuls (avoids the concat relayout);
    # BatchNorm1d(256) is folded into the weights/bias.
    logits = (jnp.dot(ctx_f, fc_w1_ref[...], preferred_element_type=jnp.float32)
              + jnp.dot(ctx_b, fc_w2_ref[...], preferred_element_type=jnp.float32)
              + fc_b_ref[...])                                         # (B, 256)
    logits = logits - jnp.max(logits, axis=1, keepdims=True)
    e = jnp.exp(logits)
    out_ref[...] = e / jnp.sum(e, axis=1, keepdims=True)               # one lane-dense store


# ----------------------------------------------------------------------------
# Parameter construction (deterministic, synthetic; mirrors the PyTorch parameter set)
# ----------------------------------------------------------------------------
def init_params(key, units):
    H = units
    keys = jax.random.split(key, 20)
    s = 0.1
    p = {}
    p['conv_w'] = s * jax.random.normal(keys[0], (CONV_K,), jnp.float32)       # Conv1d weight
    p['conv_b'] = s * jax.random.normal(keys[1], (), jnp.float32)              # Conv1d bias
    p['bn1_gamma'] = 1.0 + s * jax.random.normal(keys[2], (), jnp.float32)
    p['bn1_beta'] = s * jax.random.normal(keys[3], (), jnp.float32)
    p['bn1_mean'] = s * jax.random.normal(keys[4], (), jnp.float32)
    p['bn1_var'] = 1.0 + 0.05 * jax.random.uniform(keys[5], (), jnp.float32)
    for name, k0 in (('fw', 6), ('bw', 9)):
        p[f'{name}_w_ih'] = s * jax.random.normal(keys[k0], (1, 4 * H), jnp.float32)      # W_ih^T
        p[f'{name}_w_hh'] = s * jax.random.normal(keys[k0 + 1], (H, 4 * H), jnp.float32)  # W_hh^T
        p[f'{name}_b'] = s * jax.random.normal(keys[k0 + 2], (1, 4 * H), jnp.float32)     # b_ih+b_hh
    p['fw_attn'] = s * jax.random.normal(keys[12], (H,), jnp.float32)          # Linear(H,1).weight
    p['bw_attn'] = s * jax.random.normal(keys[13], (H,), jnp.float32)
    p['fc_w'] = s * jax.random.normal(keys[14], (2 * H, NUM_CLASSES), jnp.float32)        # W^T
    p['fc_b'] = s * jax.random.normal(keys[15], (1, NUM_CLASSES), jnp.float32)
    p['bn2_gamma'] = 1.0 + s * jax.random.normal(keys[16], (NUM_CLASSES,), jnp.float32)
    p['bn2_beta'] = s * jax.random.normal(keys[17], (NUM_CLASSES,), jnp.float32)
    p['bn2_mean'] = s * jax.random.normal(keys[18], (NUM_CLASSES,), jnp.float32)
    p['bn2_var'] = 1.0 + 0.05 * jax.random.uniform(keys[19], (NUM_CLASSES,), jnp.float32)
    return p


# ----------------------------------------------------------------------------
# Host-side parameter preparation: BN folding + matmul-friendly weight layouts.
# (Exact under inference/running-stats BatchNorm semantics.)
# ----------------------------------------------------------------------------
def prepare_kernel_params(p, units, trace_len):
    H = units
    L = trace_len
    T = (L - CONV_K) // CONV_STRIDE + 1
    kp = {}

    # Fold BatchNorm1d(1) into the conv and express the conv as one (L, T) matmul.
    s1 = p['bn1_gamma'] * jax.lax.rsqrt(p['bn1_var'] + BN_EPS)
    conv_mat = jnp.zeros((L, T), jnp.float32)
    for t in range(T):
        conv_mat = conv_mat.at[t * CONV_STRIDE:t * CONV_STRIDE + CONV_K, t].set(p['conv_w'])
    kp['conv_mat'] = conv_mat * s1
    conv_bias = (p['conv_b'] - p['bn1_mean']) * s1 + p['bn1_beta']
    kp['conv_b'] = jnp.ones((1, T), jnp.float32) * conv_bias

    eye_t = jnp.eye(T, dtype=jnp.float32)
    for d in ('fw', 'bw'):
        # (T, T*4H) block-diagonal input-weight matrix: one lane-dense matmul yields all
        # per-timestep input-gate pre-activations.
        kp[f'{d}_gin_mat'] = jnp.kron(eye_t, p[f'{d}_w_ih'])
        kp[f'{d}_gin_b'] = jnp.tile(p[f'{d}_b'], (1, T))
        kp[f'{d}_w_hh'] = p[f'{d}_w_hh']
        # (T*H, T) block-diagonal attention matrix: scores = h_flat @ attn_mat (MXU).
        kp[f'{d}_attn_mat'] = jnp.kron(eye_t, p[f'{d}_attn'].reshape(H, 1))

    # Fold BatchNorm1d(256) into fc_out.
    s2 = p['bn2_gamma'] * jax.lax.rsqrt(p['bn2_var'] + BN_EPS)
    fc_w = p['fc_w'] * s2[None, :]
    kp['fc_w1'] = fc_w[:H]                                              # (H, 256) for ctx_f
    kp['fc_w2'] = fc_w[H:]                                              # (H, 256) for ctx_b
    kp['fc_b'] = (p['fc_b'] - p['bn2_mean'][None, :]) * s2[None, :] + p['bn2_beta'][None, :]
    return kp, T


# ----------------------------------------------------------------------------
# Forward pass wrapper: a single pallas_call.
# ----------------------------------------------------------------------------
def aes_hd_forward(x, kp, units, seq_len):
    B, C, L = x.shape
    assert C == 1, "expected (B, 1, L) input"
    x2 = x.reshape(B, L).astype(jnp.float32)

    fused = pl.pallas_call(
        functools.partial(aes_hd_fused_kernel, seq_len=seq_len, hidden=units),
        out_shape=jax.ShapeDtypeStruct((B, NUM_CLASSES), jnp.float32),
        in_specs=[_vmem_spec()] * 14,
        out_specs=_vmem_spec(),
    )
    return fused(x2, kp['conv_mat'], kp['conv_b'],
                 kp['fw_gin_mat'], kp['fw_gin_b'], kp['fw_w_hh'],
                 kp['bw_gin_mat'], kp['bw_gin_b'], kp['bw_w_hh'],
                 kp['fw_attn_mat'], kp['bw_attn_mat'],
                 kp['fc_w1'], kp['fc_w2'], kp['fc_b'])


if __name__ == "__main__":
    # Small, conv-compatible shapes: L = 108 + 54*7 = 486 -> conv output length T = 8.
    # B = 8 keeps every vreg sublane occupied.
    B = 8
    L = 486
    UNITS = 32

    key = jax.random.PRNGKey(0)
    kx, kparam = jax.random.split(key)
    x = jax.random.normal(kx, (B, 1, L), jnp.float32)

    raw_params = init_params(kparam, UNITS)
    kparams, T = prepare_kernel_params(raw_params, UNITS, L)

    out = aes_hd_forward(x, kparams, UNITS, T)
    out = jax.block_until_ready(out)

    assert out.shape == (B, NUM_CLASSES), out.shape
    row_sums = jnp.sum(out, axis=1)
    assert bool(jnp.all(jnp.abs(row_sums - 1.0) < 1e-4)), row_sums
    assert bool(jnp.all(jnp.isfinite(out)))
    print("KERNEL_OK")
</pallas_src>

<mosaic_0001>
module attributes {stable_mosaic.version = 11 : i64} {
  func.func @aes_hd_fused_kernel(%arg0: memref<8x486xf32, #tpu.memory_space<vmem>>, %arg1: memref<486x8xf32, #tpu.memory_space<vmem>>, %arg2: memref<1x8xf32, #tpu.memory_space<vmem>>, %arg3: memref<8x1024xf32, #tpu.memory_space<vmem>>, %arg4: memref<1x1024xf32, #tpu.memory_space<vmem>>, %arg5: memref<32x128xf32, #tpu.memory_space<vmem>>, %arg6: memref<8x1024xf32, #tpu.memory_space<vmem>>, %arg7: memref<1x1024xf32, #tpu.memory_space<vmem>>, %arg8: memref<32x128xf32, #tpu.memory_space<vmem>>, %arg9: memref<256x8xf32, #tpu.memory_space<vmem>>, %arg10: memref<256x8xf32, #tpu.memory_space<vmem>>, %arg11: memref<32x256xf32, #tpu.memory_space<vmem>>, %arg12: memref<32x256xf32, #tpu.memory_space<vmem>>, %arg13: memref<1x256xf32, #tpu.memory_space<vmem>>, %arg14: memref<8x256xf32, #tpu.memory_space<vmem>>) attributes {dimension_semantics = [], scalar_prefetch = 0 : i64, scratch_operands = 0 : i64, tpu.core_type = #tpu.core_type<tc>} {
    %c0 = arith.constant 0 : index
    %c0_0 = arith.constant 0 : index
    %0 = vector.load %arg0[%c0, %c0_0] : memref<8x486xf32, #tpu.memory_space<vmem>>, vector<8x486xf32>
    %c0_1 = arith.constant 0 : index
    %c0_2 = arith.constant 0 : index
    %1 = vector.load %arg1[%c0_1, %c0_2] : memref<486x8xf32, #tpu.memory_space<vmem>>, vector<486x8xf32>
    %cst = arith.constant dense<0.000000e+00> : vector<8x8xf32>
    %2 = tpu.matmul %0, %1, %cst {dimension_numbers = #tpu.dot_dimension_numbers<[1], [0], [0], [1], [0, 0, 1, 1], [], []>} : vector<8x486xf32>, vector<486x8xf32>, vector<8x8xf32> -> vector<8x8xf32>
    %c0_3 = arith.constant 0 : index
    %c0_4 = arith.constant 0 : index
    %3 = vector.load %arg2[%c0_3, %c0_4] : memref<1x8xf32, #tpu.memory_space<vmem>>, vector<1x8xf32>
    %4 = vector.broadcast %3 : vector<1x8xf32> to vector<8x8xf32>
    %5 = arith.addf %2, %4 : vector<8x8xf32>
    %c0_5 = arith.constant 0 : index
    %c0_6 = arith.constant 0 : index
    %6 = vector.load %arg3[%c0_5, %c0_6] : memref<8x1024xf32, #tpu.memory_space<vmem>>, vector<8x1024xf32>
    %c0_7 = arith.constant 0 : index
    %c0_8 = arith.constant 0 : index
    %7 = vector.load %arg4[%c0_7, %c0_8] : memref<1x1024xf32, #tpu.memory_space<vmem>>, vector<1x1024xf32>
    %c0_9 = arith.constant 0 : index
    %c0_10 = arith.constant 0 : index
    %8 = vector.load %arg5[%c0_9, %c0_10] : memref<32x128xf32, #tpu.memory_space<vmem>>, vector<32x128xf32>
    %cst_11 = arith.constant dense<0.000000e+00> : vector<8x1024xf32>
    %9 = tpu.matmul %5, %6, %cst_11 {dimension_numbers = #tpu.dot_dimension_numbers<[1], [0], [0], [1], [0, 0, 1, 1], [], []>} : vector<8x8xf32>, vector<8x1024xf32>, vector<8x1024xf32> -> vector<8x1024xf32>
    %10 = vector.broadcast %7 : vector<1x1024xf32> to vector<8x1024xf32>
    %11 = arith.addf %9, %10 : vector<8x1024xf32>
    %cst_12 = arith.constant 0.000000e+00 : f32
    %12 = vector.broadcast %cst_12 : f32 to vector<8x32xf32>
    %cst_13 = arith.constant 0.000000e+00 : f32
    %13 = vector.broadcast %cst_13 : f32 to vector<8x32xf32>
    %14 = vector.extract_strided_slice %11 {offsets = [0, 0], sizes = [8, 128], strides = [1, 1]} : vector<8x1024xf32> to vector<8x128xf32>
    %cst_14 = arith.constant dense<0.000000e+00> : vector<8x128xf32>
    %15 = tpu.matmul %12, %8, %cst_14 {dimension_numbers = #tpu.dot_dimension_numbers<[1], [0], [0], [1], [0, 0, 1, 1], [], []>} : vector<8x32xf32>, vector<32x128xf32>, vector<8x128xf32> -> vector<8x128xf32>
    %16 = arith.addf %14, %15 : vector<8x128xf32>
    %17 = arith.negf %16 : vector<8x128xf32>
    %18 = math.exp %17 : vector<8x128xf32>
    %cst_15 = arith.constant 1.000000e+00 : f32
    %19 = vector.broadcast %cst_15 : f32 to vector<8x128xf32>
    %20 = arith.addf %19, %18 : vector<8x128xf32>
    %21 = arith.divf %19, %20 : vector<8x128xf32>
    %22 = math.tanh %16 : vector<8x128xf32>
    %23 = vector.extract_strided_slice %21 {offsets = [0, 0], sizes = [8, 32], strides = [1, 1]} : vector<8x128xf32> to vector<8x32xf32>
    %24 = vector.extract_strided_slice %21 {offsets = [0, 32], sizes = [8, 32], strides = [1, 1]} : vector<8x128xf32> to vector<8x32xf32>
    %25 = vector.extract_strided_slice %22 {offsets = [0, 64], sizes = [8, 32], strides = [1, 1]} : vector<8x128xf32> to vector<8x32xf32>
    %26 = vector.extract_strided_slice %21 {offsets = [0, 96], sizes = [8, 32], strides = [1, 1]} : vector<8x128xf32> to vector<8x32xf32>
    %27 = arith.mulf %24, %13 : vector<8x32xf32>
    %28 = arith.mulf %23, %25 : vector<8x32xf32>
    %29 = arith.addf %27, %28 : vector<8x32xf32>
    %30 = math.tanh %29 : vector<8x32xf32>
    %31 = arith.mulf %26, %30 : vector<8x32xf32>
    %32 = vector.extract_strided_slice %11 {offsets = [0, 128], sizes = [8, 128], strides = [1, 1]} : vector<8x1024xf32> to vector<8x128xf32>
    %cst_16 = arith.constant dense<0.000000e+00> : vector<8x128xf32>
    %33 = tpu.matmul %31, %8, %cst_16 {dimension_numbers = #tpu.dot_dimension_numbers<[1], [0], [0], [1], [0, 0, 1, 1], [], []>} : vector<8x32xf32>, vector<32x128xf32>, vector<8x128xf32> -> vector<8x128xf32>
    %34 = arith.addf %32, %33 : vector<8x128xf32>
    %35 = arith.negf %34 : vector<8x128xf32>
    %36 = math.exp %35 : vector<8x128xf32>
    %cst_17 = arith.constant 1.000000e+00 : f32
    %37 = vector.broadcast %cst_17 : f32 to vector<8x128xf32>
    %38 = arith.addf %37, %36 : vector<8x128xf32>
    %39 = arith.divf %37, %38 : vector<8x128xf32>
    %40 = math.tanh %34 : vector<8x128xf32>
    %41 = vector.extract_strided_slice %39 {offsets = [0, 0], sizes = [8, 32], strides = [1, 1]} : vector<8x128xf32> to vector<8x32xf32>
    %42 = vector.extract_strided_slice %39 {offsets = [0, 32], sizes = [8, 32], strides = [1, 1]} : vector<8x128xf32> to vector<8x32xf32>
    %43 = vector.extract_strided_slice %40 {offsets = [0, 64], sizes = [8, 32], strides = [1, 1]} : vector<8x128xf32> to vector<8x32xf32>
    %44 = vector.extract_strided_slice %39 {offsets = [0, 96], sizes = [8, 32], strides = [1, 1]} : vector<8x128xf32> to vector<8x32xf32>
    %45 = arith.mulf %42, %29 : vector<8x32xf32>
    %46 = arith.mulf %41, %43 : vector<8x32xf32>
    %47 = arith.addf %45, %46 : vector<8x32xf32>
    %48 = math.tanh %47 : vector<8x32xf32>
    %49 = arith.mulf %44, %48 : vector<8x32xf32>
    %50 = vector.extract_strided_slice %11 {offsets = [0, 256], sizes = [8, 128], strides = [1, 1]} : vector<8x1024xf32> to vector<8x128xf32>
    %cst_18 = arith.constant dense<0.000000e+00> : vector<8x128xf32>
    %51 = tpu.matmul %49, %8, %cst_18 {dimension_numbers = #tpu.dot_dimension_numbers<[1], [0], [0], [1], [0, 0, 1, 1], [], []>} : vector<8x32xf32>, vector<32x128xf32>, vector<8x128xf32> -> vector<8x128xf32>
    %52 = arith.addf %50, %51 : vector<8x128xf32>
    %53 = arith.negf %52 : vector<8x128xf32>
    %54 = math.exp %53 : vector<8x128xf32>
    %cst_19 = arith.constant 1.000000e+00 : f32
    %55 = vector.broadcast %cst_19 : f32 to vector<8x128xf32>
    %56 = arith.addf %55, %54 : vector<8x128xf32>
    %57 = arith.divf %55, %56 : vector<8x128xf32>
    %58 = math.tanh %52 : vector<8x128xf32>
    %59 = vector.extract_strided_slice %57 {offsets = [0, 0], sizes = [8, 32], strides = [1, 1]} : vector<8x128xf32> to vector<8x32xf32>
    %60 = vector.extract_strided_slice %57 {offsets = [0, 32], sizes = [8, 32], strides = [1, 1]} : vector<8x128xf32> to vector<8x32xf32>
    %61 = vector.extract_strided_slice %58 {offsets = [0, 64], sizes = [8, 32], strides = [1, 1]} : vector<8x128xf32> to vector<8x32xf32>
    %62 = vector.extract_strided_slice %57 {offsets = [0, 96], sizes = [8, 32], strides = [1, 1]} : vector<8x128xf32> to vector<8x32xf32>
    %63 = arith.mulf %60, %47 : vector<8x32xf32>
    %64 = arith.mulf %59, %61 : vector<8x32xf32>
    %65 = arith.addf %63, %64 : vector<8x32xf32>
    %66 = math.tanh %65 : vector<8x32xf32>
    %67 = arith.mulf %62, %66 : vector<8x32xf32>
    %68 = vector.extract_strided_slice %11 {offsets = [0, 384], sizes = [8, 128], strides = [1, 1]} : vector<8x1024xf32> to vector<8x128xf32>
    %cst_20 = arith.constant dense<0.000000e+00> : vector<8x128xf32>
    %69 = tpu.matmul %67, %8, %cst_20 {dimension_numbers = #tpu.dot_dimension_numbers<[1], [0], [0], [1], [0, 0, 1, 1], [], []>} : vector<8x32xf32>, vector<32x128xf32>, vector<8x128xf32> -> vector<8x128xf32>
    %70 = arith.addf %68, %69 : vector<8x128xf32>
    %71 = arith.negf %70 : vector<8x128xf32>
    %72 = math.exp %71 : vector<8x128xf32>
    %cst_21 = arith.constant 1.000000e+00 : f32
    %73 = vector.broadcast %cst_21 : f32 to vector<8x128xf32>
    %74 = arith.addf %73, %72 : vector<8x128xf32>
    %75 = arith.divf %73, %74 : vector<8x128xf32>
    %76 = math.tanh %70 : vector<8x128xf32>
    %77 = vector.extract_strided_slice %75 {offsets = [0, 0], sizes = [8, 32], strides = [1, 1]} : vector<8x128xf32> to vector<8x32xf32>
    %78 = vector.extract_strided_slice %75 {offsets = [0, 32], sizes = [8, 32], strides = [1, 1]} : vector<8x128xf32> to vector<8x32xf32>
    %79 = vector.extract_strided_slice %76 {offsets = [0, 64], sizes = [8, 32], strides = [1, 1]} : vector<8x128xf32> to vector<8x32xf32>
    %80 = vector.extract_strided_slice %75 {offsets = [0, 96], sizes = [8, 32], strides = [1, 1]} : vector<8x128xf32> to vector<8x32xf32>
    %81 = arith.mulf %78, %65 : vector<8x32xf32>
    %82 = arith.mulf %77, %79 : vector<8x32xf32>
    %83 = arith.addf %81, %82 : vector<8x32xf32>
    %84 = math.tanh %83 : vector<8x32xf32>
    %85 = arith.mulf %80, %84 : vector<8x32xf32>
    %86 = vector.extract_strided_slice %11 {offsets = [0, 512], sizes = [8, 128], strides = [1, 1]} : vector<8x1024xf32> to vector<8x128xf32>
    %cst_22 = arith.constant dense<0.000000e+00> : vector<8x128xf32>
    %87 = tpu.matmul %85, %8, %cst_22 {dimension_numbers = #tpu.dot_dimension_numbers<[1], [0], [0], [1], [0, 0, 1, 1], [], []>} : vector<8x32xf32>, vector<32x128xf32>, vector<8x128xf32> -> vector<8x128xf32>
    %88 = arith.addf %86, %87 : vector<8x128xf32>
    %89 = arith.negf %88 : vector<8x128xf32>
    %90 = math.exp %89 : vector<8x128xf32>
    %cst_23 = arith.constant 1.000000e+00 : f32
    %91 = vector.broadcast %cst_23 : f32 to vector<8x128xf32>
    %92 = arith.addf %91, %90 : vector<8x128xf32>
    %93 = arith.divf %91, %92 : vector<8x128xf32>
    %94 = math.tanh %88 : vector<8x128xf32>
    %95 = vector.extract_strided_slice %93 {offsets = [0, 0], sizes = [8, 32], strides = [1, 1]} : vector<8x128xf32> to vector<8x32xf32>
    %96 = vector.extract_strided_slice %93 {offsets = [0, 32], sizes = [8, 32], strides = [1, 1]} : vector<8x128xf32> to vector<8x32xf32>
    %97 = vector.extract_strided_slice %94 {offsets = [0, 64], sizes = [8, 32], strides = [1, 1]} : vector<8x128xf32> to vector<8x32xf32>
    %98 = vector.extract_strided_slice %93 {offsets = [0, 96], sizes = [8, 32], strides = [1, 1]} : vector<8x128xf32> to vector<8x32xf32>
    %99 = arith.mulf %96, %83 : vector<8x32xf32>
    %100 = arith.mulf %95, %97 : vector<8x32xf32>
    %101 = arith.addf %99, %100 : vector<8x32xf32>
    %102 = math.tanh %101 : vector<8x32xf32>
    %103 = arith.mulf %98, %102 : vector<8x32xf32>
    %104 = vector.extract_strided_slice %11 {offsets = [0, 640], sizes = [8, 128], strides = [1, 1]} : vector<8x1024xf32> to vector<8x128xf32>
    %cst_24 = arith.constant dense<0.000000e+00> : vector<8x128xf32>
    %105 = tpu.matmul %103, %8, %cst_24 {dimension_numbers = #tpu.dot_dimension_numbers<[1], [0], [0], [1], [0, 0, 1, 1], [], []>} : vector<8x32xf32>, vector<32x128xf32>, vector<8x128xf32> -> vector<8x128xf32>
    %106 = arith.addf %104, %105 : vector<8x128xf32>
    %107 = arith.negf %106 : vector<8x128xf32>
    %108 = math.exp %107 : vector<8x128xf32>
    %cst_25 = arith.constant 1.000000e+00 : f32
    %109 = vector.broadcast %cst_25 : f32 to vector<8x128xf32>
    %110 = arith.addf %109, %108 : vector<8x128xf32>
    %111 = arith.divf %109, %110 : vector<8x128xf32>
    %112 = math.tanh %106 : vector<8x128xf32>
    %113 = vector.extract_strided_slice %111 {offsets = [0, 0], sizes = [8, 32], strides = [1, 1]} : vector<8x128xf32> to vector<8x32xf32>
    %114 = vector.extract_strided_slice %111 {offsets = [0, 32], sizes = [8, 32], strides = [1, 1]} : vector<8x128xf32> to vector<8x32xf32>
    %115 = vector.extract_strided_slice %112 {offsets = [0, 64], sizes = [8, 32], strides = [1, 1]} : vector<8x128xf32> to vector<8x32xf32>
    %116 = vector.extract_strided_slice %111 {offsets = [0, 96], sizes = [8, 32], strides = [1, 1]} : vector<8x128xf32> to vector<8x32xf32>
    %117 = arith.mulf %114, %101 : vector<8x32xf32>
    %118 = arith.mulf %113, %115 : vector<8x32xf32>
    %119 = arith.addf %117, %118 : vector<8x32xf32>
    %120 = math.tanh %119 : vector<8x32xf32>
    %121 = arith.mulf %116, %120 : vector<8x32xf32>
    %122 = vector.extract_strided_slice %11 {offsets = [0, 768], sizes = [8, 128], strides = [1, 1]} : vector<8x1024xf32> to vector<8x128xf32>
    %cst_26 = arith.constant dense<0.000000e+00> : vector<8x128xf32>
    %123 = tpu.matmul %121, %8, %cst_26 {dimension_numbers = #tpu.dot_dimension_numbers<[1], [0], [0], [1], [0, 0, 1, 1], [], []>} : vector<8x32xf32>, vector<32x128xf32>, vector<8x128xf32> -> vector<8x128xf32>
    %124 = arith.addf %122, %123 : vector<8x128xf32>
    %125 = arith.negf %124 : vector<8x128xf32>
    %126 = math.exp %125 : vector<8x128xf32>
    %cst_27 = arith.constant 1.000000e+00 : f32
    %127 = vector.broadcast %cst_27 : f32 to vector<8x128xf32>
    %128 = arith.addf %127, %126 : vector<8x128xf32>
    %129 = arith.divf %127, %128 : vector<8x128xf32>
    %130 = math.tanh %124 : vector<8x128xf32>
    %131 = vector.extract_strided_slice %129 {offsets = [0, 0], sizes = [8, 32], strides = [1, 1]} : vector<8x128xf32> to vector<8x32xf32>
    %132 = vector.extract_strided_slice %129 {offsets = [0, 32], sizes = [8, 32], strides = [1, 1]} : vector<8x128xf32> to vector<8x32xf32>
    %133 = vector.extract_strided_slice %130 {offsets = [0, 64], sizes = [8, 32], strides = [1, 1]} : vector<8x128xf32> to vector<8x32xf32>
    %134 = vector.extract_strided_slice %129 {offsets = [0, 96], sizes = [8, 32], strides = [1, 1]} : vector<8x128xf32> to vector<8x32xf32>
    %135 = arith.mulf %132, %119 : vector<8x32xf32>
    %136 = arith.mulf %131, %133 : vector<8x32xf32>
    %137 = arith.addf %135, %136 : vector<8x32xf32>
    %138 = math.tanh %137 : vector<8x32xf32>
    %139 = arith.mulf %134, %138 : vector<8x32xf32>
    %140 = vector.extract_strided_slice %11 {offsets = [0, 896], sizes = [8, 128], strides = [1, 1]} : vector<8x1024xf32> to vector<8x128xf32>
    %cst_28 = arith.constant dense<0.000000e+00> : vector<8x128xf32>
    %141 = tpu.matmul %139, %8, %cst_28 {dimension_numbers = #tpu.dot_dimension_numbers<[1], [0], [0], [1], [0, 0, 1, 1], [], []>} : vector<8x32xf32>, vector<32x128xf32>, vector<8x128xf32> -> vector<8x128xf32>
    %142 = arith.addf %140, %141 : vector<8x128xf32>
    %143 = arith.negf %142 : vector<8x128xf32>
    %144 = math.exp %143 : vector<8x128xf32>
    %cst_29 = arith.constant 1.000000e+00 : f32
    %145 = vector.broadcast %cst_29 : f32 to vector<8x128xf32>
    %146 = arith.addf %145, %144 : vector<8x128xf32>
    %147 = arith.divf %145, %146 : vector<8x128xf32>
    %148 = math.tanh %142 : vector<8x128xf32>
    %149 = vector.extract_strided_slice %147 {offsets = [0, 0], sizes = [8, 32], strides = [1, 1]} : vector<8x128xf32> to vector<8x32xf32>
    %150 = vector.extract_strided_slice %147 {offsets = [0, 32], sizes = [8, 32], strides = [1, 1]} : vector<8x128xf32> to vector<8x32xf32>
    %151 = vector.extract_strided_slice %148 {offsets = [0, 64], sizes = [8, 32], strides = [1, 1]} : vector<8x128xf32> to vector<8x32xf32>
    %152 = vector.extract_strided_slice %147 {offsets = [0, 96], sizes = [8, 32], strides = [1, 1]} : vector<8x128xf32> to vector<8x32xf32>
    %153 = arith.mulf %150, %137 : vector<8x32xf32>
    %154 = arith.mulf %149, %151 : vector<8x32xf32>
    %155 = arith.addf %153, %154 : vector<8x32xf32>
    %156 = math.tanh %155 : vector<8x32xf32>
    %157 = arith.mulf %152, %156 : vector<8x32xf32>
    %c0_30 = arith.constant 0 : index
    %c0_31 = arith.constant 0 : index
    %158 = vector.load %arg6[%c0_30, %c0_31] : memref<8x1024xf32, #tpu.memory_space<vmem>>, vector<8x1024xf32>
    %c0_32 = arith.constant 0 : index
    %c0_33 = arith.constant 0 : index
    %159 = vector.load %arg7[%c0_32, %c0_33] : memref<1x1024xf32, #tpu.memory_space<vmem>>, vector<1x1024xf32>
    %c0_34 = arith.constant 0 : index
    %c0_35 = arith.constant 0 : index
    %160 = vector.load %arg8[%c0_34, %c0_35] : memref<32x128xf32, #tpu.memory_space<vmem>>, vector<32x128xf32>
    %cst_36 = arith.constant dense<0.000000e+00> : vector<8x1024xf32>
    %161 = tpu.matmul %5, %158, %cst_36 {dimension_numbers = #tpu.dot_dimension_numbers<[1], [0], [0], [1], [0, 0, 1, 1], [], []>} : vector<8x8xf32>, vector<8x1024xf32>, vector<8x1024xf32> -> vector<8x1024xf32>
    %162 = vector.broadcast %159 : vector<1x1024xf32> to vector<8x1024xf32>
    %163 = arith.addf %161, %162 : vector<8x1024xf32>
    %cst_37 = arith.constant 0.000000e+00 : f32
    %164 = vector.broadcast %cst_37 : f32 to vector<8x32xf32>
    %cst_38 = arith.constant 0.000000e+00 : f32
    %165 = vector.broadcast %cst_38 : f32 to vector<8x32xf32>
    %166 = vector.extract_strided_slice %163 {offsets = [0, 896], sizes = [8, 128], strides = [1, 1]} : vector<8x1024xf32> to vector<8x128xf32>
    %cst_39 = arith.constant dense<0.000000e+00> : vector<8x128xf32>
    %167 = tpu.matmul %164, %160, %cst_39 {dimension_numbers = #tpu.dot_dimension_numbers<[1], [0], [0], [1], [0, 0, 1, 1], [], []>} : vector<8x32xf32>, vector<32x128xf32>, vector<8x128xf32> -> vector<8x128xf32>
    %168 = arith.addf %166, %167 : vector<8x128xf32>
    %169 = arith.negf %168 : vector<8x128xf32>
    %170 = math.exp %169 : vector<8x128xf32>
    %cst_40 = arith.constant 1.000000e+00 : f32
    %171 = vector.broadcast %cst_40 : f32 to vector<8x128xf32>
    %172 = arith.addf %171, %170 : vector<8x128xf32>
    %173 = arith.divf %171, %172 : vector<8x128xf32>
    %174 = math.tanh %168 : vector<8x128xf32>
    %175 = vector.extract_strided_slice %173 {offsets = [0, 0], sizes = [8, 32], strides = [1, 1]} : vector<8x128xf32> to vector<8x32xf32>
    %176 = vector.extract_strided_slice %173 {offsets = [0, 32], sizes = [8, 32], strides = [1, 1]} : vector<8x128xf32> to vector<8x32xf32>
    %177 = vector.extract_strided_slice %174 {offsets = [0, 64], sizes = [8, 32], strides = [1, 1]} : vector<8x128xf32> to vector<8x32xf32>
    %178 = vector.extract_strided_slice %173 {offsets = [0, 96], sizes = [8, 32], strides = [1, 1]} : vector<8x128xf32> to vector<8x32xf32>
    %179 = arith.mulf %176, %165 : vector<8x32xf32>
    %180 = arith.mulf %175, %177 : vector<8x32xf32>
    %181 = arith.addf %179, %180 : vector<8x32xf32>
    %182 = math.tanh %181 : vector<8x32xf32>
    %183 = arith.mulf %178, %182 : vector<8x32xf32>
    %184 = vector.extract_strided_slice %163 {offsets = [0, 768], sizes = [8, 128], strides = [1, 1]} : vector<8x1024xf32> to vector<8x128xf32>
    %cst_41 = arith.constant dense<0.000000e+00> : vector<8x128xf32>
    %185 = tpu.matmul %183, %160, %cst_41 {dimension_numbers = #tpu.dot_dimension_numbers<[1], [0], [0], [1], [0, 0, 1, 1], [], []>} : vector<8x32xf32>, vector<32x128xf32>, vector<8x128xf32> -> vector<8x128xf32>
    %186 = arith.addf %184, %185 : vector<8x128xf32>
    %187 = arith.negf %186 : vector<8x128xf32>
    %188 = math.exp %187 : vector<8x128xf32>
    %cst_42 = arith.constant 1.000000e+00 : f32
    %189 = vector.broadcast %cst_42 : f32 to vector<8x128xf32>
    %190 = arith.addf %189, %188 : vector<8x128xf32>
    %191 = arith.divf %189, %190 : vector<8x128xf32>
    %192 = math.tanh %186 : vector<8x128xf32>
    %193 = vector.extract_strided_slice %191 {offsets = [0, 0], sizes = [8, 32], strides = [1, 1]} : vector<8x128xf32> to vector<8x32xf32>
    %194 = vector.extract_strided_slice %191 {offsets = [0, 32], sizes = [8, 32], strides = [1, 1]} : vector<8x128xf32> to vector<8x32xf32>
    %195 = vector.extract_strided_slice %192 {offsets = [0, 64], sizes = [8, 32], strides = [1, 1]} : vector<8x128xf32> to vector<8x32xf32>
    %196 = vector.extract_strided_slice %191 {offsets = [0, 96], sizes = [8, 32], strides = [1, 1]} : vector<8x128xf32> to vector<8x32xf32>
    %197 = arith.mulf %194, %181 : vector<8x32xf32>
    %198 = arith.mulf %193, %195 : vector<8x32xf32>
    %199 = arith.addf %197, %198 : vector<8x32xf32>
    %200 = math.tanh %199 : vector<8x32xf32>
    %201 = arith.mulf %196, %200 : vector<8x32xf32>
    %202 = vector.extract_strided_slice %163 {offsets = [0, 640], sizes = [8, 128], strides = [1, 1]} : vector<8x1024xf32> to vector<8x128xf32>
    %cst_43 = arith.constant dense<0.000000e+00> : vector<8x128xf32>
    %203 = tpu.matmul %201, %160, %cst_43 {dimension_numbers = #tpu.dot_dimension_numbers<[1], [0], [0], [1], [0, 0, 1, 1], [], []>} : vector<8x32xf32>, vector<32x128xf32>, vector<8x128xf32> -> vector<8x128xf32>
    %204 = arith.addf %202, %203 : vector<8x128xf32>
    %205 = arith.negf %204 : vector<8x128xf32>
    %206 = math.exp %205 : vector<8x128xf32>
    %cst_44 = arith.constant 1.000000e+00 : f32
    %207 = vector.broadcast %cst_44 : f32 to vector<8x128xf32>
    %208 = arith.addf %207, %206 : vector<8x128xf32>
    %209 = arith.divf %207, %208 : vector<8x128xf32>
    %210 = math.tanh %204 : vector<8x128xf32>
    %211 = vector.extract_strided_slice %209 {offsets = [0, 0], sizes = [8, 32], strides = [1, 1]} : vector<8x128xf32> to vector<8x32xf32>
    %212 = vector.extract_strided_slice %209 {offsets = [0, 32], sizes = [8, 32], strides = [1, 1]} : vector<8x128xf32> to vector<8x32xf32>
    %213 = vector.extract_strided_slice %210 {offsets = [0, 64], sizes = [8, 32], strides = [1, 1]} : vector<8x128xf32> to vector<8x32xf32>
    %214 = vector.extract_strided_slice %209 {offsets = [0, 96], sizes = [8, 32], strides = [1, 1]} : vector<8x128xf32> to vector<8x32xf32>
    %215 = arith.mulf %212, %199 : vector<8x32xf32>
    %216 = arith.mulf %211, %213 : vector<8x32xf32>
    %217 = arith.addf %215, %216 : vector<8x32xf32>
    %218 = math.tanh %217 : vector<8x32xf32>
    %219 = arith.mulf %214, %218 : vector<8x32xf32>
    %220 = vector.extract_strided_slice %163 {offsets = [0, 512], sizes = [8, 128], strides = [1, 1]} : vector<8x1024xf32> to vector<8x128xf32>
    %cst_45 = arith.constant dense<0.000000e+00> : vector<8x128xf32>
    %221 = tpu.matmul %219, %160, %cst_45 {dimension_numbers = #tpu.dot_dimension_numbers<[1], [0], [0], [1], [0, 0, 1, 1], [], []>} : vector<8x32xf32>, vector<32x128xf32>, vector<8x128xf32> -> vector<8x128xf32>
    %222 = arith.addf %220, %221 : vector<8x128xf32>
    %223 = arith.negf %222 : vector<8x128xf32>
    %224 = math.exp %223 : vector<8x128xf32>
    %cst_46 = arith.constant 1.000000e+00 : f32
    %225 = vector.broadcast %cst_46 : f32 to vector<8x128xf32>
    %226 = arith.addf %225, %224 : vector<8x128xf32>
    %227 = arith.divf %225, %226 : vector<8x128xf32>
    %228 = math.tanh %222 : vector<8x128xf32>
    %229 = vector.extract_strided_slice %227 {offsets = [0, 0], sizes = [8, 32], strides = [1, 1]} : vector<8x128xf32> to vector<8x32xf32>
    %230 = vector.extract_strided_slice %227 {offsets = [0, 32], sizes = [8, 32], strides = [1, 1]} : vector<8x128xf32> to vector<8x32xf32>
    %231 = vector.extract_strided_slice %228 {offsets = [0, 64], sizes = [8, 32], strides = [1, 1]} : vector<8x128xf32> to vector<8x32xf32>
    %232 = vector.extract_strided_slice %227 {offsets = [0, 96], sizes = [8, 32], strides = [1, 1]} : vector<8x128xf32> to vector<8x32xf32>
    %233 = arith.mulf %230, %217 : vector<8x32xf32>
    %234 = arith.mulf %229, %231 : vector<8x32xf32>
    %235 = arith.addf %233, %234 : vector<8x32xf32>
    %236 = math.tanh %235 : vector<8x32xf32>
    %237 = arith.mulf %232, %236 : vector<8x32xf32>
    %238 = vector.extract_strided_slice %163 {offsets = [0, 384], sizes = [8, 128], strides = [1, 1]} : vector<8x1024xf32> to vector<8x128xf32>
    %cst_47 = arith.constant dense<0.000000e+00> : vector<8x128xf32>
    %239 = tpu.matmul %237, %160, %cst_47 {dimension_numbers = #tpu.dot_dimension_numbers<[1], [0], [0], [1], [0, 0, 1, 1], [], []>} : vector<8x32xf32>, vector<32x128xf32>, vector<8x128xf32> -> vector<8x128xf32>
    %240 = arith.addf %238, %239 : vector<8x128xf32>
    %241 = arith.negf %240 : vector<8x128xf32>
    %242 = math.exp %241 : vector<8x128xf32>
    %cst_48 = arith.constant 1.000000e+00 : f32
    %243 = vector.broadcast %cst_48 : f32 to vector<8x128xf32>
    %244 = arith.addf %243, %242 : vector<8x128xf32>
    %245 = arith.divf %243, %244 : vector<8x128xf32>
    %246 = math.tanh %240 : vector<8x128xf32>
    %247 = vector.extract_strided_slice %245 {offsets = [0, 0], sizes = [8, 32], strides = [1, 1]} : vector<8x128xf32> to vector<8x32xf32>
    %248 = vector.extract_strided_slice %245 {offsets = [0, 32], sizes = [8, 32], strides = [1, 1]} : vector<8x128xf32> to vector<8x32xf32>
    %249 = vector.extract_strided_slice %246 {offsets = [0, 64], sizes = [8, 32], strides = [1, 1]} : vector<8x128xf32> to vector<8x32xf32>
    %250 = vector.extract_strided_slice %245 {offsets = [0, 96], sizes = [8, 32], strides = [1, 1]} : vector<8x128xf32> to vector<8x32xf32>
    %251 = arith.mulf %248, %235 : vector<8x32xf32>
    %252 = arith.mulf %247, %249 : vector<8x32xf32>
    %253 = arith.addf %251, %252 : vector<8x32xf32>
    %254 = math.tanh %253 : vector<8x32xf32>
    %255 = arith.mulf %250, %254 : vector<8x32xf32>
    %256 = vector.extract_strided_slice %163 {offsets = [0, 256], sizes = [8, 128], strides = [1, 1]} : vector<8x1024xf32> to vector<8x128xf32>
    %cst_49 = arith.constant dense<0.000000e+00> : vector<8x128xf32>
    %257 = tpu.matmul %255, %160, %cst_49 {dimension_numbers = #tpu.dot_dimension_numbers<[1], [0], [0], [1], [0, 0, 1, 1], [], []>} : vector<8x32xf32>, vector<32x128xf32>, vector<8x128xf32> -> vector<8x128xf32>
    %258 = arith.addf %256, %257 : vector<8x128xf32>
    %259 = arith.negf %258 : vector<8x128xf32>
    %260 = math.exp %259 : vector<8x128xf32>
    %cst_50 = arith.constant 1.000000e+00 : f32
    %261 = vector.broadcast %cst_50 : f32 to vector<8x128xf32>
    %262 = arith.addf %261, %260 : vector<8x128xf32>
    %263 = arith.divf %261, %262 : vector<8x128xf32>
    %264 = math.tanh %258 : vector<8x128xf32>
    %265 = vector.extract_strided_slice %263 {offsets = [0, 0], sizes = [8, 32], strides = [1, 1]} : vector<8x128xf32> to vector<8x32xf32>
    %266 = vector.extract_strided_slice %263 {offsets = [0, 32], sizes = [8, 32], strides = [1, 1]} : vector<8x128xf32> to vector<8x32xf32>
    %267 = vector.extract_strided_slice %264 {offsets = [0, 64], sizes = [8, 32], strides = [1, 1]} : vector<8x128xf32> to vector<8x32xf32>
    %268 = vector.extract_strided_slice %263 {offsets = [0, 96], sizes = [8, 32], strides = [1, 1]} : vector<8x128xf32> to vector<8x32xf32>
    %269 = arith.mulf %266, %253 : vector<8x32xf32>
    %270 = arith.mulf %265, %267 : vector<8x32xf32>
    %271 = arith.addf %269, %270 : vector<8x32xf32>
    %272 = math.tanh %271 : vector<8x32xf32>
    %273 = arith.mulf %268, %272 : vector<8x32xf32>
    %274 = vector.extract_strided_slice %163 {offsets = [0, 128], sizes = [8, 128], strides = [1, 1]} : vector<8x1024xf32> to vector<8x128xf32>
    %cst_51 = arith.constant dense<0.000000e+00> : vector<8x128xf32>
    %275 = tpu.matmul %273, %160, %cst_51 {dimension_numbers = #tpu.dot_dimension_numbers<[1], [0], [0], [1], [0, 0, 1, 1], [], []>} : vector<8x32xf32>, vector<32x128xf32>, vector<8x128xf32> -> vector<8x128xf32>
    %276 = arith.addf %274, %275 : vector<8x128xf32>
    %277 = arith.negf %276 : vector<8x128xf32>
    %278 = math.exp %277 : vector<8x128xf32>
    %cst_52 = arith.constant 1.000000e+00 : f32
    %279 = vector.broadcast %cst_52 : f32 to vector<8x128xf32>
    %280 = arith.addf %279, %278 : vector<8x128xf32>
    %281 = arith.divf %279, %280 : vector<8x128xf32>
    %282 = math.tanh %276 : vector<8x128xf32>
    %283 = vector.extract_strided_slice %281 {offsets = [0, 0], sizes = [8, 32], strides = [1, 1]} : vector<8x128xf32> to vector<8x32xf32>
    %284 = vector.extract_strided_slice %281 {offsets = [0, 32], sizes = [8, 32], strides = [1, 1]} : vector<8x128xf32> to vector<8x32xf32>
    %285 = vector.extract_strided_slice %282 {offsets = [0, 64], sizes = [8, 32], strides = [1, 1]} : vector<8x128xf32> to vector<8x32xf32>
    %286 = vector.extract_strided_slice %281 {offsets = [0, 96], sizes = [8, 32], strides = [1, 1]} : vector<8x128xf32> to vector<8x32xf32>
    %287 = arith.mulf %284, %271 : vector<8x32xf32>
    %288 = arith.mulf %283, %285 : vector<8x32xf32>
    %289 = arith.addf %287, %288 : vector<8x32xf32>
    %290 = math.tanh %289 : vector<8x32xf32>
    %291 = arith.mulf %286, %290 : vector<8x32xf32>
    %292 = vector.extract_strided_slice %163 {offsets = [0, 0], sizes = [8, 128], strides = [1, 1]} : vector<8x1024xf32> to vector<8x128xf32>
    %cst_53 = arith.constant dense<0.000000e+00> : vector<8x128xf32>
    %293 = tpu.matmul %291, %160, %cst_53 {dimension_numbers = #tpu.dot_dimension_numbers<[1], [0], [0], [1], [0, 0, 1, 1], [], []>} : vector<8x32xf32>, vector<32x128xf32>, vector<8x128xf32> -> vector<8x128xf32>
    %294 = arith.addf %292, %293 : vector<8x128xf32>
    %295 = arith.negf %294 : vector<8x128xf32>
    %296 = math.exp %295 : vector<8x128xf32>
    %cst_54 = arith.constant 1.000000e+00 : f32
    %297 = vector.broadcast %cst_54 : f32 to vector<8x128xf32>
    %298 = arith.addf %297, %296 : vector<8x128xf32>
    %299 = arith.divf %297, %298 : vector<8x128xf32>
    %300 = math.tanh %294 : vector<8x128xf32>
    %301 = vector.extract_strided_slice %299 {offsets = [0, 0], sizes = [8, 32], strides = [1, 1]} : vector<8x128xf32> to vector<8x32xf32>
    %302 = vector.extract_strided_slice %299 {offsets = [0, 32], sizes = [8, 32], strides = [1, 1]} : vector<8x128xf32> to vector<8x32xf32>
    %303 = vector.extract_strided_slice %300 {offsets = [0, 64], sizes = [8, 32], strides = [1, 1]} : vector<8x128xf32> to vector<8x32xf32>
    %304 = vector.extract_strided_slice %299 {offsets = [0, 96], sizes = [8, 32], strides = [1, 1]} : vector<8x128xf32> to vector<8x32xf32>
    %305 = arith.mulf %302, %289 : vector<8x32xf32>
    %306 = arith.mulf %301, %303 : vector<8x32xf32>
    %307 = arith.addf %305, %306 : vector<8x32xf32>
    %308 = math.tanh %307 : vector<8x32xf32>
    %309 = arith.mulf %304, %308 : vector<8x32xf32>
    %c0_55 = arith.constant 0 : index
    %c0_56 = arith.constant 0 : index
    %310 = vector.load %arg9[%c0_55, %c0_56] : memref<256x8xf32, #tpu.memory_space<vmem>>, vector<256x8xf32>
    %311 = tpu.concatenate %31, %49, %67, %85, %103, %121, %139, %157 in 1 : vector<8x32xf32>, vector<8x32xf32>, vector<8x32xf32>, vector<8x32xf32>, vector<8x32xf32>, vector<8x32xf32>, vector<8x32xf32>, vector<8x32xf32> -> vector<8x256xf32>
    %cst_57 = arith.constant dense<0.000000e+00> : vector<8x8xf32>
    %312 = tpu.matmul %311, %310, %cst_57 {dimension_numbers = #tpu.dot_dimension_numbers<[1], [0], [0], [1], [0, 0, 1, 1], [], []>} : vector<8x256xf32>, vector<256x8xf32>, vector<8x8xf32> -> vector<8x8xf32>
    %cst_58 = arith.constant dense<0xFF800000> : vector<8xf32>
    %313 = vector.multi_reduction <maximumf>, %312, %cst_58 [1] : vector<8x8xf32> to vector<8xf32>
    %314 = vector.shape_cast %313 : vector<8xf32> to vector<8x1xf32>
    %315 = vector.broadcast %314 : vector<8x1xf32> to vector<8x8xf32>
    %316 = arith.subf %312, %315 : vector<8x8xf32>
    %317 = math.exp %316 : vector<8x8xf32>
    %cst_59 = arith.constant dense<0.000000e+00> : vector<8xf32>
    %318 = vector.multi_reduction <add>, %317, %cst_59 [1] : vector<8x8xf32> to vector<8xf32>
    %319 = vector.shape_cast %318 : vector<8xf32> to vector<8x1xf32>
    %320 = vector.broadcast %319 : vector<8x1xf32> to vector<8x8xf32>
    %321 = arith.divf %317, %320 : vector<8x8xf32>
    %cst_60 = arith.constant 0.000000e+00 : f32
    %322 = vector.broadcast %cst_60 : f32 to vector<8x32xf32>
    %323 = vector.extract_strided_slice %321 {offsets = [0, 0], sizes = [8, 1], strides = [1, 1]} : vector<8x8xf32> to vector<8x1xf32>
    %324 = vector.broadcast %323 : vector<8x1xf32> to vector<8x32xf32>
    %325 = arith.mulf %324, %31 : vector<8x32xf32>
    %326 = arith.addf %322, %325 : vector<8x32xf32>
    %327 = vector.extract_strided_slice %321 {offsets = [0, 1], sizes = [8, 1], strides = [1, 1]} : vector<8x8xf32> to vector<8x1xf32>
    %328 = vector.broadcast %327 : vector<8x1xf32> to vector<8x32xf32>
    %329 = arith.mulf %328, %49 : vector<8x32xf32>
    %330 = arith.addf %326, %329 : vector<8x32xf32>
    %331 = vector.extract_strided_slice %321 {offsets = [0, 2], sizes = [8, 1], strides = [1, 1]} : vector<8x8xf32> to vector<8x1xf32>
    %332 = vector.broadcast %331 : vector<8x1xf32> to vector<8x32xf32>
    %333 = arith.mulf %332, %67 : vector<8x32xf32>
    %334 = arith.addf %330, %333 : vector<8x32xf32>
    %335 = vector.extract_strided_slice %321 {offsets = [0, 3], sizes = [8, 1], strides = [1, 1]} : vector<8x8xf32> to vector<8x1xf32>
    %336 = vector.broadcast %335 : vector<8x1xf32> to vector<8x32xf32>
    %337 = arith.mulf %336, %85 : vector<8x32xf32>
    %338 = arith.addf %334, %337 : vector<8x32xf32>
    %339 = vector.extract_strided_slice %321 {offsets = [0, 4], sizes = [8, 1], strides = [1, 1]} : vector<8x8xf32> to vector<8x1xf32>
    %340 = vector.broadcast %339 : vector<8x1xf32> to vector<8x32xf32>
    %341 = arith.mulf %340, %103 : vector<8x32xf32>
    %342 = arith.addf %338, %341 : vector<8x32xf32>
    %343 = vector.extract_strided_slice %321 {offsets = [0, 5], sizes = [8, 1], strides = [1, 1]} : vector<8x8xf32> to vector<8x1xf32>
    %344 = vector.broadcast %343 : vector<8x1xf32> to vector<8x32xf32>
    %345 = arith.mulf %344, %121 : vector<8x32xf32>
    %346 = arith.addf %342, %345 : vector<8x32xf32>
    %347 = vector.extract_strided_slice %321 {offsets = [0, 6], sizes = [8, 1], strides = [1, 1]} : vector<8x8xf32> to vector<8x1xf32>
    %348 = vector.broadcast %347 : vector<8x1xf32> to vector<8x32xf32>
    %349 = arith.mulf %348, %139 : vector<8x32xf32>
    %350 = arith.addf %346, %349 : vector<8x32xf32>
    %351 = vector.extract_strided_slice %321 {offsets = [0, 7], sizes = [8, 1], strides = [1, 1]} : vector<8x8xf32> to vector<8x1xf32>
    %352 = vector.broadcast %351 : vector<8x1xf32> to vector<8x32xf32>
    %353 = arith.mulf %352, %157 : vector<8x32xf32>
    %354 = arith.addf %350, %353 : vector<8x32xf32>
    %c0_61 = arith.constant 0 : index
    %c0_62 = arith.constant 0 : index
    %355 = vector.load %arg10[%c0_61, %c0_62] : memref<256x8xf32, #tpu.memory_space<vmem>>, vector<256x8xf32>
    %356 = tpu.concatenate %309, %291, %273, %255, %237, %219, %201, %183 in 1 : vector<8x32xf32>, vector<8x32xf32>, vector<8x32xf32>, vector<8x32xf32>, vector<8x32xf32>, vector<8x32xf32>, vector<8x32xf32>, vector<8x32xf32> -> vector<8x256xf32>
    %cst_63 = arith.constant dense<0.000000e+00> : vector<8x8xf32>
    %357 = tpu.matmul %356, %355, %cst_63 {dimension_numbers = #tpu.dot_dimension_numbers<[1], [0], [0], [1], [0, 0, 1, 1], [], []>} : vector<8x256xf32>, vector<256x8xf32>, vector<8x8xf32> -> vector<8x8xf32>
    %cst_64 = arith.constant dense<0xFF800000> : vector<8xf32>
    %358 = vector.multi_reduction <maximumf>, %357, %cst_64 [1] : vector<8x8xf32> to vector<8xf32>
    %359 = vector.shape_cast %358 : vector<8xf32> to vector<8x1xf32>
    %360 = vector.broadcast %359 : vector<8x1xf32> to vector<8x8xf32>
    %361 = arith.subf %357, %360 : vector<8x8xf32>
    %362 = math.exp %361 : vector<8x8xf32>
    %cst_65 = arith.constant dense<0.000000e+00> : vector<8xf32>
    %363 = vector.multi_reduction <add>, %362, %cst_65 [1] : vector<8x8xf32> to vector<8xf32>
    %364 = vector.shape_cast %363 : vector<8xf32> to vector<8x1xf32>
    %365 = vector.broadcast %364 : vector<8x1xf32> to vector<8x8xf32>
    %366 = arith.divf %362, %365 : vector<8x8xf32>
    %cst_66 = arith.constant 0.000000e+00 : f32
    %367 = vector.broadcast %cst_66 : f32 to vector<8x32xf32>
    %368 = vector.extract_strided_slice %366 {offsets = [0, 0], sizes = [8, 1], strides = [1, 1]} : vector<8x8xf32> to vector<8x1xf32>
    %369 = vector.broadcast %368 : vector<8x1xf32> to vector<8x32xf32>
    %370 = arith.mulf %369, %309 : vector<8x32xf32>
    %371 = arith.addf %367, %370 : vector<8x32xf32>
    %372 = vector.extract_strided_slice %366 {offsets = [0, 1], sizes = [8, 1], strides = [1, 1]} : vector<8x8xf32> to vector<8x1xf32>
    %373 = vector.broadcast %372 : vector<8x1xf32> to vector<8x32xf32>
    %374 = arith.mulf %373, %291 : vector<8x32xf32>
    %375 = arith.addf %371, %374 : vector<8x32xf32>
    %376 = vector.extract_strided_slice %366 {offsets = [0, 2], sizes = [8, 1], strides = [1, 1]} : vector<8x8xf32> to vector<8x1xf32>
    %377 = vector.broadcast %376 : vector<8x1xf32> to vector<8x32xf32>
    %378 = arith.mulf %377, %273 : vector<8x32xf32>
    %379 = arith.addf %375, %378 : vector<8x32xf32>
    %380 = vector.extract_strided_slice %366 {offsets = [0, 3], sizes = [8, 1], strides = [1, 1]} : vector<8x8xf32> to vector<8x1xf32>
    %381 = vector.broadcast %380 : vector<8x1xf32> to vector<8x32xf32>
    %382 = arith.mulf %381, %255 : vector<8x32xf32>
    %383 = arith.addf %379, %382 : vector<8x32xf32>
    %384 = vector.extract_strided_slice %366 {offsets = [0, 4], sizes = [8, 1], strides = [1, 1]} : vector<8x8xf32> to vector<8x1xf32>
    %385 = vector.broadcast %384 : vector<8x1xf32> to vector<8x32xf32>
    %386 = arith.mulf %385, %237 : vector<8x32xf32>
    %387 = arith.addf %383, %386 : vector<8x32xf32>
    %388 = vector.extract_strided_slice %366 {offsets = [0, 5], sizes = [8, 1], strides = [1, 1]} : vector<8x8xf32> to vector<8x1xf32>
    %389 = vector.broadcast %388 : vector<8x1xf32> to vector<8x32xf32>
    %390 = arith.mulf %389, %219 : vector<8x32xf32>
    %391 = arith.addf %387, %390 : vector<8x32xf32>
    %392 = vector.extract_strided_slice %366 {offsets = [0, 6], sizes = [8, 1], strides = [1, 1]} : vector<8x8xf32> to vector<8x1xf32>
    %393 = vector.broadcast %392 : vector<8x1xf32> to vector<8x32xf32>
    %394 = arith.mulf %393, %201 : vector<8x32xf32>
    %395 = arith.addf %391, %394 : vector<8x32xf32>
    %396 = vector.extract_strided_slice %366 {offsets = [0, 7], sizes = [8, 1], strides = [1, 1]} : vector<8x8xf32> to vector<8x1xf32>
    %397 = vector.broadcast %396 : vector<8x1xf32> to vector<8x32xf32>
    %398 = arith.mulf %397, %183 : vector<8x32xf32>
    %399 = arith.addf %395, %398 : vector<8x32xf32>
    %c0_67 = arith.constant 0 : index
    %c0_68 = arith.constant 0 : index
    %400 = vector.load %arg11[%c0_67, %c0_68] : memref<32x256xf32, #tpu.memory_space<vmem>>, vector<32x256xf32>
    %cst_69 = arith.constant dense<0.000000e+00> : vector<8x256xf32>
    %401 = tpu.matmul %354, %400, %cst_69 {dimension_numbers = #tpu.dot_dimension_numbers<[1], [0], [0], [1], [0, 0, 1, 1], [], []>} : vector<8x32xf32>, vector<32x256xf32>, vector<8x256xf32> -> vector<8x256xf32>
    %c0_70 = arith.constant 0 : index
    %c0_71 = arith.constant 0 : index
    %402 = vector.load %arg12[%c0_70, %c0_71] : memref<32x256xf32, #tpu.memory_space<vmem>>, vector<32x256xf32>
    %cst_72 = arith.constant dense<0.000000e+00> : vector<8x256xf32>
    %403 = tpu.matmul %399, %402, %cst_72 {dimension_numbers = #tpu.dot_dimension_numbers<[1], [0], [0], [1], [0, 0, 1, 1], [], []>} : vector<8x32xf32>, vector<32x256xf32>, vector<8x256xf32> -> vector<8x256xf32>
    %404 = arith.addf %401, %403 : vector<8x256xf32>
    %c0_73 = arith.constant 0 : index
    %c0_74 = arith.constant 0 : index
    %405 = vector.load %arg13[%c0_73, %c0_74] : memref<1x256xf32, #tpu.memory_space<vmem>>, vector<1x256xf32>
    %406 = vector.broadcast %405 : vector<1x256xf32> to vector<8x256xf32>
    %407 = arith.addf %404, %406 : vector<8x256xf32>
    %cst_75 = arith.constant dense<0xFF800000> : vector<8xf32>
    %408 = vector.multi_reduction <maximumf>, %407, %cst_75 [1] : vector<8x256xf32> to vector<8xf32>
    %409 = vector.shape_cast %408 : vector<8xf32> to vector<8x1xf32>
    %410 = vector.broadcast %409 : vector<8x1xf32> to vector<8x256xf32>
    %411 = arith.subf %407, %410 : vector<8x256xf32>
    %412 = math.exp %411 : vector<8x256xf32>
    %cst_76 = arith.constant dense<0.000000e+00> : vector<8xf32>
    %413 = vector.multi_reduction <add>, %412, %cst_76 [1] : vector<8x256xf32> to vector<8xf32>
    %414 = vector.shape_cast %413 : vector<8xf32> to vector<8x1xf32>
    %415 = vector.broadcast %414 : vector<8x1xf32> to vector<8x256xf32>
    %416 = arith.divf %412, %415 : vector<8x256xf32>
    %c0_77 = arith.constant 0 : index
    %c0_78 = arith.constant 0 : index
    %417 = vector.load %arg14[%c0_77, %c0_78] : memref<8x256xf32, #tpu.memory_space<vmem>>, vector<8x256xf32>
    tpu.vector_store %arg14[%c0_77, %c0_78], %416 {strides = array<i32>} : memref<8x256xf32, #tpu.memory_space<vmem>>, vector<8x256xf32>,
    return
  }
}

</mosaic_0001>

<llo_original>
// kernel: tpu_custom_call.1
$region0: #{tpu_custom_call.1}
  #allocation0 [shape = 'u32[]', space=smem, size = 0x4, offset = 0x4, fixed_abs, tag = 'smem constant byte address 0x4 - core index']
  #allocation1 [shape = 'u32[144,128]{1,0:T(1,128)}', space=vmem, size = 0x12000, scoped, tag = 'internal scratch']
  %s0 = inlined_call_operand.vmem [shape: f32[8,486], index: 0, kind: input, shape index: {}]
  %s1 = inlined_call_operand.vmem [shape: f32[486,8], index: 1, kind: input, shape index: {}]
  %s2 = inlined_call_operand.vmem [shape: f32[1,8], index: 2, kind: input, shape index: {}]
  %s3 = inlined_call_operand.vmem [shape: f32[8,1024], index: 3, kind: input, shape index: {}]
  %s4 = inlined_call_operand.vmem [shape: f32[1,1024], index: 4, kind: input, shape index: {}]
  %s5 = inlined_call_operand.vmem [shape: f32[32,128], index: 5, kind: input, shape index: {}]
  %s6 = inlined_call_operand.vmem [shape: f32[8,1024], index: 6, kind: input, shape index: {}]
  %s7 = inlined_call_operand.vmem [shape: f32[1,1024], index: 7, kind: input, shape index: {}]
  %s8 = inlined_call_operand.vmem [shape: f32[32,128], index: 8, kind: input, shape index: {}]
  %s9 = inlined_call_operand.vmem [shape: f32[256,8], index: 9, kind: input, shape index: {}]
  %s10 = inlined_call_operand.vmem [shape: f32[256,8], index: 10, kind: input, shape index: {}]
  %s11 = inlined_call_operand.vmem [shape: f32[32,256], index: 11, kind: input, shape index: {}]
  %s12 = inlined_call_operand.vmem [shape: f32[32,256], index: 12, kind: input, shape index: {}]
  %s13 = inlined_call_operand.vmem [shape: f32[1,256], index: 13, kind: input, shape index: {}]
  %s14 = inlined_call_operand.hbm [shape: f32[8,256], index: 14, kind: output, shape index: {}]
  %s15 = sld [smem:[#allocation0]]
  $region66: #{tpu_custom_call.1} parent=0
    _
  %s17 = ssub.s32 1, %s15
  %s18 = scalar_select 0, %s17, %s15
  $region1: #{tpu_custom_call.1} parent=0
    #allocation2 [shape = 'u8[8192]{0}', space=vmem, size = 0x2000, scoped, tag = 'output window, operand 0, single buffered']
    #allocation3 [shape = 's32[1]{0}', space=sflag, size = 0x4, scoped, tag = 'scoped memory for tpu_custom_call.1']
    %19 = vsyncpa [#allocation3], 0
    // Predicated region
    $region2: #{tpu_custom_call.1} parent=1 // pred_check
      _
    $region3: #{tpu_custom_call.1} parent=1 // pred_check_branch
      %21 = sbr.rel (0) target = $region5
    $region4: #{tpu_custom_call.1} parent=1 // pred_region
      _
    $region5: #{tpu_custom_call.1} parent=1 // pred_fallthru
      _
    // Predicated region
    $region6: #{tpu_custom_call.1} parent=1 // pred_check
      _
    $region7: #{tpu_custom_call.1} parent=1 // pred_check_branch
      %23 = sbr.rel (0) target = $region9
    $region8: #{tpu_custom_call.1} parent=1 // pred_region
      _
    $region9: #{tpu_custom_call.1} parent=1 // pred_fallthru
      _
    // Predicated region
    $region10: #{tpu_custom_call.1} parent=1 // pred_check
      _
    $region11: #{tpu_custom_call.1} parent=1 // pred_check_branch
      %25 = sbr.rel (0) target = $region13
    $region12: #{tpu_custom_call.1} parent=1 // pred_region
      _
    $region13: #{tpu_custom_call.1} parent=1 // pred_fallthru
      _
    // Predicated region
    $region14: #{tpu_custom_call.1} parent=1 // pred_check
      _
    $region15: #{tpu_custom_call.1} parent=1 // pred_check_branch
      %27 = sbr.rel (0) target = $region17
    $region16: #{tpu_custom_call.1} parent=1 // pred_region
      _
    $region17: #{tpu_custom_call.1} parent=1 // pred_fallthru
      _
    // Predicated region
    $region18: #{tpu_custom_call.1} parent=1 // pred_check
      _
    $region19: #{tpu_custom_call.1} parent=1 // pred_check_branch
      %29 = sbr.rel (0) target = $region21
    $region20: #{tpu_custom_call.1} parent=1 // pred_region
      _
    $region21: #{tpu_custom_call.1} parent=1 // pred_fallthru
      _
    // Predicated region
    $region22: #{tpu_custom_call.1} parent=1 // pred_check
      _
    $region23: #{tpu_custom_call.1} parent=1 // pred_check_branch
      %31 = sbr.rel (0) target = $region25
    $region24: #{tpu_custom_call.1} parent=1 // pred_region
      _
    $region25: #{tpu_custom_call.1} parent=1 // pred_fallthru
      _
    // Predicated region
    $region26: #{tpu_custom_call.1} parent=1 // pred_check
      _
    $region27: #{tpu_custom_call.1} parent=1 // pred_check_branch
      %33 = sbr.rel (0) target = $region29
    $region28: #{tpu_custom_call.1} parent=1 // pred_region
      _
    $region29: #{tpu_custom_call.1} parent=1 // pred_fallthru
      _
    // Predicated region
    $region30: #{tpu_custom_call.1} parent=1 // pred_check
      _
    $region31: #{tpu_custom_call.1} parent=1 // pred_check_branch
      %35 = sbr.rel (0) target = $region33
    $region32: #{tpu_custom_call.1} parent=1 // pred_region
      _
    $region33: #{tpu_custom_call.1} parent=1 // pred_fallthru
      _
    // Predicated region
    $region34: #{tpu_custom_call.1} parent=1 // pred_check
      _
    $region35: #{tpu_custom_call.1} parent=1 // pred_check_branch
      %37 = sbr.rel (0) target = $region37
    $region36: #{tpu_custom_call.1} parent=1 // pred_region
      _
    $region37: #{tpu_custom_call.1} parent=1 // pred_fallthru
      _
    // Predicated region
    $region38: #{tpu_custom_call.1} parent=1 // pred_check
      _
    $region39: #{tpu_custom_call.1} parent=1 // pred_check_branch
      %39 = sbr.rel (0) target = $region41
    $region40: #{tpu_custom_call.1} parent=1 // pred_region
      _
    $region41: #{tpu_custom_call.1} parent=1 // pred_fallthru
      _
    // Predicated region
    $region42: #{tpu_custom_call.1} parent=1 // pred_check
      _
    $region43: #{tpu_custom_call.1} parent=1 // pred_check_branch
      %41 = sbr.rel (0) target = $region45
    $region44: #{tpu_custom_call.1} parent=1 // pred_region
      _
    $region45: #{tpu_custom_call.1} parent=1 // pred_fallthru
      _
    // Predicated region
    $region46: #{tpu_custom_call.1} parent=1 // pred_check
      _
    $region47: #{tpu_custom_call.1} parent=1 // pred_check_branch
      %43 = sbr.rel (0) target = $region49
    $region48: #{tpu_custom_call.1} parent=1 // pred_region
      _
    $region49: #{tpu_custom_call.1} parent=1 // pred_fallthru
      _
    // Predicated region
    $region50: #{tpu_custom_call.1} parent=1 // pred_check
      _
    $region51: #{tpu_custom_call.1} parent=1 // pred_check_branch
      %45 = sbr.rel (0) target = $region53
    $region52: #{tpu_custom_call.1} parent=1 // pred_region
      _
    $region53: #{tpu_custom_call.1} parent=1 // pred_fallthru
      _
    // Predicated region
    $region54: #{tpu_custom_call.1} parent=1 // pred_check
      _
    $region55: #{tpu_custom_call.1} parent=1 // pred_check_branch
      %47 = sbr.rel (0) target = $region57
    $region56: #{tpu_custom_call.1} parent=1 // pred_region
      _
    $region57: #{tpu_custom_call.1} parent=1 // pred_fallthru
      _
    %v48 = vld [vmem:[%s0] sm:$0xff]
    %v49 = vld [vmem:[%s0 + $0x8] sm:$0xff]
    %v50 = vld [vmem:[%s0 + $0x10] sm:$0xff]
    %v51 = vld [vmem:[%s0 + $0x18] sm:$0xff]
    %v52 = vld [vmem:[%s1] sm:$0xff]
    %v53 = vld [vmem:[%s1 + $0x8] sm:$0xff]
    %v54 = vld [vmem:[%s1 + $0x10] sm:$0xff]
    %v55 = vld [vmem:[%s1 + $0x18] sm:$0xff]
    %v56 = vld [vmem:[%s1 + $0x20] sm:$0xff]
    %v57 = vld [vmem:[%s1 + $0x28] sm:$0xff]
    %v58 = vld [vmem:[%s1 + $0x30] sm:$0xff]
    %v59 = vld [vmem:[%s1 + $0x38] sm:$0xff]
    %v60 = vld [vmem:[%s1 + $0x40] sm:$0xff]
    %v61 = vld [vmem:[%s1 + $0x48] sm:$0xff]
    %v62 = vld [vmem:[%s1 + $0x50] sm:$0xff]
    %v63 = vld [vmem:[%s1 + $0x58] sm:$0xff]
    %v64 = vld [vmem:[%s1 + $0x60] sm:$0xff]
    %v65 = vld [vmem:[%s1 + $0x68] sm:$0xff]
    %v66 = vld [vmem:[%s1 + $0x70] sm:$0xff]
    %v67 = vld [vmem:[%s1 + $0x78] sm:$0xff]
    %v68 = vld [vmem:[%s1 + $0x80] sm:$0xff]
    %v69 = vld [vmem:[%s1 + $0x88] sm:$0xff]
    %v70 = vld [vmem:[%s1 + $0x90] sm:$0xff]
    %v71 = vld [vmem:[%s1 + $0x98] sm:$0xff]
    %v72 = vld [vmem:[%s1 + $0xa0] sm:$0xff]
    %v73 = vld [vmem:[%s1 + $0xa8] sm:$0xff]
    %v74 = vld [vmem:[%s1 + $0xb0] sm:$0xff]
    %v75 = vld [vmem:[%s1 + $0xb8] sm:$0xff]
    %v76 = vld [vmem:[%s1 + $0xc0] sm:$0xff]
    %v77 = vld [vmem:[%s1 + $0xc8] sm:$0xff]
    %v78 = vld [vmem:[%s1 + $0xd0] sm:$0xff]
    %v79 = vld [vmem:[%s1 + $0xd8] sm:$0xff]
    %v80 = vld [vmem:[%s1 + $0xe0] sm:$0xff]
    %v81 = vld [vmem:[%s1 + $0xe8] sm:$0xff]
    %v82 = vld [vmem:[%s1 + $0xf0] sm:$0xff]
    %v83 = vld [vmem:[%s1 + $0xf8] sm:$0xff]
    %v84 = vld [vmem:[%s1 + $0x100] sm:$0xff]
    %v85 = vld [vmem:[%s1 + $0x108] sm:$0xff]
    %v86 = vld [vmem:[%s1 + $0x110] sm:$0xff]
    %v87 = vld [vmem:[%s1 + $0x118] sm:$0xff]
    %v88 = vld [vmem:[%s1 + $0x120] sm:$0xff]
    %v89 = vld [vmem:[%s1 + $0x128] sm:$0xff]
    %v90 = vld [vmem:[%s1 + $0x130] sm:$0xff]
    %v91 = vld [vmem:[%s1 + $0x138] sm:$0xff]
    %v92 = vld [vmem:[%s1 + $0x140] sm:$0xff]
    %v93 = vld [vmem:[%s1 + $0x148] sm:$0xff]
    %v94 = vld [vmem:[%s1 + $0x150] sm:$0xff]
    %v95 = vld [vmem:[%s1 + $0x158] sm:$0xff]
    %v96 = vld [vmem:[%s1 + $0x160] sm:$0xff]
    %v97 = vld [vmem:[%s1 + $0x168] sm:$0xff]
    %v98 = vld [vmem:[%s1 + $0x170] sm:$0xff]
    %v99 = vld [vmem:[%s1 + $0x178] sm:$0xff]
    %v100 = vld [vmem:[%s1 + $0x180] sm:$0xff]
    %v101 = vld [vmem:[%s1 + $0x188] sm:$0xff]
    %v102 = vld [vmem:[%s1 + $0x190] sm:$0xff]
    %v103 = vld [vmem:[%s1 + $0x198] sm:$0xff]
    %v104 = vld [vmem:[%s1 + $0x1a0] sm:$0xff]
    %v105 = vld [vmem:[%s1 + $0x1a8] sm:$0xff]
    %v106 = vld [vmem:[%s1 + $0x1b0] sm:$0xff]
    %v107 = vld [vmem:[%s1 + $0x1b8] sm:$0xff]
    %v108 = vld [vmem:[%s1 + $0x1c0] sm:$0xff]
    %v109 = vld [vmem:[%s1 + $0x1c8] sm:$0xff]
    %v110 = vld [vmem:[%s1 + $0x1d0] sm:$0xff]
    %v111 = vld [vmem:[%s1 + $0x1d8] sm:$0xff]
    %v112 = vld [vmem:[%s1 + $0x1e0] sm:$0x3f]
    %v113 = vld [vmem:[%s2] sm:$0x1]
    %v115 = vlaneseq
    %v116 = vshrl.u32 %v115, 7
    %v117 = vsub.s32 0, %v116
    %v118 = vrot.slane %v113, %v117
    %vm120 = vcmask 834560
    %v122 = vsel %vm120, %v51, 0
    %vm124 = vcmask 1045504
    %v126 = vsel %vm124, %v112, 0
    %128 = vmatprep.subr.mxu0 0.0
    %129 = vmatpush1.msra.mxu0 %v67
    %130 = vmatprep.subr.mxu0 0.0
    %131 = vmatpush1.msra.mxu0 %v66
    %132 = vmatprep.subr.mxu0 0.0
    %133 = vmatpush1.msra.mxu0 %v65
    %134 = vmatprep.subr.mxu0 0.0
    %135 = vmatpush1.msra.mxu0 %v64
    %136 = vmatprep.subr.mxu0 0.0
    %137 = vmatpush1.msra.mxu0 %v63
    %138 = vmatprep.subr.mxu0 0.0
    %139 = vmatpush1.msra.mxu0 %v62
    %140 = vmatprep.subr.mxu0 0.0
    %141 = vmatpush1.msra.mxu0 %v61
    %142 = vmatprep.subr.mxu0 0.0
    %143 = vmatpush1.msra.mxu0 %v60
    %144 = vmatprep.subr.mxu0 0.0
    %145 = vmatpush1.msra.mxu0 %v59
    %146 = vmatprep.subr.mxu0 0.0
    %147 = vmatpush1.msra.mxu0 %v58
    %148 = vmatprep.subr.mxu0 0.0
    %149 = vmatpush1.msra.mxu0 %v57
    %150 = vmatprep.subr.mxu0 0.0
    %151 = vmatpush1.msra.mxu0 %v56
    %152 = vmatprep.subr.mxu0 0.0
    %153 = vmatpush1.msra.mxu0 %v55
    %154 = vmatprep.subr.mxu0 0.0
    %155 = vmatpush1.msra.mxu0 %v54
    %156 = vmatprep.subr.mxu0 0.0
    %157 = vmatpush1.msra.mxu0 %v53
    %158 = vmatprep.subr.mxu0 0.0
    %159 = vmatpush1.msra.mxu0 %v52
    %160 = vmatprep.subr.mxu0 0.0
    %161 = vmatpush2.msra.mxu0 %v83
    %162 = vmatprep.subr.mxu0 0.0
    %163 = vmatpush2.msra.mxu0 %v82
    %164 = vmatprep.subr.mxu0 0.0
    %165 = vmatpush2.msra.mxu0 %v81
    %166 = vmatprep.subr.mxu0 0.0
    %167 = vmatpush2.msra.mxu0 %v80
    %168 = vmatprep.subr.mxu0 0.0
    %169 = vmatpush2.msra.mxu0 %v79
    %170 = vmatprep.subr.mxu0 0.0
    %171 = vmatpush2.msra.mxu0 %v78
    %172 = vmatprep.subr.mxu0 0.0
    %173 = vmatpush2.msra.mxu0 %v77
    %174 = vmatprep.subr.mxu0 0.0
    %175 = vmatpush2.msra.mxu0 %v76
    %176 = vmatprep.subr.mxu0 0.0
    %177 = vmatpush2.msra.mxu0 %v75
    %178 = vmatprep.subr.mxu0 0.0
    %179 = vmatpush2.msra.mxu0 %v74
    %180 = vmatprep.subr.mxu0 0.0
    %181 = vmatpush2.msra.mxu0 %v73
    %182 = vmatprep.subr.mxu0 0.0
    %183 = vmatpush2.msra.mxu0 %v72
    %184 = vmatprep.subr.mxu0 0.0
    %185 = vmatpush2.msra.mxu0 %v71
    %186 = vmatprep.subr.mxu0 0.0
    %187 = vmatpush2.msra.mxu0 %v70
    %188 = vmatprep.subr.mxu0 0.0
    %189 = vmatpush2.msra.mxu0 %v69
    %190 = vmatprep.subr.mxu0 0.0
    %191 = vmatpush2.msra.mxu0 %v68
    %192 = vmatprep.mubr.f32.mxu0 %v49
    %193 = vmatmul.mubr.f32.gmra.mxu0 %v48
    %v194 = vpop.f32.mrf.mxu0
    %v195 = vadd.f32 %v118, %v194
    %v196 = vpop.f32.mrf.mxu0
    %197 = vdwg.mxu0
    %198 = vmatprep.subr.mxu0 0.0
    %199 = vmatpush1.msra.mxu0 %v99
    %200 = vmatprep.subr.mxu0 0.0
    %201 = vmatpush1.msra.mxu0 %v98
    %202 = vmatprep.subr.mxu0 0.0
    %203 = vmatpush1.msra.mxu0 %v97
    %204 = vmatprep.subr.mxu0 0.0
    %205 = vmatpush1.msra.mxu0 %v96
    %206 = vmatprep.subr.mxu0 0.0
    %207 = vmatpush1.msra.mxu0 %v95
    %208 = vmatprep.subr.mxu0 0.0
    %209 = vmatpush1.msra.mxu0 %v94
    %210 = vmatprep.subr.mxu0 0.0
    %211 = vmatpush1.msra.mxu0 %v93
    %212 = vmatprep.subr.mxu0 0.0
    %213 = vmatpush1.msra.mxu0 %v92
    %214 = vmatprep.subr.mxu0 0.0
    %215 = vmatpush1.msra.mxu0 %v91
    %216 = vmatprep.subr.mxu0 0.0
    %217 = vmatpush1.msra.mxu0 %v90
    %218 = vmatprep.subr.mxu0 0.0
    %219 = vmatpush1.msra.mxu0 %v89
    %220 = vmatprep.subr.mxu0 0.0
    %221 = vmatpush1.msra.mxu0 %v88
    %222 = vmatprep.subr.mxu0 0.0
    %223 = vmatpush1.msra.mxu0 %v87
    %224 = vmatprep.subr.mxu0 0.0
    %225 = vmatpush1.msra.mxu0 %v86
    %226 = vmatprep.subr.mxu0 0.0
    %227 = vmatpush1.msra.mxu0 %v85
    %228 = vmatprep.subr.mxu0 0.0
    %229 = vmatpush1.msra.mxu0 %v84
    %230 = vmatprep.subr.mxu0 0.0
    %231 = vmatpush2.msra.mxu0 0.0
    %232 = vmatprep.subr.mxu0 0.0
    %233 = vmatpush2.msra.mxu0 0.0
    %234 = vmatprep.subr.mxu0 0.0
    %235 = vmatpush2.msra.mxu0 0.0
    %236 = vmatprep.subr.mxu0 0.0
    %237 = vmatpush2.msra.mxu0 %v126
    %238 = vmatprep.subr.mxu0 0.0
    %239 = vmatpush2.msra.mxu0 %v111
    %240 = vmatprep.subr.mxu0 0.0
    %241 = vmatpush2.msra.mxu0 %v110
    %242 = vmatprep.subr.mxu0 0.0
    %243 = vmatpush2.msra.mxu0 %v109
    %244 = vmatprep.subr.mxu0 0.0
    %245 = vmatpush2.msra.mxu0 %v108
    %246 = vmatprep.subr.mxu0 0.0
    %247 = vmatpush2.msra.mxu0 %v107
    %248 = vmatprep.subr.mxu0 0.0
    %249 = vmatpush2.msra.mxu0 %v106
    %250 = vmatprep.subr.mxu0 0.0
    %251 = vmatpush2.msra.mxu0 %v105
    %252 = vmatprep.subr.mxu0 0.0
    %253 = vmatpush2.msra.mxu0 %v104
    %254 = vmatprep.subr.mxu0 0.0
    %255 = vmatpush2.msra.mxu0 %v103
    %256 = vmatprep.subr.mxu0 0.0
    %257 = vmatpush2.msra.mxu0 %v102
    %258 = vmatprep.subr.mxu0 0.0
    %259 = vmatpush2.msra.mxu0 %v101
    %260 = vmatprep.subr.mxu0 0.0
    %261 = vmatpush2.msra.mxu0 %v100
    %262 = vmatprep.mubr.f32.mxu0 %v122
    %263 = vmatmul.mubr.f32.gmra.mxu0 %v50
    %v264 = vpop.f32.mrf.mxu0
    %v265 = vadd.f32 %v195, %v264
    %v266 = vpop.f32.mrf.mxu0
    %267 = vdwg.mxu0
    %v268 = vld [vmem:[%s3] sm:$0xff]
    %v269 = vld [vmem:[%s3 + $0x8] sm:$0xff]
    %v270 = vld [vmem:[%s3 + $0x10] sm:$0xff]
    %v271 = vld [vmem:[%s3 + $0x18] sm:$0xff]
    %v272 = vld [vmem:[%s3 + $0x20] sm:$0xff]
    %v273 = vld [vmem:[%s3 + $0x28] sm:$0xff]
    %v274 = vld [vmem:[%s3 + $0x30] sm:$0xff]
    %v275 = vld [vmem:[%s3 + $0x38] sm:$0xff]
    %v276 = vld [vmem:[%s4] sm:$0xff]
    %v277 = vld [vmem:[%s5] sm:$0xff]
    %v278 = vld [vmem:[%s5 + $0x8] sm:$0xff]
    %v279 = vld [vmem:[%s5 + $0x10] sm:$0xff]
    %v280 = vld [vmem:[%s5 + $0x18] sm:$0xff]
    %v282 = vlaneseq
    %v283 = vshrl.u32 %v282, 7
    %v284 = vsub.s32 0, %v283
    %v285 = vrot.slane %v276, %v284
    %v286 = vlaneseq
    %v287 = vshrl.u32 %v286, 7
    %v288 = vsub.s32 1, %v287
    %v289 = vrot.slane %v276, %v288
    %v290 = vlaneseq
    %v291 = vshrl.u32 %v290, 7
    %v292 = vsub.s32 2, %v291
    %v293 = vrot.slane %v276, %v292
    %v294 = vlaneseq
    %v295 = vshrl.u32 %v294, 7
    %v296 = vsub.s32 3, %v295
    %v297 = vrot.slane %v276, %v296
    %v298 = vlaneseq
    %v299 = vshrl.u32 %v298, 7
    %v300 = vsub.s32 4, %v299
    %v301 = vrot.slane %v276, %v300
    %v302 = vlaneseq
    %v303 = vshrl.u32 %v302, 7
    %v304 = vsub.s32 5, %v303
    %v305 = vrot.slane %v276, %v304
    %v306 = vlaneseq
    %v307 = vshrl.u32 %v306, 7
    %v308 = vsub.s32 6, %v307
    %v309 = vrot.slane %v276, %v308
    %v310 = vlaneseq
    %v311 = vshrl.u32 %v310, 7
    %v312 = vsub.s32 7, %v311
    %v313 = vrot.slane %v276, %v312
    %vm322 = vcmask 64512
    %v324 = vsel %vm322, %v265, 0
    %326 = vmatprep.subr.mxu0 0.0
    %327 = vmatpush1.msra.mxu0 0.0
    %328 = vmatprep.subr.mxu0 0.0
    %329 = vmatpush1.msra.mxu0 0.0
    %330 = vmatprep.subr.mxu0 0.0
    %331 = vmatpush1.msra.mxu0 0.0
    %332 = vmatprep.subr.mxu0 0.0
    %333 = vmatpush1.msra.mxu0 0.0
    %334 = vmatprep.subr.mxu0 0.0
    %335 = vmatpush1.msra.mxu0 0.0
    %336 = vmatprep.subr.mxu0 0.0
    %337 = vmatpush1.msra.mxu0 0.0
    %338 = vmatprep.subr.mxu0 0.0
    %339 = vmatpush1.msra.mxu0 0.0
    %340 = vmatprep.subr.mxu0 0.0
    %341 = vmatpush1.msra.mxu0 0.0
    %342 = vmatprep.subr.mxu0 0.0
    %343 = vmatpush1.msra.mxu0 0.0
    %344 = vmatprep.subr.mxu0 0.0
    %345 = vmatpush1.msra.mxu0 0.0
    %346 = vmatprep.subr.mxu0 0.0
    %347 = vmatpush1.msra.mxu0 0.0
    %348 = vmatprep.subr.mxu0 0.0
    %349 = vmatpush1.msra.mxu0 0.0
    %350 = vmatprep.subr.mxu0 0.0
    %351 = vmatpush1.msra.mxu0 0.0
    %352 = vmatprep.subr.mxu0 0.0
    %353 = vmatpush1.msra.mxu0 0.0
    %354 = vmatprep.subr.mxu0 0.0
    %355 = vmatpush1.msra.mxu0 0.0
    %356 = vmatprep.subr.mxu0 %v269
    %357 = vmatpush1.msra.mxu0 %v268
    %358 = vmatprep.subr.mxu0 0.0
    %359 = vmatpush2.msra.mxu0 0.0
    %360 = vmatprep.subr.mxu0 0.0
    %361 = vmatpush2.msra.mxu0 0.0
    %362 = vmatprep.subr.mxu0 0.0
    %363 = vmatpush2.msra.mxu0 0.0
    %364 = vmatprep.subr.mxu0 0.0
    %365 = vmatpush2.msra.mxu0 0.0
    %366 = vmatprep.subr.mxu0 0.0
    %367 = vmatpush2.msra.mxu0 0.0
    %368 = vmatprep.subr.mxu0 0.0
    %369 = vmatpush2.msra.mxu0 0.0
    %370 = vmatprep.subr.mxu0 0.0
    %371 = vmatpush2.msra.mxu0 0.0
    %372 = vmatprep.subr.mxu0 0.0
    %373 = vmatpush2.msra.mxu0 0.0
    %374 = vmatprep.subr.mxu0 0.0
    %375 = vmatpush2.msra.mxu0 0.0
    %376 = vmatprep.subr.mxu0 0.0
    %377 = vmatpush2.msra.mxu0 0.0
    %378 = vmatprep.subr.mxu0 0.0
    %379 = vmatpush2.msra.mxu0 0.0
    %380 = vmatprep.subr.mxu0 0.0
    %381 = vmatpush2.msra.mxu0 0.0
    %382 = vmatprep.subr.mxu0 0.0
    %383 = vmatpush2.msra.mxu0 0.0
    %384 = vmatprep.subr.mxu0 0.0
    %385 = vmatpush2.msra.mxu0 0.0
    %386 = vmatprep.subr.mxu0 0.0
    %387 = vmatpush2.msra.mxu0 0.0
    %388 = vmatprep.subr.mxu0 0.0
    %389 = vmatpush2.msra.mxu0 0.0
    %390 = vmatprep.mubr.f32.mxu0 0.0
    %391 = vmatmul.mubr.f32.gmra.mxu0 %v324
    %v392 = vpop.f32.mrf.mxu0
    %v393 = vadd.f32 %v285, %v392
    %v394 = vpop.f32.mrf.mxu0
    %v395 = vadd.f32 %v289, %v394
    %396 = vdwg.mxu0
    %397 = vmatprep.subr.mxu0 0.0
    %398 = vmatpush1.msra.mxu0 0.0
    %399 = vmatprep.subr.mxu0 0.0
    %400 = vmatpush1.msra.mxu0 0.0
    %401 = vmatprep.subr.mxu0 0.0
    %402 = vmatpush1.msra.mxu0 0.0
    %403 = vmatprep.subr.mxu0 0.0
    %404 = vmatpush1.msra.mxu0 0.0
    %405 = vmatprep.subr.mxu0 0.0
    %406 = vmatpush1.msra.mxu0 0.0
    %407 = vmatprep.subr.mxu0 0.0
    %408 = vmatpush1.msra.mxu0 0.0
    %409 = vmatprep.subr.mxu0 0.0
    %410 = vmatpush1.msra.mxu0 0.0
    %411 = vmatprep.subr.mxu0 0.0
    %412 = vmatpush1.msra.mxu0 0.0
    %413 = vmatprep.subr.mxu0 0.0
    %414 = vmatpush1.msra.mxu0 0.0
    %415 = vmatprep.subr.mxu0 0.0
    %416 = vmatpush1.msra.mxu0 0.0
    %417 = vmatprep.subr.mxu0 0.0
    %418 = vmatpush1.msra.mxu0 0.0
    %419 = vmatprep.subr.mxu0 0.0
    %420 = vmatpush1.msra.mxu0 0.0
    %421 = vmatprep.subr.mxu0 0.0
    %422 = vmatpush1.msra.mxu0 0.0
    %423 = vmatprep.subr.mxu0 0.0
    %424 = vmatpush1.msra.mxu0 0.0
    %425 = vmatprep.subr.mxu0 0.0
    %426 = vmatpush1.msra.mxu0 0.0
    %427 = vmatprep.subr.mxu0 %v271
    %428 = vmatpush1.msra.mxu0 %v270
    %429 = vmatprep.subr.mxu0 0.0
    %430 = vmatpush2.msra.mxu0 0.0
    %431 = vmatprep.subr.mxu0 0.0
    %432 = vmatpush2.msra.mxu0 0.0
    %433 = vmatprep.subr.mxu0 0.0
    %434 = vmatpush2.msra.mxu0 0.0
    %435 = vmatprep.subr.mxu0 0.0
    %436 = vmatpush2.msra.mxu0 0.0
    %437 = vmatprep.subr.mxu0 0.0
    %438 = vmatpush2.msra.mxu0 0.0
    %439 = vmatprep.subr.mxu0 0.0
    %440 = vmatpush2.msra.mxu0 0.0
    %441 = vmatprep.subr.mxu0 0.0
    %442 = vmatpush2.msra.mxu0 0.0
    %443 = vmatprep.subr.mxu0 0.0
    %444 = vmatpush2.msra.mxu0 0.0
    %445 = vmatprep.subr.mxu0 0.0
    %446 = vmatpush2.msra.mxu0 0.0
    %447 = vmatprep.subr.mxu0 0.0
    %448 = vmatpush2.msra.mxu0 0.0
    %449 = vmatprep.subr.mxu0 0.0
    %450 = vmatpush2.msra.mxu0 0.0
    %451 = vmatprep.subr.mxu0 0.0
    %452 = vmatpush2.msra.mxu0 0.0
    %453 = vmatprep.subr.mxu0 0.0
    %454 = vmatpush2.msra.mxu0 0.0
    %455 = vmatprep.subr.mxu0 0.0
    %456 = vmatpush2.msra.mxu0 0.0
    %457 = vmatprep.subr.mxu0 0.0
    %458 = vmatpush2.msra.mxu0 0.0
    %459 = vmatprep.subr.mxu0 0.0
    %460 = vmatpush2.msra.mxu0 0.0
    %461 = vmatprep.mubr.f32.mxu0 0.0
    %462 = vmatmul.mubr.f32.gmra.mxu0 %v324
    %v463 = vpop.f32.mrf.mxu0
    %v464 = vadd.f32 %v293, %v463
    %v465 = vpop.f32.mrf.mxu0
    %v466 = vadd.f32 %v297, %v465
    %467 = vdwg.mxu0
    %468 = vmatprep.subr.mxu0 0.0
    %469 = vmatpush1.msra.mxu0 0.0
    %470 = vmatprep.subr.mxu0 0.0
    %471 = vmatpush1.msra.mxu0 0.0
    %472 = vmatprep.subr.mxu0 0.0
    %473 = vmatpush1.msra.mxu0 0.0
    %474 = vmatprep.subr.mxu0 0.0
    %475 = vmatpush1.msra.mxu0 0.0
    %476 = vmatprep.subr.mxu0 0.0
    %477 = vmatpush1.msra.mxu0 0.0
    %478 = vmatprep.subr.mxu0 0.0
    %479 = vmatpush1.msra.mxu0 0.0
    %480 = vmatprep.subr.mxu0 0.0
    %481 = vmatpush1.msra.mxu0 0.0
    %482 = vmatprep.subr.mxu0 0.0
    %483 = vmatpush1.msra.mxu0 0.0
    %484 = vmatprep.subr.mxu0 0.0
    %485 = vmatpush1.msra.mxu0 0.0
    %486 = vmatprep.subr.mxu0 0.0
    %487 = vmatpush1.msra.mxu0 0.0
    %488 = vmatprep.subr.mxu0 0.0
    %489 = vmatpush1.msra.mxu0 0.0
    %490 = vmatprep.subr.mxu0 0.0
    %491 = vmatpush1.msra.mxu0 0.0
    %492 = vmatprep.subr.mxu0 0.0
    %493 = vmatpush1.msra.mxu0 0.0
    %494 = vmatprep.subr.mxu0 0.0
    %495 = vmatpush1.msra.mxu0 0.0
    %496 = vmatprep.subr.mxu0 0.0
    %497 = vmatpush1.msra.mxu0 0.0
    %498 = vmatprep.subr.mxu0 %v273
    %499 = vmatpush1.msra.mxu0 %v272
    %500 = vmatprep.subr.mxu0 0.0
    %501 = vmatpush2.msra.mxu0 0.0
    %502 = vmatprep.subr.mxu0 0.0
    %503 = vmatpush2.msra.mxu0 0.0
    %504 = vmatprep.subr.mxu0 0.0
    %505 = vmatpush2.msra.mxu0 0.0
    %506 = vmatprep.subr.mxu0 0.0
    %507 = vmatpush2.msra.mxu0 0.0
    %508 = vmatprep.subr.mxu0 0.0
    %509 = vmatpush2.msra.mxu0 0.0
    %510 = vmatprep.subr.mxu0 0.0
    %511 = vmatpush2.msra.mxu0 0.0
    %512 = vmatprep.subr.mxu0 0.0
    %513 = vmatpush2.msra.mxu0 0.0
    %514 = vmatprep.subr.mxu0 0.0
    %515 = vmatpush2.msra.mxu0 0.0
    %516 = vmatprep.subr.mxu0 0.0
    %517 = vmatpush2.msra.mxu0 0.0
    %518 = vmatprep.subr.mxu0 0.0
    %519 = vmatpush2.msra.mxu0 0.0
    %520 = vmatprep.subr.mxu0 0.0
    %521 = vmatpush2.msra.mxu0 0.0
    %522 = vmatprep.subr.mxu0 0.0
    %523 = vmatpush2.msra.mxu0 0.0
    %524 = vmatprep.subr.mxu0 0.0
    %525 = vmatpush2.msra.mxu0 0.0
    %526 = vmatprep.subr.mxu0 0.0
    %527 = vmatpush2.msra.mxu0 0.0
    %528 = vmatprep.subr.mxu0 0.0
    %529 = vmatpush2.msra.mxu0 0.0
    %530 = vmatprep.subr.mxu0 0.0
    %531 = vmatpush2.msra.mxu0 0.0
    %532 = vmatprep.mubr.f32.mxu0 0.0
    %533 = vmatmul.mubr.f32.gmra.mxu0 %v324
    %v534 = vpop.f32.mrf.mxu0
    %v535 = vadd.f32 %v301, %v534
    %v536 = vpop.f32.mrf.mxu0
    %v537 = vadd.f32 %v305, %v536
    %538 = vdwg.mxu0
    %539 = vmatprep.subr.mxu0 0.0
    %540 = vmatpush1.msra.mxu0 0.0
    %541 = vmatprep.subr.mxu0 0.0
    %542 = vmatpush1.msra.mxu0 0.0
    %543 = vmatprep.subr.mxu0 0.0
    %544 = vmatpush1.msra.mxu0 0.0
    %545 = vmatprep.subr.mxu0 0.0
    %546 = vmatpush1.msra.mxu0 0.0
    %547 = vmatprep.subr.mxu0 0.0
    %548 = vmatpush1.msra.mxu0 0.0
    %549 = vmatprep.subr.mxu0 0.0
    %550 = vmatpush1.msra.mxu0 0.0
    %551 = vmatprep.subr.mxu0 0.0
    %552 = vmatpush1.msra.mxu0 0.0
    %553 = vmatprep.subr.mxu0 0.0
    %554 = vmatpush1.msra.mxu0 0.0
    %555 = vmatprep.subr.mxu0 0.0
    %556 = vmatpush1.msra.mxu0 0.0
    %557 = vmatprep.subr.mxu0 0.0
    %558 = vmatpush1.msra.mxu0 0.0
    %559 = vmatprep.subr.mxu0 0.0
    %560 = vmatpush1.msra.mxu0 0.0
    %561 = vmatprep.subr.mxu0 0.0
    %562 = vmatpush1.msra.mxu0 0.0
    %563 = vmatprep.subr.mxu0 0.0
    %564 = vmatpush1.msra.mxu0 0.0
    %565 = vmatprep.subr.mxu0 0.0
    %566 = vmatpush1.msra.mxu0 0.0
    %567 = vmatprep.subr.mxu0 0.0
    %568 = vmatpush1.msra.mxu0 0.0
    %569 = vmatprep.subr.mxu0 %v275
    %570 = vmatpush1.msra.mxu0 %v274
    %571 = vmatprep.subr.mxu0 0.0
    %572 = vmatpush2.msra.mxu0 0.0
    %573 = vmatprep.subr.mxu0 0.0
    %574 = vmatpush2.msra.mxu0 0.0
    %575 = vmatprep.subr.mxu0 0.0
    %576 = vmatpush2.msra.mxu0 0.0
    %577 = vmatprep.subr.mxu0 0.0
    %578 = vmatpush2.msra.mxu0 0.0
    %579 = vmatprep.subr.mxu0 0.0
    %580 = vmatpush2.msra.mxu0 0.0
    %581 = vmatprep.subr.mxu0 0.0
    %582 = vmatpush2.msra.mxu0 0.0
    %583 = vmatprep.subr.mxu0 0.0
    %584 = vmatpush2.msra.mxu0 0.0
    %585 = vmatprep.subr.mxu0 0.0
    %586 = vmatpush2.msra.mxu0 0.0
    %587 = vmatprep.subr.mxu0 0.0
    %588 = vmatpush2.msra.mxu0 0.0
    %589 = vmatprep.subr.mxu0 0.0
    %590 = vmatpush2.msra.mxu0 0.0
    %591 = vmatprep.subr.mxu0 0.0
    %592 = vmatpush2.msra.mxu0 0.0
    %593 = vmatprep.subr.mxu0 0.0
    %594 = vmatpush2.msra.mxu0 0.0
    %595 = vmatprep.subr.mxu0 0.0
    %596 = vmatpush2.msra.mxu0 0.0
    %597 = vmatprep.subr.mxu0 0.0
    %598 = vmatpush2.msra.mxu0 0.0
    %599 = vmatprep.subr.mxu0 0.0
    %600 = vmatpush2.msra.mxu0 0.0
    %601 = vmatprep.subr.mxu0 0.0
    %602 = vmatpush2.msra.mxu0 0.0
    %603 = vmatprep.mubr.f32.mxu0 0.0
    %604 = vmatmul.mubr.f32.gmra.mxu0 %v324
    %v605 = vpop.f32.mrf.mxu0
    %v606 = vadd.f32 %v309, %v605
    %v607 = vpop.f32.mrf.mxu0
    %v608 = vadd.f32 %v313, %v607
    %609 = vdwg.mxu0
    %vm610 = vcmask 261120
    %v612 = vsel %vm610, 0.0, 0
    %614 = vmatprep.subr.mxu0 0.0
    %615 = vmatpush1.msra.mxu0 0.0
    %616 = vmatprep.subr.mxu0 0.0
    %617 = vmatpush1.msra.mxu0 0.0
    %618 = vmatprep.subr.mxu0 0.0
    %619 = vmatpush1.msra.mxu0 0.0
    %620 = vmatprep.subr.mxu0 0.0
    %621 = vmatpush1.msra.mxu0 0.0
    %622 = vmatprep.subr.mxu0 0.0
    %623 = vmatpush1.msra.mxu0 0.0
    %624 = vmatprep.subr.mxu0 0.0
    %625 = vmatpush1.msra.mxu0 0.0
    %626 = vmatprep.subr.mxu0 0.0
    %627 = vmatpush1.msra.mxu0 0.0
    %628 = vmatprep.subr.mxu0 0.0
    %629 = vmatpush1.msra.mxu0 0.0
    %630 = vmatprep.subr.mxu0 0.0
    %631 = vmatpush1.msra.mxu0 0.0
    %632 = vmatprep.subr.mxu0 0.0
    %633 = vmatpush1.msra.mxu0 0.0
    %634 = vmatprep.subr.mxu0 0.0
    %635 = vmatpush1.msra.mxu0 0.0
    %636 = vmatprep.subr.mxu0 0.0
    %637 = vmatpush1.msra.mxu0 0.0
    %638 = vmatprep.subr.mxu0 0.0
    %639 = vmatpush1.msra.mxu0 %v280
    %640 = vmatprep.subr.mxu0 0.0
    %641 = vmatpush1.msra.mxu0 %v279
    %642 = vmatprep.subr.mxu0 0.0
    %643 = vmatpush1.msra.mxu0 %v278
    %644 = vmatprep.subr.mxu0 0.0
    %645 = vmatpush1.msra.mxu0 %v277
    %646 = vmatprep.subr.mxu0 0.0
    %647 = vmatpush2.msra.mxu0 0.0
    %648 = vmatprep.subr.mxu0 0.0
    %649 = vmatpush2.msra.mxu0 0.0
    %650 = vmatprep.subr.mxu0 0.0
    %651 = vmatpush2.msra.mxu0 0.0
    %652 = vmatprep.subr.mxu0 0.0
    %653 = vmatpush2.msra.mxu0 0.0
    %654 = vmatprep.subr.mxu0 0.0
    %655 = vmatpush2.msra.mxu0 0.0
    %656 = vmatprep.subr.mxu0 0.0
    %657 = vmatpush2.msra.mxu0 0.0
    %658 = vmatprep.subr.mxu0 0.0
    %659 = vmatpush2.msra.mxu0 0.0
    %660 = vmatprep.subr.mxu0 0.0
    %661 = vmatpush2.msra.mxu0 0.0
    %662 = vmatprep.subr.mxu0 0.0
    %663 = vmatpush2.msra.mxu0 0.0
    %664 = vmatprep.subr.mxu0 0.0
    %665 = vmatpush2.msra.mxu0 0.0
    %666 = vmatprep.subr.mxu0 0.0
    %667 = vmatpush2.msra.mxu0 0.0
    %668 = vmatprep.subr.mxu0 0.0
    %669 = vmatpush2.msra.mxu0 0.0
    %670 = vmatprep.subr.mxu0 0.0
    %671 = vmatpush2.msra.mxu0 0.0
    %672 = vmatprep.subr.mxu0 0.0
    %673 = vmatpush2.msra.mxu0 0.0
    %674 = vmatprep.subr.mxu0 0.0
    %675 = vmatpush2.msra.mxu0 0.0
    %676 = vmatprep.subr.mxu0 0.0
    %677 = vmatpush2.msra.mxu0 0.0
    %678 = vmatprep.mubr.f32.mxu0 0.0
    %679 = vmatmul.mubr.f32.gmra.mxu0 %v612
    %v680 = vpop.f32.mrf.mxu0
    %v681 = vadd.f32 0.0, %v680
    %v682 = vpop.f32.mrf.mxu0
    %683 = vdwg.mxu0
    %v684 = vadd.f32 %v393, %v681
    %v685 = vxor.u32 %v684, 2147483648
    %v686 = vmul.f32 %v685, 1.442695
    %v687 = vpow.pop %v686
    %v688 = vadd.f32 %v687, 1.0
    %v689 = vrcp.pop %v688
    %v690 = vmul.f32 1.0, %v689
    %v691 = vtanh.pop %v684
    %v692 = vmul.f32 %v690, 0.0
    %694 = vrot.lane.b32.xlu0 %v691, 64
    %v695 = vpop.permute.xlu0 %694
    %v697 = vmul.f32 %v690, %v695
    %699 = vrot.lane.b32.xlu0 %v697, 32
    %v700 = vpop.permute.xlu0 %699
    %v702 = vadd.f32 %v692, %v700
    %v703 = vtanh.pop %v702
    %705 = vrot.lane.b32.xlu0 %v703, 64
    %v706 = vpop.permute.xlu0 %705
    %v708 = vmul.f32 %v690, %v706
    %710 = vrot.lane.b32.xlu0 %v708, 32
    %v711 = vpop.permute.xlu0 %710
    %v712 = vsel %vm610, %v711, 0
    %714 = vmatprep.subr.mxu0 0.0
    %715 = vmatpush1.msra.mxu0 0.0
    %716 = vmatprep.subr.mxu0 0.0
    %717 = vmatpush1.msra.mxu0 0.0
    %718 = vmatprep.subr.mxu0 0.0
    %719 = vmatpush1.msra.mxu0 0.0
    %720 = vmatprep.subr.mxu0 0.0
    %721 = vmatpush1.msra.mxu0 0.0
    %722 = vmatprep.subr.mxu0 0.0
    %723 = vmatpush1.msra.mxu0 0.0
    %724 = vmatprep.subr.mxu0 0.0
    %725 = vmatpush1.msra.mxu0 0.0
    %726 = vmatprep.subr.mxu0 0.0
    %727 = vmatpush1.msra.mxu0 0.0
    %728 = vmatprep.subr.mxu0 0.0
    %729 = vmatpush1.msra.mxu0 0.0
    %730 = vmatprep.subr.mxu0 0.0
    %731 = vmatpush1.msra.mxu0 0.0
    %732 = vmatprep.subr.mxu0 0.0
    %733 = vmatpush1.msra.mxu0 0.0
    %734 = vmatprep.subr.mxu0 0.0
    %735 = vmatpush1.msra.mxu0 0.0
    %736 = vmatprep.subr.mxu0 0.0
    %737 = vmatpush1.msra.mxu0 0.0
    %738 = vmatprep.subr.mxu0 0.0
    %739 = vmatpush1.msra.mxu0 %v280
    %740 = vmatprep.subr.mxu0 0.0
    %741 = vmatpush1.msra.mxu0 %v279
    %742 = vmatprep.subr.mxu0 0.0
    %743 = vmatpush1.msra.mxu0 %v278
    %744 = vmatprep.subr.mxu0 0.0
    %745 = vmatpush1.msra.mxu0 %v277
    %746 = vmatprep.subr.mxu0 0.0
    %747 = vmatpush2.msra.mxu0 0.0
    %748 = vmatprep.subr.mxu0 0.0
    %749 = vmatpush2.msra.mxu0 0.0
    %750 = vmatprep.subr.mxu0 0.0
    %751 = vmatpush2.msra.mxu0 0.0
    %752 = vmatprep.subr.mxu0 0.0
    %753 = vmatpush2.msra.mxu0 0.0
    %754 = vmatprep.subr.mxu0 0.0
    %755 = vmatpush2.msra.mxu0 0.0
    %756 = vmatprep.subr.mxu0 0.0
    %757 = vmatpush2.msra.mxu0 0.0
    %758 = vmatprep.subr.mxu0 0.0
    %759 = vmatpush2.msra.mxu0 0.0
    %760 = vmatprep.subr.mxu0 0.0
    %761 = vmatpush2.msra.mxu0 0.0
    %762 = vmatprep.subr.mxu0 0.0
    %763 = vmatpush2.msra.mxu0 0.0
    %764 = vmatprep.subr.mxu0 0.0
    %765 = vmatpush2.msra.mxu0 0.0
    %766 = vmatprep.subr.mxu0 0.0
    %767 = vmatpush2.msra.mxu0 0.0
    %768 = vmatprep.subr.mxu0 0.0
    %769 = vmatpush2.msra.mxu0 0.0
    %770 = vmatprep.subr.mxu0 0.0
    %771 = vmatpush2.msra.mxu0 0.0
    %772 = vmatprep.subr.mxu0 0.0
    %773 = vmatpush2.msra.mxu0 0.0
    %774 = vmatprep.subr.mxu0 0.0
    %775 = vmatpush2.msra.mxu0 0.0
    %776 = vmatprep.subr.mxu0 0.0
    %777 = vmatpush2.msra.mxu0 0.0
    %778 = vmatprep.mubr.f32.mxu0 0.0
    %779 = vmatmul.mubr.f32.gmra.mxu0 %v712
    %v780 = vpop.f32.mrf.mxu0
    %v781 = vadd.f32 0.0, %v780
    %v782 = vpop.f32.mrf.mxu0
    %783 = vdwg.mxu0
    %v784 = vadd.f32 %v395, %v781
    %v785 = vxor.u32 %v784, 2147483648
    %v786 = vmul.f32 %v785, 1.442695
    %v787 = vpow.pop %v786
    %v788 = vadd.f32 %v787, 1.0
    %v789 = vrcp.pop %v788
    %v790 = vmul.f32 1.0, %v789
    %v791 = vtanh.pop %v784
    %v792 = vmul.f32 %v790, %v702
    %794 = vrot.lane.b32.xlu0 %v791, 64
    %v795 = vpop.permute.xlu0 %794
    %v797 = vmul.f32 %v790, %v795
    %799 = vrot.lane.b32.xlu0 %v797, 32
    %v800 = vpop.permute.xlu0 %799
    %v802 = vadd.f32 %v792, %v800
    %v803 = vtanh.pop %v802
    %805 = vrot.lane.b32.xlu0 %v803, 64
    %v806 = vpop.permute.xlu0 %805
    %v808 = vmul.f32 %v790, %v806
    %810 = vrot.lane.b32.xlu0 %v808, 32
    %v811 = vpop.permute.xlu0 %810
    %v812 = vsel %vm610, %v811, 0
    %814 = vmatprep.subr.mxu0 0.0
    %815 = vmatpush1.msra.mxu0 0.0
    %816 = vmatprep.subr.mxu0 0.0
    %817 = vmatpush1.msra.mxu0 0.0
    %818 = vmatprep.subr.mxu0 0.0
    %819 = vmatpush1.msra.mxu0 0.0
    %820 = vmatprep.subr.mxu0 0.0
    %821 = vmatpush1.msra.mxu0 0.0
    %822 = vmatprep.subr.mxu0 0.0
    %823 = vmatpush1.msra.mxu0 0.0
    %824 = vmatprep.subr.mxu0 0.0
    %825 = vmatpush1.msra.mxu0 0.0
    %826 = vmatprep.subr.mxu0 0.0
    %827 = vmatpush1.msra.mxu0 0.0
    %828 = vmatprep.subr.mxu0 0.0
    %829 = vmatpush1.msra.mxu0 0.0
    %830 = vmatprep.subr.mxu0 0.0
    %831 = vmatpush1.msra.mxu0 0.0
    %832 = vmatprep.subr.mxu0 0.0
    %833 = vmatpush1.msra.mxu0 0.0
    %834 = vmatprep.subr.mxu0 0.0
    %835 = vmatpush1.msra.mxu0 0.0
    %836 = vmatprep.subr.mxu0 0.0
    %837 = vmatpush1.msra.mxu0 0.0
    %838 = vmatprep.subr.mxu0 0.0
    %839 = vmatpush1.msra.mxu0 %v280
    %840 = vmatprep.subr.mxu0 0.0
    %841 = vmatpush1.msra.mxu0 %v279
    %842 = vmatprep.subr.mxu0 0.0
    %843 = vmatpush1.msra.mxu0 %v278
    %844 = vmatprep.subr.mxu0 0.0
    %845 = vmatpush1.msra.mxu0 %v277
    %846 = vmatprep.subr.mxu0 0.0
    %847 = vmatpush2.msra.mxu0 0.0
    %848 = vmatprep.subr.mxu0 0.0
    %849 = vmatpush2.msra.mxu0 0.0
    %850 = vmatprep.subr.mxu0 0.0
    %851 = vmatpush2.msra.mxu0 0.0
    %852 = vmatprep.subr.mxu0 0.0
    %853 = vmatpush2.msra.mxu0 0.0
    %854 = vmatprep.subr.mxu0 0.0
    %855 = vmatpush2.msra.mxu0 0.0
    %856 = vmatprep.subr.mxu0 0.0
    %857 = vmatpush2.msra.mxu0 0.0
    %858 = vmatprep.subr.mxu0 0.0
    %859 = vmatpush2.msra.mxu0 0.0
    %860 = vmatprep.subr.mxu0 0.0
    %861 = vmatpush2.msra.mxu0 0.0
    %862 = vmatprep.subr.mxu0 0.0
    %863 = vmatpush2.msra.mxu0 0.0
    %864 = vmatprep.subr.mxu0 0.0
    %865 = vmatpush2.msra.mxu0 0.0
    %866 = vmatprep.subr.mxu0 0.0
    %867 = vmatpush2.msra.mxu0 0.0
    %868 = vmatprep.subr.mxu0 0.0
    %869 = vmatpush2.msra.mxu0 0.0
    %870 = vmatprep.subr.mxu0 0.0
    %871 = vmatpush2.msra.mxu0 0.0
    %872 = vmatprep.subr.mxu0 0.0
    %873 = vmatpush2.msra.mxu0 0.0
    %874 = vmatprep.subr.mxu0 0.0
    %875 = vmatpush2.msra.mxu0 0.0
    %876 = vmatprep.subr.mxu0 0.0
    %877 = vmatpush2.msra.mxu0 0.0
    %878 = vmatprep.mubr.f32.mxu0 0.0
    %879 = vmatmul.mubr.f32.gmra.mxu0 %v812
    %v880 = vpop.f32.mrf.mxu0
    %v881 = vadd.f32 0.0, %v880
    %v882 = vpop.f32.mrf.mxu0
    %883 = vdwg.mxu0
    %v884 = vadd.f32 %v464, %v881
    %v885 = vxor.u32 %v884, 2147483648
    %v886 = vmul.f32 %v885, 1.442695
    %v887 = vpow.pop %v886
    %v888 = vadd.f32 %v887, 1.0
    %v889 = vrcp.pop %v888
    %v890 = vmul.f32 1.0, %v889
    %v891 = vtanh.pop %v884
    %v892 = vmul.f32 %v890, %v802
    %894 = vrot.lane.b32.xlu0 %v891, 64
    %v895 = vpop.permute.xlu0 %894
    %v897 = vmul.f32 %v890, %v895
    %899 = vrot.lane.b32.xlu0 %v897, 32
    %v900 = vpop.permute.xlu0 %899
    %v902 = vadd.f32 %v892, %v900
    %v903 = vtanh.pop %v902
    %905 = vrot.lane.b32.xlu0 %v903, 64
    %v906 = vpop.permute.xlu0 %905
    %v908 = vmul.f32 %v890, %v906
    %910 = vrot.lane.b32.xlu0 %v908, 32
    %v911 = vpop.permute.xlu0 %910
    %v912 = vsel %vm610, %v911, 0
    %914 = vmatprep.subr.mxu0 0.0
    %915 = vmatpush1.msra.mxu0 0.0
    %916 = vmatprep.subr.mxu0 0.0
    %917 = vmatpush1.msra.mxu0 0.0
    %918 = vmatprep.subr.mxu0 0.0
    %919 = vmatpush1.msra.mxu0 0.0
    %920 = vmatprep.subr.mxu0 0.0
    %921 = vmatpush1.msra.mxu0 0.0
    %922 = vmatprep.subr.mxu0 0.0
    %923 = vmatpush1.msra.mxu0 0.0
    %924 = vmatprep.subr.mxu0 0.0
    %925 = vmatpush1.msra.mxu0 0.0
    %926 = vmatprep.subr.mxu0 0.0
    %927 = vmatpush1.msra.mxu0 0.0
    %928 = vmatprep.subr.mxu0 0.0
    %929 = vmatpush1.msra.mxu0 0.0
    %930 = vmatprep.subr.mxu0 0.0
    %931 = vmatpush1.msra.mxu0 0.0
    %932 = vmatprep.subr.mxu0 0.0
    %933 = vmatpush1.msra.mxu0 0.0
    %934 = vmatprep.subr.mxu0 0.0
    %935 = vmatpush1.msra.mxu0 0.0
    %936 = vmatprep.subr.mxu0 0.0
    %937 = vmatpush1.msra.mxu0 0.0
    %938 = vmatprep.subr.mxu0 0.0
    %939 = vmatpush1.msra.mxu0 %v280
    %940 = vmatprep.subr.mxu0 0.0
    %941 = vmatpush1.msra.mxu0 %v279
    %942 = vmatprep.subr.mxu0 0.0
    %943 = vmatpush1.msra.mxu0 %v278
    %944 = vmatprep.subr.mxu0 0.0
    %945 = vmatpush1.msra.mxu0 %v277
    %946 = vmatprep.subr.mxu0 0.0
    %947 = vmatpush2.msra.mxu0 0.0
    %948 = vmatprep.subr.mxu0 0.0
    %949 = vmatpush2.msra.mxu0 0.0
    %950 = vmatprep.subr.mxu0 0.0
    %951 = vmatpush2.msra.mxu0 0.0
    %952 = vmatprep.subr.mxu0 0.0
    %953 = vmatpush2.msra.mxu0 0.0
    %954 = vmatprep.subr.mxu0 0.0
    %955 = vmatpush2.msra.mxu0 0.0
    %956 = vmatprep.subr.mxu0 0.0
    %957 = vmatpush2.msra.mxu0 0.0
    %958 = vmatprep.subr.mxu0 0.0
    %959 = vmatpush2.msra.mxu0 0.0
    %960 = vmatprep.subr.mxu0 0.0
    %961 = vmatpush2.msra.mxu0 0.0
    %962 = vmatprep.subr.mxu0 0.0
    %963 = vmatpush2.msra.mxu0 0.0
    %964 = vmatprep.subr.mxu0 0.0
    %965 = vmatpush2.msra.mxu0 0.0
    %966 = vmatprep.subr.mxu0 0.0
    %967 = vmatpush2.msra.mxu0 0.0
    %968 = vmatprep.subr.mxu0 0.0
    %969 = vmatpush2.msra.mxu0 0.0
    %970 = vmatprep.subr.mxu0 0.0
    %971 = vmatpush2.msra.mxu0 0.0
    %972 = vmatprep.subr.mxu0 0.0
    %973 = vmatpush2.msra.mxu0 0.0
    %974 = vmatprep.subr.mxu0 0.0
    %975 = vmatpush2.msra.mxu0 0.0
    %976 = vmatprep.subr.mxu0 0.0
    %977 = vmatpush2.msra.mxu0 0.0
    %978 = vmatprep.mubr.f32.mxu0 0.0
    %979 = vmatmul.mubr.f32.gmra.mxu0 %v912
    %v980 = vpop.f32.mrf.mxu0
    %v981 = vadd.f32 0.0, %v980
    %v982 = vpop.f32.mrf.mxu0
    %983 = vdwg.mxu0
    %v984 = vadd.f32 %v466, %v981
    %v985 = vxor.u32 %v984, 2147483648
    %v986 = vmul.f32 %v985, 1.442695
    %v987 = vpow.pop %v986
    %v988 = vadd.f32 %v987, 1.0
    %v989 = vrcp.pop %v988
    %v990 = vmul.f32 1.0, %v989
    %v991 = vtanh.pop %v984
    %v992 = vmul.f32 %v990, %v902
    %994 = vrot.lane.b32.xlu0 %v991, 64
    %v995 = vpop.permute.xlu0 %994
    %v997 = vmul.f32 %v990, %v995
    %999 = vrot.lane.b32.xlu0 %v997, 32
    %v1000 = vpop.permute.xlu0 %999
    %v1002 = vadd.f32 %v992, %v1000
    %v1003 = vtanh.pop %v1002
    %1005 = vrot.lane.b32.xlu0 %v1003, 64
    %v1006 = vpop.permute.xlu0 %1005
    %v1008 = vmul.f32 %v990, %v1006
    %1010 = vrot.lane.b32.xlu0 %v1008, 32
    %v1011 = vpop.permute.xlu0 %1010
    %v1012 = vsel %vm610, %v1011, 0
    %1014 = vmatprep.subr.mxu0 0.0
    %1015 = vmatpush1.msra.mxu0 0.0
    %1016 = vmatprep.subr.mxu0 0.0
    %1017 = vmatpush1.msra.mxu0 0.0
    %1018 = vmatprep.subr.mxu0 0.0
    %1019 = vmatpush1.msra.mxu0 0.0
    %1020 = vmatprep.subr.mxu0 0.0
    %1021 = vmatpush1.msra.mxu0 0.0
    %1022 = vmatprep.subr.mxu0 0.0
    %1023 = vmatpush1.msra.mxu0 0.0
    %1024 = vmatprep.subr.mxu0 0.0
    %1025 = vmatpush1.msra.mxu0 0.0
    %1026 = vmatprep.subr.mxu0 0.0
    %1027 = vmatpush1.msra.mxu0 0.0
    %1028 = vmatprep.subr.mxu0 0.0
    %1029 = vmatpush1.msra.mxu0 0.0
    %1030 = vmatprep.subr.mxu0 0.0
    %1031 = vmatpush1.msra.mxu0 0.0
    %1032 = vmatprep.subr.mxu0 0.0
    %1033 = vmatpush1.msra.mxu0 0.0
    %1034 = vmatprep.subr.mxu0 0.0
    %1035 = vmatpush1.msra.mxu0 0.0
    %1036 = vmatprep.subr.mxu0 0.0
    %1037 = vmatpush1.msra.mxu0 0.0
    %1038 = vmatprep.subr.mxu0 0.0
    %1039 = vmatpush1.msra.mxu0 %v280
    %1040 = vmatprep.subr.mxu0 0.0
    %1041 = vmatpush1.msra.mxu0 %v279
    %1042 = vmatprep.subr.mxu0 0.0
    %1043 = vmatpush1.msra.mxu0 %v278
    %1044 = vmatprep.subr.mxu0 0.0
    %1045 = vmatpush1.msra.mxu0 %v277
    %1046 = vmatprep.subr.mxu0 0.0
    %1047 = vmatpush2.msra.mxu0 0.0
    %1048 = vmatprep.subr.mxu0 0.0
    %1049 = vmatpush2.msra.mxu0 0.0
    %1050 = vmatprep.subr.mxu0 0.0
    %1051 = vmatpush2.msra.mxu0 0.0
    %1052 = vmatprep.subr.mxu0 0.0
    %1053 = vmatpush2.msra.mxu0 0.0
    %1054 = vmatprep.subr.mxu0 0.0
    %1055 = vmatpush2.msra.mxu0 0.0
    %1056 = vmatprep.subr.mxu0 0.0
    %1057 = vmatpush2.msra.mxu0 0.0
    %1058 = vmatprep.subr.mxu0 0.0
    %1059 = vmatpush2.msra.mxu0 0.0
    %1060 = vmatprep.subr.mxu0 0.0
    %1061 = vmatpush2.msra.mxu0 0.0
    %1062 = vmatprep.subr.mxu0 0.0
    %1063 = vmatpush2.msra.mxu0 0.0
    %1064 = vmatprep.subr.mxu0 0.0
    %1065 = vmatpush2.msra.mxu0 0.0
    %1066 = vmatprep.subr.mxu0 0.0
    %1067 = vmatpush2.msra.mxu0 0.0
    %1068 = vmatprep.subr.mxu0 0.0
    %1069 = vmatpush2.msra.mxu0 0.0
    %1070 = vmatprep.subr.mxu0 0.0
    %1071 = vmatpush2.msra.mxu0 0.0
    %1072 = vmatprep.subr.mxu0 0.0
    %1073 = vmatpush2.msra.mxu0 0.0
    %1074 = vmatprep.subr.mxu0 0.0
    %1075 = vmatpush2.msra.mxu0 0.0
    %1076 = vmatprep.subr.mxu0 0.0
    %1077 = vmatpush2.msra.mxu0 0.0
    %1078 = vmatprep.mubr.f32.mxu0 0.0
    %1079 = vmatmul.mubr.f32.gmra.mxu0 %v1012
    %v1080 = vpop.f32.mrf.mxu0
    %v1081 = vadd.f32 0.0, %v1080
    %v1082 = vpop.f32.mrf.mxu0
    %1083 = vdwg.mxu0
    %v1084 = vadd.f32 %v535, %v1081
    %v1085 = vxor.u32 %v1084, 2147483648
    %v1086 = vmul.f32 %v1085, 1.442695
    %v1087 = vpow.pop %v1086
    %v1088 = vadd.f32 %v1087, 1.0
    %v1089 = vrcp.pop %v1088
    %v1090 = vmul.f32 1.0, %v1089
    %v1091 = vtanh.pop %v1084
    %v1092 = vmul.f32 %v1090, %v1002
    %1094 = vrot.lane.b32.xlu0 %v1091, 64
    %v1095 = vpop.permute.xlu0 %1094
    %v1097 = vmul.f32 %v1090, %v1095
    %1099 = vrot.lane.b32.xlu0 %v1097, 32
    %v1100 = vpop.permute.xlu0 %1099
    %v1102 = vadd.f32 %v1092, %v1100
    %v1103 = vtanh.pop %v1102
    %1105 = vrot.lane.b32.xlu0 %v1103, 64
    %v1106 = vpop.permute.xlu0 %1105
    %v1108 = vmul.f32 %v1090, %v1106
    %1110 = vrot.lane.b32.xlu0 %v1108, 32
    %v1111 = vpop.permute.xlu0 %1110
    %v1112 = vsel %vm610, %v1111, 0
    %1114 = vmatprep.subr.mxu0 0.0
    %1115 = vmatpush1.msra.mxu0 0.0
    %1116 = vmatprep.subr.mxu0 0.0
    %1117 = vmatpush1.msra.mxu0 0.0
    %1118 = vmatprep.subr.mxu0 0.0
    %1119 = vmatpush1.msra.mxu0 0.0
    %1120 = vmatprep.subr.mxu0 0.0
    %1121 = vmatpush1.msra.mxu0 0.0
    %1122 = vmatprep.subr.mxu0 0.0
    %1123 = vmatpush1.msra.mxu0 0.0
    %1124 = vmatprep.subr.mxu0 0.0
    %1125 = vmatpush1.msra.mxu0 0.0
    %1126 = vmatprep.subr.mxu0 0.0
    %1127 = vmatpush1.msra.mxu0 0.0
    %1128 = vmatprep.subr.mxu0 0.0
    %1129 = vmatpush1.msra.mxu0 0.0
    %1130 = vmatprep.subr.mxu0 0.0
    %1131 = vmatpush1.msra.mxu0 0.0
    %1132 = vmatprep.subr.mxu0 0.0
    %1133 = vmatpush1.msra.mxu0 0.0
    %1134 = vmatprep.subr.mxu0 0.0
    %1135 = vmatpush1.msra.mxu0 0.0
    %1136 = vmatprep.subr.mxu0 0.0
    %1137 = vmatpush1.msra.mxu0 0.0
    %1138 = vmatprep.subr.mxu0 0.0
    %1139 = vmatpush1.msra.mxu0 %v280
    %1140 = vmatprep.subr.mxu0 0.0
    %1141 = vmatpush1.msra.mxu0 %v279
    %1142 = vmatprep.subr.mxu0 0.0
    %1143 = vmatpush1.msra.mxu0 %v278
    %1144 = vmatprep.subr.mxu0 0.0
    %1145 = vmatpush1.msra.mxu0 %v277
    %1146 = vmatprep.subr.mxu0 0.0
    %1147 = vmatpush2.msra.mxu0 0.0
    %1148 = vmatprep.subr.mxu0 0.0
    %1149 = vmatpush2.msra.mxu0 0.0
    %1150 = vmatprep.subr.mxu0 0.0
    %1151 = vmatpush2.msra.mxu0 0.0
    %1152 = vmatprep.subr.mxu0 0.0
    %1153 = vmatpush2.msra.mxu0 0.0
    %1154 = vmatprep.subr.mxu0 0.0
    %1155 = vmatpush2.msra.mxu0 0.0
    %1156 = vmatprep.subr.mxu0 0.0
    %1157 = vmatpush2.msra.mxu0 0.0
    %1158 = vmatprep.subr.mxu0 0.0
    %1159 = vmatpush2.msra.mxu0 0.0
    %1160 = vmatprep.subr.mxu0 0.0
    %1161 = vmatpush2.msra.mxu0 0.0
    %1162 = vmatprep.subr.mxu0 0.0
    %1163 = vmatpush2.msra.mxu0 0.0
    %1164 = vmatprep.subr.mxu0 0.0
    %1165 = vmatpush2.msra.mxu0 0.0
    %1166 = vmatprep.subr.mxu0 0.0
    %1167 = vmatpush2.msra.mxu0 0.0
    %1168 = vmatprep.subr.mxu0 0.0
    %1169 = vmatpush2.msra.mxu0 0.0
    %1170 = vmatprep.subr.mxu0 0.0
    %1171 = vmatpush2.msra.mxu0 0.0
    %1172 = vmatprep.subr.mxu0 0.0
    %1173 = vmatpush2.msra.mxu0 0.0
    %1174 = vmatprep.subr.mxu0 0.0
    %1175 = vmatpush2.msra.mxu0 0.0
    %1176 = vmatprep.subr.mxu0 0.0
    %1177 = vmatpush2.msra.mxu0 0.0
    %1178 = vmatprep.mubr.f32.mxu0 0.0
    %1179 = vmatmul.mubr.f32.gmra.mxu0 %v1112
    %v1180 = vpop.f32.mrf.mxu0
    %v1181 = vadd.f32 0.0, %v1180
    %v1182 = vpop.f32.mrf.mxu0
    %1183 = vdwg.mxu0
    %v1184 = vadd.f32 %v537, %v1181
    %v1185 = vxor.u32 %v1184, 2147483648
    %v1186 = vmul.f32 %v1185, 1.442695
    %v1187 = vpow.pop %v1186
    %v1188 = vadd.f32 %v1187, 1.0
    %v1189 = vrcp.pop %v1188
    %v1190 = vmul.f32 1.0, %v1189
    %v1191 = vtanh.pop %v1184
    %v1192 = vmul.f32 %v1190, %v1102
    %1194 = vrot.lane.b32.xlu0 %v1191, 64
    %v1195 = vpop.permute.xlu0 %1194
    %v1197 = vmul.f32 %v1190, %v1195
    %1199 = vrot.lane.b32.xlu0 %v1197, 32
    %v1200 = vpop.permute.xlu0 %1199
    %v1202 = vadd.f32 %v1192, %v1200
    %v1203 = vtanh.pop %v1202
    %1205 = vrot.lane.b32.xlu0 %v1203, 64
    %v1206 = vpop.permute.xlu0 %1205
    %v1208 = vmul.f32 %v1190, %v1206
    %1210 = vrot.lane.b32.xlu0 %v1208, 32
    %v1211 = vpop.permute.xlu0 %1210
    %v1212 = vsel %vm610, %v1211, 0
    %1214 = vmatprep.subr.mxu0 0.0
    %1215 = vmatpush1.msra.mxu0 0.0
    %1216 = vmatprep.subr.mxu0 0.0
    %1217 = vmatpush1.msra.mxu0 0.0
    %1218 = vmatprep.subr.mxu0 0.0
    %1219 = vmatpush1.msra.mxu0 0.0
    %1220 = vmatprep.subr.mxu0 0.0
    %1221 = vmatpush1.msra.mxu0 0.0
    %1222 = vmatprep.subr.mxu0 0.0
    %1223 = vmatpush1.msra.mxu0 0.0
    %1224 = vmatprep.subr.mxu0 0.0
    %1225 = vmatpush1.msra.mxu0 0.0
    %1226 = vmatprep.subr.mxu0 0.0
    %1227 = vmatpush1.msra.mxu0 0.0
    %1228 = vmatprep.subr.mxu0 0.0
    %1229 = vmatpush1.msra.mxu0 0.0
    %1230 = vmatprep.subr.mxu0 0.0
    %1231 = vmatpush1.msra.mxu0 0.0
    %1232 = vmatprep.subr.mxu0 0.0
    %1233 = vmatpush1.msra.mxu0 0.0
    %1234 = vmatprep.subr.mxu0 0.0
    %1235 = vmatpush1.msra.mxu0 0.0
    %1236 = vmatprep.subr.mxu0 0.0
    %1237 = vmatpush1.msra.mxu0 0.0
    %1238 = vmatprep.subr.mxu0 0.0
    %1239 = vmatpush1.msra.mxu0 %v280
    %1240 = vmatprep.subr.mxu0 0.0
    %1241 = vmatpush1.msra.mxu0 %v279
    %1242 = vmatprep.subr.mxu0 0.0
    %1243 = vmatpush1.msra.mxu0 %v278
    %1244 = vmatprep.subr.mxu0 0.0
    %1245 = vmatpush1.msra.mxu0 %v277
    %1246 = vmatprep.subr.mxu0 0.0
    %1247 = vmatpush2.msra.mxu0 0.0
    %1248 = vmatprep.subr.mxu0 0.0
    %1249 = vmatpush2.msra.mxu0 0.0
    %1250 = vmatprep.subr.mxu0 0.0
    %1251 = vmatpush2.msra.mxu0 0.0
    %1252 = vmatprep.subr.mxu0 0.0
    %1253 = vmatpush2.msra.mxu0 0.0
    %1254 = vmatprep.subr.mxu0 0.0
    %1255 = vmatpush2.msra.mxu0 0.0
    %1256 = vmatprep.subr.mxu0 0.0
    %1257 = vmatpush2.msra.mxu0 0.0
    %1258 = vmatprep.subr.mxu0 0.0
    %1259 = vmatpush2.msra.mxu0 0.0
    %1260 = vmatprep.subr.mxu0 0.0
    %1261 = vmatpush2.msra.mxu0 0.0
    %1262 = vmatprep.subr.mxu0 0.0
    %1263 = vmatpush2.msra.mxu0 0.0
    %1264 = vmatprep.subr.mxu0 0.0
    %1265 = vmatpush2.msra.mxu0 0.0
    %1266 = vmatprep.subr.mxu0 0.0
    %1267 = vmatpush2.msra.mxu0 0.0
    %1268 = vmatprep.subr.mxu0 0.0
    %1269 = vmatpush2.msra.mxu0 0.0
    %1270 = vmatprep.subr.mxu0 0.0
    %1271 = vmatpush2.msra.mxu0 0.0
    %1272 = vmatprep.subr.mxu0 0.0
    %1273 = vmatpush2.msra.mxu0 0.0
    %1274 = vmatprep.subr.mxu0 0.0
    %1275 = vmatpush2.msra.mxu0 0.0
    %1276 = vmatprep.subr.mxu0 0.0
    %1277 = vmatpush2.msra.mxu0 0.0
    %1278 = vmatprep.mubr.f32.mxu0 0.0
    %1279 = vmatmul.mubr.f32.gmra.mxu0 %v1212
    %v1280 = vpop.f32.mrf.mxu0
    %v1281 = vadd.f32 0.0, %v1280
    %v1282 = vpop.f32.mrf.mxu0
    %1283 = vdwg.mxu0
    %v1284 = vadd.f32 %v606, %v1281
    %v1285 = vxor.u32 %v1284, 2147483648
    %v1286 = vmul.f32 %v1285, 1.442695
    %v1287 = vpow.pop %v1286
    %v1288 = vadd.f32 %v1287, 1.0
    %v1289 = vrcp.pop %v1288
    %v1290 = vmul.f32 1.0, %v1289
    %v1291 = vtanh.pop %v1284
    %v1292 = vmul.f32 %v1290, %v1202
    %1294 = vrot.lane.b32.xlu0 %v1291, 64
    %v1295 = vpop.permute.xlu0 %1294
    %v1297 = vmul.f32 %v1290, %v1295
    %1299 = vrot.lane.b32.xlu0 %v1297, 32
    %v1300 = vpop.permute.xlu0 %1299
    %v1302 = vadd.f32 %v1292, %v1300
    %v1303 = vtanh.pop %v1302
    %1305 = vrot.lane.b32.xlu0 %v1303, 64
    %v1306 = vpop.permute.xlu0 %1305
    %v1308 = vmul.f32 %v1290, %v1306
    %1310 = vrot.lane.b32.xlu0 %v1308, 32
    %v1311 = vpop.permute.xlu0 %1310
    %v1312 = vsel %vm610, %v1311, 0
    %1314 = vmatprep.subr.mxu0 0.0
    %1315 = vmatpush1.msra.mxu0 0.0
    %1316 = vmatprep.subr.mxu0 0.0
    %1317 = vmatpush1.msra.mxu0 0.0
    %1318 = vmatprep.subr.mxu0 0.0
    %1319 = vmatpush1.msra.mxu0 0.0
    %1320 = vmatprep.subr.mxu0 0.0
    %1321 = vmatpush1.msra.mxu0 0.0
    %1322 = vmatprep.subr.mxu0 0.0
    %1323 = vmatpush1.msra.mxu0 0.0
    %1324 = vmatprep.subr.mxu0 0.0
    %1325 = vmatpush1.msra.mxu0 0.0
    %1326 = vmatprep.subr.mxu0 0.0
    %1327 = vmatpush1.msra.mxu0 0.0
    %1328 = vmatprep.subr.mxu0 0.0
    %1329 = vmatpush1.msra.mxu0 0.0
    %1330 = vmatprep.subr.mxu0 0.0
    %1331 = vmatpush1.msra.mxu0 0.0
    %1332 = vmatprep.subr.mxu0 0.0
    %1333 = vmatpush1.msra.mxu0 0.0
    %1334 = vmatprep.subr.mxu0 0.0
    %1335 = vmatpush1.msra.mxu0 0.0
    %1336 = vmatprep.subr.mxu0 0.0
    %1337 = vmatpush1.msra.mxu0 0.0
    %1338 = vmatprep.subr.mxu0 0.0
    %1339 = vmatpush1.msra.mxu0 %v280
    %1340 = vmatprep.subr.mxu0 0.0
    %1341 = vmatpush1.msra.mxu0 %v279
    %1342 = vmatprep.subr.mxu0 0.0
    %1343 = vmatpush1.msra.mxu0 %v278
    %1344 = vmatprep.subr.mxu0 0.0
    %1345 = vmatpush1.msra.mxu0 %v277
    %1346 = vmatprep.subr.mxu0 0.0
    %1347 = vmatpush2.msra.mxu0 0.0
    %1348 = vmatprep.subr.mxu0 0.0
    %1349 = vmatpush2.msra.mxu0 0.0
    %1350 = vmatprep.subr.mxu0 0.0
    %1351 = vmatpush2.msra.mxu0 0.0
    %1352 = vmatprep.subr.mxu0 0.0
    %1353 = vmatpush2.msra.mxu0 0.0
    %1354 = vmatprep.subr.mxu0 0.0
    %1355 = vmatpush2.msra.mxu0 0.0
    %1356 = vmatprep.subr.mxu0 0.0
    %1357 = vmatpush2.msra.mxu0 0.0
    %1358 = vmatprep.subr.mxu0 0.0
    %1359 = vmatpush2.msra.mxu0 0.0
    %1360 = vmatprep.subr.mxu0 0.0
    %1361 = vmatpush2.msra.mxu0 0.0
    %1362 = vmatprep.subr.mxu0 0.0
    %1363 = vmatpush2.msra.mxu0 0.0
    %1364 = vmatprep.subr.mxu0 0.0
    %1365 = vmatpush2.msra.mxu0 0.0
    %1366 = vmatprep.subr.mxu0 0.0
    %1367 = vmatpush2.msra.mxu0 0.0
    %1368 = vmatprep.subr.mxu0 0.0
    %1369 = vmatpush2.msra.mxu0 0.0
    %1370 = vmatprep.subr.mxu0 0.0
    %1371 = vmatpush2.msra.mxu0 0.0
    %1372 = vmatprep.subr.mxu0 0.0
    %1373 = vmatpush2.msra.mxu0 0.0
    %1374 = vmatprep.subr.mxu0 0.0
    %1375 = vmatpush2.msra.mxu0 0.0
    %1376 = vmatprep.subr.mxu0 0.0
    %1377 = vmatpush2.msra.mxu0 0.0
    %1378 = vmatprep.mubr.f32.mxu0 0.0
    %1379 = vmatmul.mubr.f32.gmra.mxu0 %v1312
    %v1380 = vpop.f32.mrf.mxu0
    %v1381 = vadd.f32 0.0, %v1380
    %v1382 = vpop.f32.mrf.mxu0
    %1383 = vdwg.mxu0
    %v1384 = vadd.f32 %v608, %v1381
    %v1385 = vxor.u32 %v1384, 2147483648
    %v1386 = vmul.f32 %v1385, 1.442695
    %v1387 = vpow.pop %v1386
    %v1388 = vadd.f32 %v1387, 1.0
    %v1389 = vrcp.pop %v1388
    %v1390 = vmul.f32 1.0, %v1389
    %v1391 = vtanh.pop %v1384
    %v1392 = vmul.f32 %v1390, %v1302
    %1394 = vrot.lane.b32.xlu0 %v1391, 64
    %v1395 = vpop.permute.xlu0 %1394
    %v1397 = vmul.f32 %v1390, %v1395
    %1399 = vrot.lane.b32.xlu0 %v1397, 32
    %v1400 = vpop.permute.xlu0 %1399
    %v1402 = vadd.f32 %v1392, %v1400
    %v1403 = vtanh.pop %v1402
    %1405 = vrot.lane.b32.xlu0 %v1403, 64
    %v1406 = vpop.permute.xlu0 %1405
    %v1408 = vmul.f32 %v1390, %v1406
    %v1409 = vld [vmem:[%s6] sm:$0xff]
    %v1410 = vld [vmem:[%s6 + $0x8] sm:$0xff]
    %v1411 = vld [vmem:[%s6 + $0x10] sm:$0xff]
    %v1412 = vld [vmem:[%s6 + $0x18] sm:$0xff]
    %v1413 = vld [vmem:[%s6 + $0x20] sm:$0xff]
    %v1414 = vld [vmem:[%s6 + $0x28] sm:$0xff]
    %v1415 = vld [vmem:[%s6 + $0x30] sm:$0xff]
    %v1416 = vld [vmem:[%s6 + $0x38] sm:$0xff]
    %v1417 = vld [vmem:[%s7] sm:$0xff]
    %v1418 = vld [vmem:[%s8] sm:$0xff]
    %v1419 = vld [vmem:[%s8 + $0x8] sm:$0xff]
    %v1420 = vld [vmem:[%s8 + $0x10] sm:$0xff]
    %v1421 = vld [vmem:[%s8 + $0x18] sm:$0xff]
    %v1423 = vlaneseq
    %v1424 = vshrl.u32 %v1423, 7
    %v1425 = vsub.s32 0, %v1424
    %v1426 = vrot.slane %v1417, %v1425
    %v1427 = vlaneseq
    %v1428 = vshrl.u32 %v1427, 7
    %v1429 = vsub.s32 1, %v1428
    %v1430 = vrot.slane %v1417, %v1429
    %v1431 = vlaneseq
    %v1432 = vshrl.u32 %v1431, 7
    %v1433 = vsub.s32 2, %v1432
    %v1434 = vrot.slane %v1417, %v1433
    %v1435 = vlaneseq
    %v1436 = vshrl.u32 %v1435, 7
    %v1437 = vsub.s32 3, %v1436
    %v1438 = vrot.slane %v1417, %v1437
    %v1439 = vlaneseq
    %v1440 = vshrl.u32 %v1439, 7
    %v1441 = vsub.s32 4, %v1440
    %v1442 = vrot.slane %v1417, %v1441
    %v1443 = vlaneseq
    %v1444 = vshrl.u32 %v1443, 7
    %v1445 = vsub.s32 5, %v1444
    %v1446 = vrot.slane %v1417, %v1445
    %v1447 = vlaneseq
    %v1448 = vshrl.u32 %v1447, 7
    %v1449 = vsub.s32 6, %v1448
    %v1450 = vrot.slane %v1417, %v1449
    %v1451 = vlaneseq
    %v1452 = vshrl.u32 %v1451, 7
    %v1453 = vsub.s32 7, %v1452
    %v1454 = vrot.slane %v1417, %v1453
    %1463 = vmatprep.subr.mxu0 0.0
    %1464 = vmatpush1.msra.mxu0 0.0
    %1465 = vmatprep.subr.mxu0 0.0
    %1466 = vmatpush1.msra.mxu0 0.0
    %1467 = vmatprep.subr.mxu0 0.0
    %1468 = vmatpush1.msra.mxu0 0.0
    %1469 = vmatprep.subr.mxu0 0.0
    %1470 = vmatpush1.msra.mxu0 0.0
    %1471 = vmatprep.subr.mxu0 0.0
    %1472 = vmatpush1.msra.mxu0 0.0
    %1473 = vmatprep.subr.mxu0 0.0
    %1474 = vmatpush1.msra.mxu0 0.0
    %1475 = vmatprep.subr.mxu0 0.0
    %1476 = vmatpush1.msra.mxu0 0.0
    %1477 = vmatprep.subr.mxu0 0.0
    %1478 = vmatpush1.msra.mxu0 0.0
    %1479 = vmatprep.subr.mxu0 0.0
    %1480 = vmatpush1.msra.mxu0 0.0
    %1481 = vmatprep.subr.mxu0 0.0
    %1482 = vmatpush1.msra.mxu0 0.0
    %1483 = vmatprep.subr.mxu0 0.0
    %1484 = vmatpush1.msra.mxu0 0.0
    %1485 = vmatprep.subr.mxu0 0.0
    %1486 = vmatpush1.msra.mxu0 0.0
    %1487 = vmatprep.subr.mxu0 0.0
    %1488 = vmatpush1.msra.mxu0 0.0
    %1489 = vmatprep.subr.mxu0 0.0
    %1490 = vmatpush1.msra.mxu0 0.0
    %1491 = vmatprep.subr.mxu0 0.0
    %1492 = vmatpush1.msra.mxu0 0.0
    %1493 = vmatprep.subr.mxu0 %v1410
    %1494 = vmatpush1.msra.mxu0 %v1409
    %1495 = vmatprep.subr.mxu0 0.0
    %1496 = vmatpush2.msra.mxu0 0.0
    %1497 = vmatprep.subr.mxu0 0.0
    %1498 = vmatpush2.msra.mxu0 0.0
    %1499 = vmatprep.subr.mxu0 0.0
    %1500 = vmatpush2.msra.mxu0 0.0
    %1501 = vmatprep.subr.mxu0 0.0
    %1502 = vmatpush2.msra.mxu0 0.0
    %1503 = vmatprep.subr.mxu0 0.0
    %1504 = vmatpush2.msra.mxu0 0.0
    %1505 = vmatprep.subr.mxu0 0.0
    %1506 = vmatpush2.msra.mxu0 0.0
    %1507 = vmatprep.subr.mxu0 0.0
    %1508 = vmatpush2.msra.mxu0 0.0
    %1509 = vmatprep.subr.mxu0 0.0
    %1510 = vmatpush2.msra.mxu0 0.0
    %1511 = vmatprep.subr.mxu0 0.0
    %1512 = vmatpush2.msra.mxu0 0.0
    %1513 = vmatprep.subr.mxu0 0.0
    %1514 = vmatpush2.msra.mxu0 0.0
    %1515 = vmatprep.subr.mxu0 0.0
    %1516 = vmatpush2.msra.mxu0 0.0
    %1517 = vmatprep.subr.mxu0 0.0
    %1518 = vmatpush2.msra.mxu0 0.0
    %1519 = vmatprep.subr.mxu0 0.0
    %1520 = vmatpush2.msra.mxu0 0.0
    %1521 = vmatprep.subr.mxu0 0.0
    %1522 = vmatpush2.msra.mxu0 0.0
    %1523 = vmatprep.subr.mxu0 0.0
    %1524 = vmatpush2.msra.mxu0 0.0
    %1525 = vmatprep.subr.mxu0 0.0
    %1526 = vmatpush2.msra.mxu0 0.0
    %1527 = vmatprep.mubr.f32.mxu0 0.0
    %1528 = vmatmul.mubr.f32.gmra.mxu0 %v324
    %v1529 = vpop.f32.mrf.mxu0
    %v1530 = vadd.f32 %v1426, %v1529
    %v1531 = vpop.f32.mrf.mxu0
    %v1532 = vadd.f32 %v1430, %v1531
    %1533 = vdwg.mxu0
    %1534 = vmatprep.subr.mxu0 0.0
    %1535 = vmatpush1.msra.mxu0 0.0
    %1536 = vmatprep.subr.mxu0 0.0
    %1537 = vmatpush1.msra.mxu0 0.0
    %1538 = vmatprep.subr.mxu0 0.0
    %1539 = vmatpush1.msra.mxu0 0.0
    %1540 = vmatprep.subr.mxu0 0.0
    %1541 = vmatpush1.msra.mxu0 0.0
    %1542 = vmatprep.subr.mxu0 0.0
    %1543 = vmatpush1.msra.mxu0 0.0
    %1544 = vmatprep.subr.mxu0 0.0
    %1545 = vmatpush1.msra.mxu0 0.0
    %1546 = vmatprep.subr.mxu0 0.0
    %1547 = vmatpush1.msra.mxu0 0.0
    %1548 = vmatprep.subr.mxu0 0.0
    %1549 = vmatpush1.msra.mxu0 0.0
    %1550 = vmatprep.subr.mxu0 0.0
    %1551 = vmatpush1.msra.mxu0 0.0
    %1552 = vmatprep.subr.mxu0 0.0
    %1553 = vmatpush1.msra.mxu0 0.0
    %1554 = vmatprep.subr.mxu0 0.0
    %1555 = vmatpush1.msra.mxu0 0.0
    %1556 = vmatprep.subr.mxu0 0.0
    %1557 = vmatpush1.msra.mxu0 0.0
    %1558 = vmatprep.subr.mxu0 0.0
    %1559 = vmatpush1.msra.mxu0 0.0
    %1560 = vmatprep.subr.mxu0 0.0
    %1561 = vmatpush1.msra.mxu0 0.0
    %1562 = vmatprep.subr.mxu0 0.0
    %1563 = vmatpush1.msra.mxu0 0.0
    %1564 = vmatprep.subr.mxu0 %v1412
    %1565 = vmatpush1.msra.mxu0 %v1411
    %1566 = vmatprep.subr.mxu0 0.0
    %1567 = vmatpush2.msra.mxu0 0.0
    %1568 = vmatprep.subr.mxu0 0.0
    %1569 = vmatpush2.msra.mxu0 0.0
    %1570 = vmatprep.subr.mxu0 0.0
    %1571 = vmatpush2.msra.mxu0 0.0
    %1572 = vmatprep.subr.mxu0 0.0
    %1573 = vmatpush2.msra.mxu0 0.0
    %1574 = vmatprep.subr.mxu0 0.0
    %1575 = vmatpush2.msra.mxu0 0.0
    %1576 = vmatprep.subr.mxu0 0.0
    %1577 = vmatpush2.msra.mxu0 0.0
    %1578 = vmatprep.subr.mxu0 0.0
    %1579 = vmatpush2.msra.mxu0 0.0
    %1580 = vmatprep.subr.mxu0 0.0
    %1581 = vmatpush2.msra.mxu0 0.0
    %1582 = vmatprep.subr.mxu0 0.0
    %1583 = vmatpush2.msra.mxu0 0.0
    %1584 = vmatprep.subr.mxu0 0.0
    %1585 = vmatpush2.msra.mxu0 0.0
    %1586 = vmatprep.subr.mxu0 0.0
    %1587 = vmatpush2.msra.mxu0 0.0
    %1588 = vmatprep.subr.mxu0 0.0
    %1589 = vmatpush2.msra.mxu0 0.0
    %1590 = vmatprep.subr.mxu0 0.0
    %1591 = vmatpush2.msra.mxu0 0.0
    %1592 = vmatprep.subr.mxu0 0.0
    %1593 = vmatpush2.msra.mxu0 0.0
    %1594 = vmatprep.subr.mxu0 0.0
    %1595 = vmatpush2.msra.mxu0 0.0
    %1596 = vmatprep.subr.mxu0 0.0
    %1597 = vmatpush2.msra.mxu0 0.0
    %1598 = vmatprep.mubr.f32.mxu0 0.0
    %1599 = vmatmul.mubr.f32.gmra.mxu0 %v324
    %v1600 = vpop.f32.mrf.mxu0
    %v1601 = vadd.f32 %v1434, %v1600
    %v1602 = vpop.f32.mrf.mxu0
    %v1603 = vadd.f32 %v1438, %v1602
    %1604 = vdwg.mxu0
    %1605 = vmatprep.subr.mxu0 0.0
    %1606 = vmatpush1.msra.mxu0 0.0
    %1607 = vmatprep.subr.mxu0 0.0
    %1608 = vmatpush1.msra.mxu0 0.0
    %1609 = vmatprep.subr.mxu0 0.0
    %1610 = vmatpush1.msra.mxu0 0.0
    %1611 = vmatprep.subr.mxu0 0.0
    %1612 = vmatpush1.msra.mxu0 0.0
    %1613 = vmatprep.subr.mxu0 0.0
    %1614 = vmatpush1.msra.mxu0 0.0
    %1615 = vmatprep.subr.mxu0 0.0
    %1616 = vmatpush1.msra.mxu0 0.0
    %1617 = vmatprep.subr.mxu0 0.0
    %1618 = vmatpush1.msra.mxu0 0.0
    %1619 = vmatprep.subr.mxu0 0.0
    %1620 = vmatpush1.msra.mxu0 0.0
    %1621 = vmatprep.subr.mxu0 0.0
    %1622 = vmatpush1.msra.mxu0 0.0
    %1623 = vmatprep.subr.mxu0 0.0
    %1624 = vmatpush1.msra.mxu0 0.0
    %1625 = vmatprep.subr.mxu0 0.0
    %1626 = vmatpush1.msra.mxu0 0.0
    %1627 = vmatprep.subr.mxu0 0.0
    %1628 = vmatpush1.msra.mxu0 0.0
    %1629 = vmatprep.subr.mxu0 0.0
    %1630 = vmatpush1.msra.mxu0 0.0
    %1631 = vmatprep.subr.mxu0 0.0
    %1632 = vmatpush1.msra.mxu0 0.0
    %1633 = vmatprep.subr.mxu0 0.0
    %1634 = vmatpush1.msra.mxu0 0.0
    %1635 = vmatprep.subr.mxu0 %v1414
    %1636 = vmatpush1.msra.mxu0 %v1413
    %1637 = vmatprep.subr.mxu0 0.0
    %1638 = vmatpush2.msra.mxu0 0.0
    %1639 = vmatprep.subr.mxu0 0.0
    %1640 = vmatpush2.msra.mxu0 0.0
    %1641 = vmatprep.subr.mxu0 0.0
    %1642 = vmatpush2.msra.mxu0 0.0
    %1643 = vmatprep.subr.mxu0 0.0
    %1644 = vmatpush2.msra.mxu0 0.0
    %1645 = vmatprep.subr.mxu0 0.0
    %1646 = vmatpush2.msra.mxu0 0.0
    %1647 = vmatprep.subr.mxu0 0.0
    %1648 = vmatpush2.msra.mxu0 0.0
    %1649 = vmatprep.subr.mxu0 0.0
    %1650 = vmatpush2.msra.mxu0 0.0
    %1651 = vmatprep.subr.mxu0 0.0
    %1652 = vmatpush2.msra.mxu0 0.0
    %1653 = vmatprep.subr.mxu0 0.0
    %1654 = vmatpush2.msra.mxu0 0.0
    %1655 = vmatprep.subr.mxu0 0.0
    %1656 = vmatpush2.msra.mxu0 0.0
    %1657 = vmatprep.subr.mxu0 0.0
    %1658 = vmatpush2.msra.mxu0 0.0
    %1659 = vmatprep.subr.mxu0 0.0
    %1660 = vmatpush2.msra.mxu0 0.0
    %1661 = vmatprep.subr.mxu0 0.0
    %1662 = vmatpush2.msra.mxu0 0.0
    %1663 = vmatprep.subr.mxu0 0.0
    %1664 = vmatpush2.msra.mxu0 0.0
    %1665 = vmatprep.subr.mxu0 0.0
    %1666 = vmatpush2.msra.mxu0 0.0
    %1667 = vmatprep.subr.mxu0 0.0
    %1668 = vmatpush2.msra.mxu0 0.0
    %1669 = vmatprep.mubr.f32.mxu0 0.0
    %1670 = vmatmul.mubr.f32.gmra.mxu0 %v324
    %v1671 = vpop.f32.mrf.mxu0
    %v1672 = vadd.f32 %v1442, %v1671
    %v1673 = vpop.f32.mrf.mxu0
    %v1674 = vadd.f32 %v1446, %v1673
    %1675 = vdwg.mxu0
    %1676 = vmatprep.subr.mxu0 0.0
    %1677 = vmatpush1.msra.mxu0 0.0
    %1678 = vmatprep.subr.mxu0 0.0
    %1679 = vmatpush1.msra.mxu0 0.0
    %1680 = vmatprep.subr.mxu0 0.0
    %1681 = vmatpush1.msra.mxu0 0.0
    %1682 = vmatprep.subr.mxu0 0.0
    %1683 = vmatpush1.msra.mxu0 0.0
    %1684 = vmatprep.subr.mxu0 0.0
    %1685 = vmatpush1.msra.mxu0 0.0
    %1686 = vmatprep.subr.mxu0 0.0
    %1687 = vmatpush1.msra.mxu0 0.0
    %1688 = vmatprep.subr.mxu0 0.0
    %1689 = vmatpush1.msra.mxu0 0.0
    %1690 = vmatprep.subr.mxu0 0.0
    %1691 = vmatpush1.msra.mxu0 0.0
    %1692 = vmatprep.subr.mxu0 0.0
    %1693 = vmatpush1.msra.mxu0 0.0
    %1694 = vmatprep.subr.mxu0 0.0
    %1695 = vmatpush1.msra.mxu0 0.0
    %1696 = vmatprep.subr.mxu0 0.0
    %1697 = vmatpush1.msra.mxu0 0.0
    %1698 = vmatprep.subr.mxu0 0.0
    %1699 = vmatpush1.msra.mxu0 0.0
    %1700 = vmatprep.subr.mxu0 0.0
    %1701 = vmatpush1.msra.mxu0 0.0
    %1702 = vmatprep.subr.mxu0 0.0
    %1703 = vmatpush1.msra.mxu0 0.0
    %1704 = vmatprep.subr.mxu0 0.0
    %1705 = vmatpush1.msra.mxu0 0.0
    %1706 = vmatprep.subr.mxu0 %v1416
    %1707 = vmatpush1.msra.mxu0 %v1415
    %1708 = vmatprep.subr.mxu0 0.0
    %1709 = vmatpush2.msra.mxu0 0.0
    %1710 = vmatprep.subr.mxu0 0.0
    %1711 = vmatpush2.msra.mxu0 0.0
    %1712 = vmatprep.subr.mxu0 0.0
    %1713 = vmatpush2.msra.mxu0 0.0
    %1714 = vmatprep.subr.mxu0 0.0
    %1715 = vmatpush2.msra.mxu0 0.0
    %1716 = vmatprep.subr.mxu0 0.0
    %1717 = vmatpush2.msra.mxu0 0.0
    %1718 = vmatprep.subr.mxu0 0.0
    %1719 = vmatpush2.msra.mxu0 0.0
    %1720 = vmatprep.subr.mxu0 0.0
    %1721 = vmatpush2.msra.mxu0 0.0
    %1722 = vmatprep.subr.mxu0 0.0
    %1723 = vmatpush2.msra.mxu0 0.0
    %1724 = vmatprep.subr.mxu0 0.0
    %1725 = vmatpush2.msra.mxu0 0.0
    %1726 = vmatprep.subr.mxu0 0.0
    %1727 = vmatpush2.msra.mxu0 0.0
    %1728 = vmatprep.subr.mxu0 0.0
    %1729 = vmatpush2.msra.mxu0 0.0
    %1730 = vmatprep.subr.mxu0 0.0
    %1731 = vmatpush2.msra.mxu0 0.0
    %1732 = vmatprep.subr.mxu0 0.0
    %1733 = vmatpush2.msra.mxu0 0.0
    %1734 = vmatprep.subr.mxu0 0.0
    %1735 = vmatpush2.msra.mxu0 0.0
    %1736 = vmatprep.subr.mxu0 0.0
    %1737 = vmatpush2.msra.mxu0 0.0
    %1738 = vmatprep.subr.mxu0 0.0
    %1739 = vmatpush2.msra.mxu0 0.0
    %1740 = vmatprep.mubr.f32.mxu0 0.0
    %1741 = vmatmul.mubr.f32.gmra.mxu0 %v324
    %v1742 = vpop.f32.mrf.mxu0
    %v1743 = vadd.f32 %v1450, %v1742
    %v1744 = vpop.f32.mrf.mxu0
    %v1745 = vadd.f32 %v1454, %v1744
    %1746 = vdwg.mxu0
    %1747 = vmatprep.subr.mxu0 0.0
    %1748 = vmatpush1.msra.mxu0 0.0
    %1749 = vmatprep.subr.mxu0 0.0
    %1750 = vmatpush1.msra.mxu0 0.0
    %1751 = vmatprep.subr.mxu0 0.0
    %1752 = vmatpush1.msra.mxu0 0.0
    %1753 = vmatprep.subr.mxu0 0.0
    %1754 = vmatpush1.msra.mxu0 0.0
    %1755 = vmatprep.subr.mxu0 0.0
    %1756 = vmatpush1.msra.mxu0 0.0
    %1757 = vmatprep.subr.mxu0 0.0
    %1758 = vmatpush1.msra.mxu0 0.0
    %1759 = vmatprep.subr.mxu0 0.0
    %1760 = vmatpush1.msra.mxu0 0.0
    %1761 = vmatprep.subr.mxu0 0.0
    %1762 = vmatpush1.msra.mxu0 0.0
    %1763 = vmatprep.subr.mxu0 0.0
    %1764 = vmatpush1.msra.mxu0 0.0
    %1765 = vmatprep.subr.mxu0 0.0
    %1766 = vmatpush1.msra.mxu0 0.0
    %1767 = vmatprep.subr.mxu0 0.0
    %1768 = vmatpush1.msra.mxu0 0.0
    %1769 = vmatprep.subr.mxu0 0.0
    %1770 = vmatpush1.msra.mxu0 0.0
    %1771 = vmatprep.subr.mxu0 0.0
    %1772 = vmatpush1.msra.mxu0 %v1421
    %1773 = vmatprep.subr.mxu0 0.0
    %1774 = vmatpush1.msra.mxu0 %v1420
    %1775 = vmatprep.subr.mxu0 0.0
    %1776 = vmatpush1.msra.mxu0 %v1419
    %1777 = vmatprep.subr.mxu0 0.0
    %1778 = vmatpush1.msra.mxu0 %v1418
    %1779 = vmatprep.subr.mxu0 0.0
    %1780 = vmatpush2.msra.mxu0 0.0
    %1781 = vmatprep.subr.mxu0 0.0
    %1782 = vmatpush2.msra.mxu0 0.0
    %1783 = vmatprep.subr.mxu0 0.0
    %1784 = vmatpush2.msra.mxu0 0.0
    %1785 = vmatprep.subr.mxu0 0.0
    %1786 = vmatpush2.msra.mxu0 0.0
    %1787 = vmatprep.subr.mxu0 0.0
    %1788 = vmatpush2.msra.mxu0 0.0
    %1789 = vmatprep.subr.mxu0 0.0
    %1790 = vmatpush2.msra.mxu0 0.0
    %1791 = vmatprep.subr.mxu0 0.0
    %1792 = vmatpush2.msra.mxu0 0.0
    %1793 = vmatprep.subr.mxu0 0.0
    %1794 = vmatpush2.msra.mxu0 0.0
    %1795 = vmatprep.subr.mxu0 0.0
    %1796 = vmatpush2.msra.mxu0 0.0
    %1797 = vmatprep.subr.mxu0 0.0
    %1798 = vmatpush2.msra.mxu0 0.0
    %1799 = vmatprep.subr.mxu0 0.0
    %1800 = vmatpush2.msra.mxu0 0.0
    %1801 = vmatprep.subr.mxu0 0.0
    %1802 = vmatpush2.msra.mxu0 0.0
    %1803 = vmatprep.subr.mxu0 0.0
    %1804 = vmatpush2.msra.mxu0 0.0
    %1805 = vmatprep.subr.mxu0 0.0
    %1806 = vmatpush2.msra.mxu0 0.0
    %1807 = vmatprep.subr.mxu0 0.0
    %1808 = vmatpush2.msra.mxu0 0.0
    %1809 = vmatprep.subr.mxu0 0.0
    %1810 = vmatpush2.msra.mxu0 0.0
    %1811 = vmatprep.mubr.f32.mxu0 0.0
    %1812 = vmatmul.mubr.f32.gmra.mxu0 %v612
    %v1813 = vpop.f32.mrf.mxu0
    %v1814 = vadd.f32 0.0, %v1813
    %v1815 = vpop.f32.mrf.mxu0
    %1816 = vdwg.mxu0
    %v1817 = vadd.f32 %v1745, %v1814
    %v1818 = vxor.u32 %v1817, 2147483648
    %v1819 = vmul.f32 %v1818, 1.442695
    %v1820 = vpow.pop %v1819
    %v1821 = vadd.f32 %v1820, 1.0
    %v1822 = vrcp.pop %v1821
    %v1823 = vmul.f32 1.0, %v1822
    %v1824 = vtanh.pop %v1817
    %v1825 = vmul.f32 %v1823, 0.0
    %1827 = vrot.lane.b32.xlu0 %v1824, 64
    %v1828 = vpop.permute.xlu0 %1827
    %v1830 = vmul.f32 %v1823, %v1828
    %1832 = vrot.lane.b32.xlu0 %v1830, 32
    %v1833 = vpop.permute.xlu0 %1832
    %v1835 = vadd.f32 %v1825, %v1833
    %v1836 = vtanh.pop %v1835
    %1838 = vrot.lane.b32.xlu0 %v1836, 64
    %v1839 = vpop.permute.xlu0 %1838
    %v1841 = vmul.f32 %v1823, %v1839
    %1843 = vrot.lane.b32.xlu0 %v1841, 32
    %v1844 = vpop.permute.xlu0 %1843
    %v1845 = vsel %vm610, %v1844, 0
    %1847 = vmatprep.subr.mxu0 0.0
    %1848 = vmatpush1.msra.mxu0 0.0
    %1849 = vmatprep.subr.mxu0 0.0
    %1850 = vmatpush1.msra.mxu0 0.0
    %1851 = vmatprep.subr.mxu0 0.0
    %1852 = vmatpush1.msra.mxu0 0.0
    %1853 = vmatprep.subr.mxu0 0.0
    %1854 = vmatpush1.msra.mxu0 0.0
    %1855 = vmatprep.subr.mxu0 0.0
    %1856 = vmatpush1.msra.mxu0 0.0
    %1857 = vmatprep.subr.mxu0 0.0
    %1858 = vmatpush1.msra.mxu0 0.0
    %1859 = vmatprep.subr.mxu0 0.0
    %1860 = vmatpush1.msra.mxu0 0.0
    %1861 = vmatprep.subr.mxu0 0.0
    %1862 = vmatpush1.msra.mxu0 0.0
    %1863 = vmatprep.subr.mxu0 0.0
    %1864 = vmatpush1.msra.mxu0 0.0
    %1865 = vmatprep.subr.mxu0 0.0
    %1866 = vmatpush1.msra.mxu0 0.0
    %1867 = vmatprep.subr.mxu0 0.0
    %1868 = vmatpush1.msra.mxu0 0.0
    %1869 = vmatprep.subr.mxu0 0.0
    %1870 = vmatpush1.msra.mxu0 0.0
    %1871 = vmatprep.subr.mxu0 0.0
    %1872 = vmatpush1.msra.mxu0 %v1421
    %1873 = vmatprep.subr.mxu0 0.0
    %1874 = vmatpush1.msra.mxu0 %v1420
    %1875 = vmatprep.subr.mxu0 0.0
    %1876 = vmatpush1.msra.mxu0 %v1419
    %1877 = vmatprep.subr.mxu0 0.0
    %1878 = vmatpush1.msra.mxu0 %v1418
    %1879 = vmatprep.subr.mxu0 0.0
    %1880 = vmatpush2.msra.mxu0 0.0
    %1881 = vmatprep.subr.mxu0 0.0
    %1882 = vmatpush2.msra.mxu0 0.0
    %1883 = vmatprep.subr.mxu0 0.0
    %1884 = vmatpush2.msra.mxu0 0.0
    %1885 = vmatprep.subr.mxu0 0.0
    %1886 = vmatpush2.msra.mxu0 0.0
    %1887 = vmatprep.subr.mxu0 0.0
    %1888 = vmatpush2.msra.mxu0 0.0
    %1889 = vmatprep.subr.mxu0 0.0
    %1890 = vmatpush2.msra.mxu0 0.0
    %1891 = vmatprep.subr.mxu0 0.0
    %1892 = vmatpush2.msra.mxu0 0.0
    %1893 = vmatprep.subr.mxu0 0.0
    %1894 = vmatpush2.msra.mxu0 0.0
    %1895 = vmatprep.subr.mxu0 0.0
    %1896 = vmatpush2.msra.mxu0 0.0
    %1897 = vmatprep.subr.mxu0 0.0
    %1898 = vmatpush2.msra.mxu0 0.0
    %1899 = vmatprep.subr.mxu0 0.0
    %1900 = vmatpush2.msra.mxu0 0.0
    %1901 = vmatprep.subr.mxu0 0.0
    %1902 = vmatpush2.msra.mxu0 0.0
    %1903 = vmatprep.subr.mxu0 0.0
    %1904 = vmatpush2.msra.mxu0 0.0
    %1905 = vmatprep.subr.mxu0 0.0
    %1906 = vmatpush2.msra.mxu0 0.0
    %1907 = vmatprep.subr.mxu0 0.0
    %1908 = vmatpush2.msra.mxu0 0.0
    %1909 = vmatprep.subr.mxu0 0.0
    %1910 = vmatpush2.msra.mxu0 0.0
    %1911 = vmatprep.mubr.f32.mxu0 0.0
    %1912 = vmatmul.mubr.f32.gmra.mxu0 %v1845
    %v1913 = vpop.f32.mrf.mxu0
    %v1914 = vadd.f32 0.0, %v1913
    %v1915 = vpop.f32.mrf.mxu0
    %1916 = vdwg.mxu0
    %v1917 = vadd.f32 %v1743, %v1914
    %v1918 = vxor.u32 %v1917, 2147483648
    %v1919 = vmul.f32 %v1918, 1.442695
    %v1920 = vpow.pop %v1919
    %v1921 = vadd.f32 %v1920, 1.0
    %v1922 = vrcp.pop %v1921
    %v1923 = vmul.f32 1.0, %v1922
    %v1924 = vtanh.pop %v1917
    %v1925 = vmul.f32 %v1923, %v1835
    %1927 = vrot.lane.b32.xlu0 %v1924, 64
    %v1928 = vpop.permute.xlu0 %1927
    %v1930 = vmul.f32 %v1923, %v1928
    %1932 = vrot.lane.b32.xlu0 %v1930, 32
    %v1933 = vpop.permute.xlu0 %1932
    %v1935 = vadd.f32 %v1925, %v1933
    %v1936 = vtanh.pop %v1935
    %1938 = vrot.lane.b32.xlu0 %v1936, 64
    %v1939 = vpop.permute.xlu0 %1938
    %v1941 = vmul.f32 %v1923, %v1939
    %1943 = vrot.lane.b32.xlu0 %v1941, 32
    %v1944 = vpop.permute.xlu0 %1943
    %v1945 = vsel %vm610, %v1944, 0
    %1947 = vmatprep.subr.mxu0 0.0
    %1948 = vmatpush1.msra.mxu0 0.0
    %1949 = vmatprep.subr.mxu0 0.0
    %1950 = vmatpush1.msra.mxu0 0.0
    %1951 = vmatprep.subr.mxu0 0.0
    %1952 = vmatpush1.msra.mxu0 0.0
    %1953 = vmatprep.subr.mxu0 0.0
    %1954 = vmatpush1.msra.mxu0 0.0
    %1955 = vmatprep.subr.mxu0 0.0
    %1956 = vmatpush1.msra.mxu0 0.0
    %1957 = vmatprep.subr.mxu0 0.0
    %1958 = vmatpush1.msra.mxu0 0.0
    %1959 = vmatprep.subr.mxu0 0.0
    %1960 = vmatpush1.msra.mxu0 0.0
    %1961 = vmatprep.subr.mxu0 0.0
    %1962 = vmatpush1.msra.mxu0 0.0
    %1963 = vmatprep.subr.mxu0 0.0
    %1964 = vmatpush1.msra.mxu0 0.0
    %1965 = vmatprep.subr.mxu0 0.0
    %1966 = vmatpush1.msra.mxu0 0.0
    %1967 = vmatprep.subr.mxu0 0.0
    %1968 = vmatpush1.msra.mxu0 0.0
    %1969 = vmatprep.subr.mxu0 0.0
    %1970 = vmatpush1.msra.mxu0 0.0
    %1971 = vmatprep.subr.mxu0 0.0
    %1972 = vmatpush1.msra.mxu0 %v1421
    %1973 = vmatprep.subr.mxu0 0.0
    %1974 = vmatpush1.msra.mxu0 %v1420
    %1975 = vmatprep.subr.mxu0 0.0
    %1976 = vmatpush1.msra.mxu0 %v1419
    %1977 = vmatprep.subr.mxu0 0.0
    %1978 = vmatpush1.msra.mxu0 %v1418
    %1979 = vmatprep.subr.mxu0 0.0
    %1980 = vmatpush2.msra.mxu0 0.0
    %1981 = vmatprep.subr.mxu0 0.0
    %1982 = vmatpush2.msra.mxu0 0.0
    %1983 = vmatprep.subr.mxu0 0.0
    %1984 = vmatpush2.msra.mxu0 0.0
    %1985 = vmatprep.subr.mxu0 0.0
    %1986 = vmatpush2.msra.mxu0 0.0
    %1987 = vmatprep.subr.mxu0 0.0
    %1988 = vmatpush2.msra.mxu0 0.0
    %1989 = vmatprep.subr.mxu0 0.0
    %1990 = vmatpush2.msra.mxu0 0.0
    %1991 = vmatprep.subr.mxu0 0.0
    %1992 = vmatpush2.msra.mxu0 0.0
    %1993 = vmatprep.subr.mxu0 0.0
    %1994 = vmatpush2.msra.mxu0 0.0
    %1995 = vmatprep.subr.mxu0 0.0
    %1996 = vmatpush2.msra.mxu0 0.0
    %1997 = vmatprep.subr.mxu0 0.0
    %1998 = vmatpush2.msra.mxu0 0.0
    %1999 = vmatprep.subr.mxu0 0.0
    %2000 = vmatpush2.msra.mxu0 0.0
    %2001 = vmatprep.subr.mxu0 0.0
    %2002 = vmatpush2.msra.mxu0 0.0
    %2003 = vmatprep.subr.mxu0 0.0
    %2004 = vmatpush2.msra.mxu0 0.0
    %2005 = vmatprep.subr.mxu0 0.0
    %2006 = vmatpush2.msra.mxu0 0.0
    %2007 = vmatprep.subr.mxu0 0.0
    %2008 = vmatpush2.msra.mxu0 0.0
    %2009 = vmatprep.subr.mxu0 0.0
    %2010 = vmatpush2.msra.mxu0 0.0
    %2011 = vmatprep.mubr.f32.mxu0 0.0
    %2012 = vmatmul.mubr.f32.gmra.mxu0 %v1945
    %v2013 = vpop.f32.mrf.mxu0
    %v2014 = vadd.f32 0.0, %v2013
    %v2015 = vpop.f32.mrf.mxu0
    %2016 = vdwg.mxu0
    %v2017 = vadd.f32 %v1674, %v2014
    %v2018 = vxor.u32 %v2017, 2147483648
    %v2019 = vmul.f32 %v2018, 1.442695
    %v2020 = vpow.pop %v2019
    %v2021 = vadd.f32 %v2020, 1.0
    %v2022 = vrcp.pop %v2021
    %v2023 = vmul.f32 1.0, %v2022
    %v2024 = vtanh.pop %v2017
    %v2025 = vmul.f32 %v2023, %v1935
    %2027 = vrot.lane.b32.xlu0 %v2024, 64
    %v2028 = vpop.permute.xlu0 %2027
    %v2030 = vmul.f32 %v2023, %v2028
    %2032 = vrot.lane.b32.xlu0 %v2030, 32
    %v2033 = vpop.permute.xlu0 %2032
    %v2035 = vadd.f32 %v2025, %v2033
    %v2036 = vtanh.pop %v2035
    %2038 = vrot.lane.b32.xlu0 %v2036, 64
    %v2039 = vpop.permute.xlu0 %2038
    %v2041 = vmul.f32 %v2023, %v2039
    %2043 = vrot.lane.b32.xlu0 %v2041, 32
    %v2044 = vpop.permute.xlu0 %2043
    %v2045 = vsel %vm610, %v2044, 0
    %2047 = vmatprep.subr.mxu0 0.0
    %2048 = vmatpush1.msra.mxu0 0.0
    %2049 = vmatprep.subr.mxu0 0.0
    %2050 = vmatpush1.msra.mxu0 0.0
    %2051 = vmatprep.subr.mxu0 0.0
    %2052 = vmatpush1.msra.mxu0 0.0
    %2053 = vmatprep.subr.mxu0 0.0
    %2054 = vmatpush1.msra.mxu0 0.0
    %2055 = vmatprep.subr.mxu0 0.0
    %2056 = vmatpush1.msra.mxu0 0.0
    %2057 = vmatprep.subr.mxu0 0.0
    %2058 = vmatpush1.msra.mxu0 0.0
    %2059 = vmatprep.subr.mxu0 0.0
    %2060 = vmatpush1.msra.mxu0 0.0
    %2061 = vmatprep.subr.mxu0 0.0
    %2062 = vmatpush1.msra.mxu0 0.0
    %2063 = vmatprep.subr.mxu0 0.0
    %2064 = vmatpush1.msra.mxu0 0.0
    %2065 = vmatprep.subr.mxu0 0.0
    %2066 = vmatpush1.msra.mxu0 0.0
    %2067 = vmatprep.subr.mxu0 0.0
    %2068 = vmatpush1.msra.mxu0 0.0
    %2069 = vmatprep.subr.mxu0 0.0
    %2070 = vmatpush1.msra.mxu0 0.0
    %2071 = vmatprep.subr.mxu0 0.0
    %2072 = vmatpush1.msra.mxu0 %v1421
    %2073 = vmatprep.subr.mxu0 0.0
    %2074 = vmatpush1.msra.mxu0 %v1420
    %2075 = vmatprep.subr.mxu0 0.0
    %2076 = vmatpush1.msra.mxu0 %v1419
    %2077 = vmatprep.subr.mxu0 0.0
    %2078 = vmatpush1.msra.mxu0 %v1418
    %2079 = vmatprep.subr.mxu0 0.0
    %2080 = vmatpush2.msra.mxu0 0.0
    %2081 = vmatprep.subr.mxu0 0.0
    %2082 = vmatpush2.msra.mxu0 0.0
    %2083 = vmatprep.subr.mxu0 0.0
    %2084 = vmatpush2.msra.mxu0 0.0
    %2085 = vmatprep.subr.mxu0 0.0
    %2086 = vmatpush2.msra.mxu0 0.0
    %2087 = vmatprep.subr.mxu0 0.0
    %2088 = vmatpush2.msra.mxu0 0.0
    %2089 = vmatprep.subr.mxu0 0.0
    %2090 = vmatpush2.msra.mxu0 0.0
    %2091 = vmatprep.subr.mxu0 0.0
    %2092 = vmatpush2.msra.mxu0 0.0
    %2093 = vmatprep.subr.mxu0 0.0
    %2094 = vmatpush2.msra.mxu0 0.0
    %2095 = vmatprep.subr.mxu0 0.0
    %2096 = vmatpush2.msra.mxu0 0.0
    %2097 = vmatprep.subr.mxu0 0.0
    %2098 = vmatpush2.msra.mxu0 0.0
    %2099 = vmatprep.subr.mxu0 0.0
    %2100 = vmatpush2.msra.mxu0 0.0
    %2101 = vmatprep.subr.mxu0 0.0
    %2102 = vmatpush2.msra.mxu0 0.0
    %2103 = vmatprep.subr.mxu0 0.0
    %2104 = vmatpush2.msra.mxu0 0.0
    %2105 = vmatprep.subr.mxu0 0.0
    %2106 = vmatpush2.msra.mxu0 0.0
    %2107 = vmatprep.subr.mxu0 0.0
    %2108 = vmatpush2.msra.mxu0 0.0
    %2109 = vmatprep.subr.mxu0 0.0
    %2110 = vmatpush2.msra.mxu0 0.0
    %2111 = vmatprep.mubr.f32.mxu0 0.0
    %2112 = vmatmul.mubr.f32.gmra.mxu0 %v2045
    %v2113 = vpop.f32.mrf.mxu0
    %v2114 = vadd.f32 0.0, %v2113
    %v2115 = vpop.f32.mrf.mxu0
    %2116 = vdwg.mxu0
    %v2117 = vadd.f32 %v1672, %v2114
    %v2118 = vxor.u32 %v2117, 2147483648
    %v2119 = vmul.f32 %v2118, 1.442695
    %v2120 = vpow.pop %v2119
    %v2121 = vadd.f32 %v2120, 1.0
    %v2122 = vrcp.pop %v2121
    %v2123 = vmul.f32 1.0, %v2122
    %v2124 = vtanh.pop %v2117
    %v2125 = vmul.f32 %v2123, %v2035
    %2127 = vrot.lane.b32.xlu0 %v2124, 64
    %v2128 = vpop.permute.xlu0 %2127
    %v2130 = vmul.f32 %v2123, %v2128
    %2132 = vrot.lane.b32.xlu0 %v2130, 32
    %v2133 = vpop.permute.xlu0 %2132
    %v2135 = vadd.f32 %v2125, %v2133
    %v2136 = vtanh.pop %v2135
    %2138 = vrot.lane.b32.xlu0 %v2136, 64
    %v2139 = vpop.permute.xlu0 %2138
    %v2141 = vmul.f32 %v2123, %v2139
    %2143 = vrot.lane.b32.xlu0 %v2141, 32
    %v2144 = vpop.permute.xlu0 %2143
    %v2145 = vsel %vm610, %v2144, 0
    %2147 = vmatprep.subr.mxu0 0.0
    %2148 = vmatpush1.msra.mxu0 0.0
    %2149 = vmatprep.subr.mxu0 0.0
    %2150 = vmatpush1.msra.mxu0 0.0
    %2151 = vmatprep.subr.mxu0 0.0
    %2152 = vmatpush1.msra.mxu0 0.0
    %2153 = vmatprep.subr.mxu0 0.0
    %2154 = vmatpush1.msra.mxu0 0.0
    %2155 = vmatprep.subr.mxu0 0.0
    %2156 = vmatpush1.msra.mxu0 0.0
    %2157 = vmatprep.subr.mxu0 0.0
    %2158 = vmatpush1.msra.mxu0 0.0
    %2159 = vmatprep.subr.mxu0 0.0
    %2160 = vmatpush1.msra.mxu0 0.0
    %2161 = vmatprep.subr.mxu0 0.0
    %2162 = vmatpush1.msra.mxu0 0.0
    %2163 = vmatprep.subr.mxu0 0.0
    %2164 = vmatpush1.msra.mxu0 0.0
    %2165 = vmatprep.subr.mxu0 0.0
    %2166 = vmatpush1.msra.mxu0 0.0
    %2167 = vmatprep.subr.mxu0 0.0
    %2168 = vmatpush1.msra.mxu0 0.0
    %2169 = vmatprep.subr.mxu0 0.0
    %2170 = vmatpush1.msra.mxu0 0.0
    %2171 = vmatprep.subr.mxu0 0.0
    %2172 = vmatpush1.msra.mxu0 %v1421
    %2173 = vmatprep.subr.mxu0 0.0
    %2174 = vmatpush1.msra.mxu0 %v1420
    %2175 = vmatprep.subr.mxu0 0.0
    %2176 = vmatpush1.msra.mxu0 %v1419
    %2177 = vmatprep.subr.mxu0 0.0
    %2178 = vmatpush1.msra.mxu0 %v1418
    %2179 = vmatprep.subr.mxu0 0.0
    %2180 = vmatpush2.msra.mxu0 0.0
    %2181 = vmatprep.subr.mxu0 0.0
    %2182 = vmatpush2.msra.mxu0 0.0
    %2183 = vmatprep.subr.mxu0 0.0
    %2184 = vmatpush2.msra.mxu0 0.0
    %2185 = vmatprep.subr.mxu0 0.0
    %2186 = vmatpush2.msra.mxu0 0.0
    %2187 = vmatprep.subr.mxu0 0.0
    %2188 = vmatpush2.msra.mxu0 0.0
    %2189 = vmatprep.subr.mxu0 0.0
    %2190 = vmatpush2.msra.mxu0 0.0
    %2191 = vmatprep.subr.mxu0 0.0
    %2192 = vmatpush2.msra.mxu0 0.0
    %2193 = vmatprep.subr.mxu0 0.0
    %2194 = vmatpush2.msra.mxu0 0.0
    %2195 = vmatprep.subr.mxu0 0.0
    %2196 = vmatpush2.msra.mxu0 0.0
    %2197 = vmatprep.subr.mxu0 0.0
    %2198 = vmatpush2.msra.mxu0 0.0
    %2199 = vmatprep.subr.mxu0 0.0
    %2200 = vmatpush2.msra.mxu0 0.0
    %2201 = vmatprep.subr.mxu0 0.0
    %2202 = vmatpush2.msra.mxu0 0.0
    %2203 = vmatprep.subr.mxu0 0.0
    %2204 = vmatpush2.msra.mxu0 0.0
    %2205 = vmatprep.subr.mxu0 0.0
    %2206 = vmatpush2.msra.mxu0 0.0
    %2207 = vmatprep.subr.mxu0 0.0
    %2208 = vmatpush2.msra.mxu0 0.0
    %2209 = vmatprep.subr.mxu0 0.0
    %2210 = vmatpush2.msra.mxu0 0.0
    %2211 = vmatprep.mubr.f32.mxu0 0.0
    %2212 = vmatmul.mubr.f32.gmra.mxu0 %v2145
    %v2213 = vpop.f32.mrf.mxu0
    %v2214 = vadd.f32 0.0, %v2213
    %v2215 = vpop.f32.mrf.mxu0
    %2216 = vdwg.mxu0
    %v2217 = vadd.f32 %v1603, %v2214
    %v2218 = vxor.u32 %v2217, 2147483648
    %v2219 = vmul.f32 %v2218, 1.442695
    %v2220 = vpow.pop %v2219
    %v2221 = vadd.f32 %v2220, 1.0
    %v2222 = vrcp.pop %v2221
    %v2223 = vmul.f32 1.0, %v2222
    %v2224 = vtanh.pop %v2217
    %v2225 = vmul.f32 %v2223, %v2135
    %2227 = vrot.lane.b32.xlu0 %v2224, 64
    %v2228 = vpop.permute.xlu0 %2227
    %v2230 = vmul.f32 %v2223, %v2228
    %2232 = vrot.lane.b32.xlu0 %v2230, 32
    %v2233 = vpop.permute.xlu0 %2232
    %v2235 = vadd.f32 %v2225, %v2233
    %v2236 = vtanh.pop %v2235
    %2238 = vrot.lane.b32.xlu0 %v2236, 64
    %v2239 = vpop.permute.xlu0 %2238
    %v2241 = vmul.f32 %v2223, %v2239
    %2243 = vrot.lane.b32.xlu0 %v2241, 32
    %v2244 = vpop.permute.xlu0 %2243
    %v2245 = vsel %vm610, %v2244, 0
    %2247 = vmatprep.subr.mxu0 0.0
    %2248 = vmatpush1.msra.mxu0 0.0
    %2249 = vmatprep.subr.mxu0 0.0
    %2250 = vmatpush1.msra.mxu0 0.0
    %2251 = vmatprep.subr.mxu0 0.0
    %2252 = vmatpush1.msra.mxu0 0.0
    %2253 = vmatprep.subr.mxu0 0.0
    %2254 = vmatpush1.msra.mxu0 0.0
    %2255 = vmatprep.subr.mxu0 0.0
    %2256 = vmatpush1.msra.mxu0 0.0
    %2257 = vmatprep.subr.mxu0 0.0
    %2258 = vmatpush1.msra.mxu0 0.0
    %2259 = vmatprep.subr.mxu0 0.0
    %2260 = vmatpush1.msra.mxu0 0.0
    %2261 = vmatprep.subr.mxu0 0.0
    %2262 = vmatpush1.msra.mxu0 0.0
    %2263 = vmatprep.subr.mxu0 0.0
    %2264 = vmatpush1.msra.mxu0 0.0
    %2265 = vmatprep.subr.mxu0 0.0
    %2266 = vmatpush1.msra.mxu0 0.0
    %2267 = vmatprep.subr.mxu0 0.0
    %2268 = vmatpush1.msra.mxu0 0.0
    %2269 = vmatprep.subr.mxu0 0.0
    %2270 = vmatpush1.msra.mxu0 0.0
    %2271 = vmatprep.subr.mxu0 0.0
    %2272 = vmatpush1.msra.mxu0 %v1421
    %2273 = vmatprep.subr.mxu0 0.0
    %2274 = vmatpush1.msra.mxu0 %v1420
    %2275 = vmatprep.subr.mxu0 0.0
    %2276 = vmatpush1.msra.mxu0 %v1419
    %2277 = vmatprep.subr.mxu0 0.0
    %2278 = vmatpush1.msra.mxu0 %v1418
    %2279 = vmatprep.subr.mxu0 0.0
    %2280 = vmatpush2.msra.mxu0 0.0
    %2281 = vmatprep.subr.mxu0 0.0
    %2282 = vmatpush2.msra.mxu0 0.0
    %2283 = vmatprep.subr.mxu0 0.0
    %2284 = vmatpush2.msra.mxu0 0.0
    %2285 = vmatprep.subr.mxu0 0.0
    %2286 = vmatpush2.msra.mxu0 0.0
    %2287 = vmatprep.subr.mxu0 0.0
    %2288 = vmatpush2.msra.mxu0 0.0
    %2289 = vmatprep.subr.mxu0 0.0
    %2290 = vmatpush2.msra.mxu0 0.0
    %2291 = vmatprep.subr.mxu0 0.0
    %2292 = vmatpush2.msra.mxu0 0.0
    %2293 = vmatprep.subr.mxu0 0.0
    %2294 = vmatpush2.msra.mxu0 0.0
    %2295 = vmatprep.subr.mxu0 0.0
    %2296 = vmatpush2.msra.mxu0 0.0
    %2297 = vmatprep.subr.mxu0 0.0
    %2298 = vmatpush2.msra.mxu0 0.0
    %2299 = vmatprep.subr.mxu0 0.0
    %2300 = vmatpush2.msra.mxu0 0.0
    %2301 = vmatprep.subr.mxu0 0.0
    %2302 = vmatpush2.msra.mxu0 0.0
    %2303 = vmatprep.subr.mxu0 0.0
    %2304 = vmatpush2.msra.mxu0 0.0
    %2305 = vmatprep.subr.mxu0 0.0
    %2306 = vmatpush2.msra.mxu0 0.0
    %2307 = vmatprep.subr.mxu0 0.0
    %2308 = vmatpush2.msra.mxu0 0.0
    %2309 = vmatprep.subr.mxu0 0.0
    %2310 = vmatpush2.msra.mxu0 0.0
    %2311 = vmatprep.mubr.f32.mxu0 0.0
    %2312 = vmatmul.mubr.f32.gmra.mxu0 %v2245
    %v2313 = vpop.f32.mrf.mxu0
    %v2314 = vadd.f32 0.0, %v2313
    %v2315 = vpop.f32.mrf.mxu0
    %2316 = vdwg.mxu0
    %v2317 = vadd.f32 %v1601, %v2314
    %v2318 = vxor.u32 %v2317, 2147483648
    %v2319 = vmul.f32 %v2318, 1.442695
    %v2320 = vpow.pop %v2319
    %v2321 = vadd.f32 %v2320, 1.0
    %v2322 = vrcp.pop %v2321
    %v2323 = vmul.f32 1.0, %v2322
    %v2324 = vtanh.pop %v2317
    %v2325 = vmul.f32 %v2323, %v2235
    %2327 = vrot.lane.b32.xlu0 %v2324, 64
    %v2328 = vpop.permute.xlu0 %2327
    %v2330 = vmul.f32 %v2323, %v2328
    %2332 = vrot.lane.b32.xlu0 %v2330, 32
    %v2333 = vpop.permute.xlu0 %2332
    %v2335 = vadd.f32 %v2325, %v2333
    %v2336 = vtanh.pop %v2335
    %2338 = vrot.lane.b32.xlu0 %v2336, 64
    %v2339 = vpop.permute.xlu0 %2338
    %v2341 = vmul.f32 %v2323, %v2339
    %2343 = vrot.lane.b32.xlu0 %v2341, 32
    %v2344 = vpop.permute.xlu0 %2343
    %v2345 = vsel %vm610, %v2344, 0
    %2347 = vmatprep.subr.mxu0 0.0
    %2348 = vmatpush1.msra.mxu0 0.0
    %2349 = vmatprep.subr.mxu0 0.0
    %2350 = vmatpush1.msra.mxu0 0.0
    %2351 = vmatprep.subr.mxu0 0.0
    %2352 = vmatpush1.msra.mxu0 0.0
    %2353 = vmatprep.subr.mxu0 0.0
    %2354 = vmatpush1.msra.mxu0 0.0
    %2355 = vmatprep.subr.mxu0 0.0
    %2356 = vmatpush1.msra.mxu0 0.0
    %2357 = vmatprep.subr.mxu0 0.0
    %2358 = vmatpush1.msra.mxu0 0.0
    %2359 = vmatprep.subr.mxu0 0.0
    %2360 = vmatpush1.msra.mxu0 0.0
    %2361 = vmatprep.subr.mxu0 0.0
    %2362 = vmatpush1.msra.mxu0 0.0
    %2363 = vmatprep.subr.mxu0 0.0
    %2364 = vmatpush1.msra.mxu0 0.0
    %2365 = vmatprep.subr.mxu0 0.0
    %2366 = vmatpush1.msra.mxu0 0.0
    %2367 = vmatprep.subr.mxu0 0.0
    %2368 = vmatpush1.msra.mxu0 0.0
    %2369 = vmatprep.subr.mxu0 0.0
    %2370 = vmatpush1.msra.mxu0 0.0
    %2371 = vmatprep.subr.mxu0 0.0
    %2372 = vmatpush1.msra.mxu0 %v1421
    %2373 = vmatprep.subr.mxu0 0.0
    %2374 = vmatpush1.msra.mxu0 %v1420
    %2375 = vmatprep.subr.mxu0 0.0
    %2376 = vmatpush1.msra.mxu0 %v1419
    %2377 = vmatprep.subr.mxu0 0.0
    %2378 = vmatpush1.msra.mxu0 %v1418
    %2379 = vmatprep.subr.mxu0 0.0
    %2380 = vmatpush2.msra.mxu0 0.0
    %2381 = vmatprep.subr.mxu0 0.0
    %2382 = vmatpush2.msra.mxu0 0.0
    %2383 = vmatprep.subr.mxu0 0.0
    %2384 = vmatpush2.msra.mxu0 0.0
    %2385 = vmatprep.subr.mxu0 0.0
    %2386 = vmatpush2.msra.mxu0 0.0
    %2387 = vmatprep.subr.mxu0 0.0
    %2388 = vmatpush2.msra.mxu0 0.0
    %2389 = vmatprep.subr.mxu0 0.0
    %2390 = vmatpush2.msra.mxu0 0.0
    %2391 = vmatprep.subr.mxu0 0.0
    %2392 = vmatpush2.msra.mxu0 0.0
    %2393 = vmatprep.subr.mxu0 0.0
    %2394 = vmatpush2.msra.mxu0 0.0
    %2395 = vmatprep.subr.mxu0 0.0
    %2396 = vmatpush2.msra.mxu0 0.0
    %2397 = vmatprep.subr.mxu0 0.0
    %2398 = vmatpush2.msra.mxu0 0.0
    %2399 = vmatprep.subr.mxu0 0.0
    %2400 = vmatpush2.msra.mxu0 0.0
    %2401 = vmatprep.subr.mxu0 0.0
    %2402 = vmatpush2.msra.mxu0 0.0
    %2403 = vmatprep.subr.mxu0 0.0
    %2404 = vmatpush2.msra.mxu0 0.0
    %2405 = vmatprep.subr.mxu0 0.0
    %2406 = vmatpush2.msra.mxu0 0.0
    %2407 = vmatprep.subr.mxu0 0.0
    %2408 = vmatpush2.msra.mxu0 0.0
    %2409 = vmatprep.subr.mxu0 0.0
    %2410 = vmatpush2.msra.mxu0 0.0
    %2411 = vmatprep.mubr.f32.mxu0 0.0
    %2412 = vmatmul.mubr.f32.gmra.mxu0 %v2345
    %v2413 = vpop.f32.mrf.mxu0
    %v2414 = vadd.f32 0.0, %v2413
    %v2415 = vpop.f32.mrf.mxu0
    %2416 = vdwg.mxu0
    %v2417 = vadd.f32 %v1532, %v2414
    %v2418 = vxor.u32 %v2417, 2147483648
    %v2419 = vmul.f32 %v2418, 1.442695
    %v2420 = vpow.pop %v2419
    %v2421 = vadd.f32 %v2420, 1.0
    %v2422 = vrcp.pop %v2421
    %v2423 = vmul.f32 1.0, %v2422
    %v2424 = vtanh.pop %v2417
    %v2425 = vmul.f32 %v2423, %v2335
    %2427 = vrot.lane.b32.xlu0 %v2424, 64
    %v2428 = vpop.permute.xlu0 %2427
    %v2430 = vmul.f32 %v2423, %v2428
    %2432 = vrot.lane.b32.xlu0 %v2430, 32
    %v2433 = vpop.permute.xlu0 %2432
    %v2435 = vadd.f32 %v2425, %v2433
    %v2436 = vtanh.pop %v2435
    %2438 = vrot.lane.b32.xlu0 %v2436, 64
    %v2439 = vpop.permute.xlu0 %2438
    %v2441 = vmul.f32 %v2423, %v2439
    %2443 = vrot.lane.b32.xlu0 %v2441, 32
    %v2444 = vpop.permute.xlu0 %2443
    %v2445 = vsel %vm610, %v2444, 0
    %2447 = vmatprep.subr.mxu0 0.0
    %2448 = vmatpush1.msra.mxu0 0.0
    %2449 = vmatprep.subr.mxu0 0.0
    %2450 = vmatpush1.msra.mxu0 0.0
    %2451 = vmatprep.subr.mxu0 0.0
    %2452 = vmatpush1.msra.mxu0 0.0
    %2453 = vmatprep.subr.mxu0 0.0
    %2454 = vmatpush1.msra.mxu0 0.0
    %2455 = vmatprep.subr.mxu0 0.0
    %2456 = vmatpush1.msra.mxu0 0.0
    %2457 = vmatprep.subr.mxu0 0.0
    %2458 = vmatpush1.msra.mxu0 0.0
    %2459 = vmatprep.subr.mxu0 0.0
    %2460 = vmatpush1.msra.mxu0 0.0
    %2461 = vmatprep.subr.mxu0 0.0
    %2462 = vmatpush1.msra.mxu0 0.0
    %2463 = vmatprep.subr.mxu0 0.0
    %2464 = vmatpush1.msra.mxu0 0.0
    %2465 = vmatprep.subr.mxu0 0.0
    %2466 = vmatpush1.msra.mxu0 0.0
    %2467 = vmatprep.subr.mxu0 0.0
    %2468 = vmatpush1.msra.mxu0 0.0
    %2469 = vmatprep.subr.mxu0 0.0
    %2470 = vmatpush1.msra.mxu0 0.0
    %2471 = vmatprep.subr.mxu0 0.0
    %2472 = vmatpush1.msra.mxu0 %v1421
    %2473 = vmatprep.subr.mxu0 0.0
    %2474 = vmatpush1.msra.mxu0 %v1420
    %2475 = vmatprep.subr.mxu0 0.0
    %2476 = vmatpush1.msra.mxu0 %v1419
    %2477 = vmatprep.subr.mxu0 0.0
    %2478 = vmatpush1.msra.mxu0 %v1418
    %2479 = vmatprep.subr.mxu0 0.0
    %2480 = vmatpush2.msra.mxu0 0.0
    %2481 = vmatprep.subr.mxu0 0.0
    %2482 = vmatpush2.msra.mxu0 0.0
    %2483 = vmatprep.subr.mxu0 0.0
    %2484 = vmatpush2.msra.mxu0 0.0
    %2485 = vmatprep.subr.mxu0 0.0
    %2486 = vmatpush2.msra.mxu0 0.0
    %2487 = vmatprep.subr.mxu0 0.0
    %2488 = vmatpush2.msra.mxu0 0.0
    %2489 = vmatprep.subr.mxu0 0.0
    %2490 = vmatpush2.msra.mxu0 0.0
    %2491 = vmatprep.subr.mxu0 0.0
    %2492 = vmatpush2.msra.mxu0 0.0
    %2493 = vmatprep.subr.mxu0 0.0
    %2494 = vmatpush2.msra.mxu0 0.0
    %2495 = vmatprep.subr.mxu0 0.0
    %2496 = vmatpush2.msra.mxu0 0.0
    %2497 = vmatprep.subr.mxu0 0.0
    %2498 = vmatpush2.msra.mxu0 0.0
    %2499 = vmatprep.subr.mxu0 0.0
    %2500 = vmatpush2.msra.mxu0 0.0
    %2501 = vmatprep.subr.mxu0 0.0
    %2502 = vmatpush2.msra.mxu0 0.0
    %2503 = vmatprep.subr.mxu0 0.0
    %2504 = vmatpush2.msra.mxu0 0.0
    %2505 = vmatprep.subr.mxu0 0.0
    %2506 = vmatpush2.msra.mxu0 0.0
    %2507 = vmatprep.subr.mxu0 0.0
    %2508 = vmatpush2.msra.mxu0 0.0
    %2509 = vmatprep.subr.mxu0 0.0
    %2510 = vmatpush2.msra.mxu0 0.0
    %2511 = vmatprep.mubr.f32.mxu0 0.0
    %2512 = vmatmul.mubr.f32.gmra.mxu0 %v2445
    %v2513 = vpop.f32.mrf.mxu0
    %v2514 = vadd.f32 0.0, %v2513
    %v2515 = vpop.f32.mrf.mxu0
    %2516 = vdwg.mxu0
    %v2517 = vadd.f32 %v1530, %v2514
    %v2518 = vxor.u32 %v2517, 2147483648
    %v2519 = vmul.f32 %v2518, 1.442695
    %v2520 = vpow.pop %v2519
    %v2521 = vadd.f32 %v2520, 1.0
    %v2522 = vrcp.pop %v2521
    %v2523 = vmul.f32 1.0, %v2522
    %v2524 = vtanh.pop %v2517
    %v2525 = vmul.f32 %v2523, %v2435
    %2527 = vrot.lane.b32.xlu0 %v2524, 64
    %v2528 = vpop.permute.xlu0 %2527
    %v2530 = vmul.f32 %v2523, %v2528
    %2532 = vrot.lane.b32.xlu0 %v2530, 32
    %v2533 = vpop.permute.xlu0 %2532
    %v2535 = vadd.f32 %v2525, %v2533
    %v2536 = vtanh.pop %v2535
    %2538 = vrot.lane.b32.xlu0 %v2536, 64
    %v2539 = vpop.permute.xlu0 %2538
    %v2541 = vmul.f32 %v2523, %v2539
    %v2542 = vld [vmem:[%s9] sm:$0xff]
    %v2543 = vld [vmem:[%s9 + $0x8] sm:$0xff]
    %v2544 = vld [vmem:[%s9 + $0x10] sm:$0xff]
    %v2545 = vld [vmem:[%s9 + $0x18] sm:$0xff]
    %v2546 = vld [vmem:[%s9 + $0x20] sm:$0xff]
    %v2547 = vld [vmem:[%s9 + $0x28] sm:$0xff]
    %v2548 = vld [vmem:[%s9 + $0x30] sm:$0xff]
    %v2549 = vld [vmem:[%s9 + $0x38] sm:$0xff]
    %v2550 = vld [vmem:[%s9 + $0x40] sm:$0xff]
    %v2551 = vld [vmem:[%s9 + $0x48] sm:$0xff]
    %v2552 = vld [vmem:[%s9 + $0x50] sm:$0xff]
    %v2553 = vld [vmem:[%s9 + $0x58] sm:$0xff]
    %v2554 = vld [vmem:[%s9 + $0x60] sm:$0xff]
    %v2555 = vld [vmem:[%s9 + $0x68] sm:$0xff]
    %v2556 = vld [vmem:[%s9 + $0x70] sm:$0xff]
    %v2557 = vld [vmem:[%s9 + $0x78] sm:$0xff]
    %v2558 = vld [vmem:[%s9 + $0x80] sm:$0xff]
    %v2559 = vld [vmem:[%s9 + $0x88] sm:$0xff]
    %v2560 = vld [vmem:[%s9 + $0x90] sm:$0xff]
    %v2561 = vld [vmem:[%s9 + $0x98] sm:$0xff]
    %v2562 = vld [vmem:[%s9 + $0xa0] sm:$0xff]
    %v2563 = vld [vmem:[%s9 + $0xa8] sm:$0xff]
    %v2564 = vld [vmem:[%s9 + $0xb0] sm:$0xff]
    %v2565 = vld [vmem:[%s9 + $0xb8] sm:$0xff]
    %v2566 = vld [vmem:[%s9 + $0xc0] sm:$0xff]
    %v2567 = vld [vmem:[%s9 + $0xc8] sm:$0xff]
    %v2568 = vld [vmem:[%s9 + $0xd0] sm:$0xff]
    %v2569 = vld [vmem:[%s9 + $0xd8] sm:$0xff]
    %v2570 = vld [vmem:[%s9 + $0xe0] sm:$0xff]
    %v2571 = vld [vmem:[%s9 + $0xe8] sm:$0xff]
    %v2572 = vld [vmem:[%s9 + $0xf0] sm:$0xff]
    %v2573 = vld [vmem:[%s9 + $0xf8] sm:$0xff]
    %2575 = vrot.lane.b32.xlu0 %v808, 64
    %v2576 = vpop.permute.xlu0 %2575
    %2578 = vrot.lane.b32.xlu0 %v908, 96
    %v2579 = vpop.permute.xlu0 %2578
    %2582 = vrot.lane.b32.xlu0 %v1208, 64
    %v2583 = vpop.permute.xlu0 %2582
    %2585 = vrot.lane.b32.xlu0 %v1308, 96
    %v2586 = vpop.permute.xlu0 %2585
    %v2588 = vsel %vm610, %v711, %v2576
    %vm2589 = vcmask 523264
    %v2590 = vsel %vm2589, %v2588, %v2579
    %vm2591 = vcmask 785408
    %v2592 = vsel %vm2591, %v2590, %v1008
    %v2593 = vsel %vm610, %v1111, %v2583
    %v2594 = vsel %vm2589, %v2593, %v2586
    %v2595 = vsel %vm2591, %v2594, %v1408
    %2596 = vmatprep.subr.mxu0 0.0
    %2597 = vmatpush1.msra.mxu0 %v2557
    %2598 = vmatprep.subr.mxu0 0.0
    %2599 = vmatpush1.msra.mxu0 %v2556
    %2600 = vmatprep.subr.mxu0 0.0
    %2601 = vmatpush1.msra.mxu0 %v2555
    %2602 = vmatprep.subr.mxu0 0.0
    %2603 = vmatpush1.msra.mxu0 %v2554
    %2604 = vmatprep.subr.mxu0 0.0
    %2605 = vmatpush1.msra.mxu0 %v2553
    %2606 = vmatprep.subr.mxu0 0.0
    %2607 = vmatpush1.msra.mxu0 %v2552
    %2608 = vmatprep.subr.mxu0 0.0
    %2609 = vmatpush1.msra.mxu0 %v2551
    %2610 = vmatprep.subr.mxu0 0.0
    %2611 = vmatpush1.msra.mxu0 %v2550
    %2612 = vmatprep.subr.mxu0 0.0
    %2613 = vmatpush1.msra.mxu0 %v2549
    %2614 = vmatprep.subr.mxu0 0.0
    %2615 = vmatpush1.msra.mxu0 %v2548
    %2616 = vmatprep.subr.mxu0 0.0
    %2617 = vmatpush1.msra.mxu0 %v2547
    %2618 = vmatprep.subr.mxu0 0.0
    %2619 = vmatpush1.msra.mxu0 %v2546
    %2620 = vmatprep.subr.mxu0 0.0
    %2621 = vmatpush1.msra.mxu0 %v2545
    %2622 = vmatprep.subr.mxu0 0.0
    %2623 = vmatpush1.msra.mxu0 %v2544
    %2624 = vmatprep.subr.mxu0 0.0
    %2625 = vmatpush1.msra.mxu0 %v2543
    %2626 = vmatprep.subr.mxu0 0.0
    %2627 = vmatpush1.msra.mxu0 %v2542
    %2628 = vmatprep.subr.mxu0 0.0
    %2629 = vmatpush2.msra.mxu0 %v2573
    %2630 = vmatprep.subr.mxu0 0.0
    %2631 = vmatpush2.msra.mxu0 %v2572
    %2632 = vmatprep.subr.mxu0 0.0
    %2633 = vmatpush2.msra.mxu0 %v2571
    %2634 = vmatprep.subr.mxu0 0.0
    %2635 = vmatpush2.msra.mxu0 %v2570
    %2636 = vmatprep.subr.mxu0 0.0
    %2637 = vmatpush2.msra.mxu0 %v2569
    %2638 = vmatprep.subr.mxu0 0.0
    %2639 = vmatpush2.msra.mxu0 %v2568
    %2640 = vmatprep.subr.mxu0 0.0
    %2641 = vmatpush2.msra.mxu0 %v2567
    %2642 = vmatprep.subr.mxu0 0.0
    %2643 = vmatpush2.msra.mxu0 %v2566
    %2644 = vmatprep.subr.mxu0 0.0
    %2645 = vmatpush2.msra.mxu0 %v2565
    %2646 = vmatprep.subr.mxu0 0.0
    %2647 = vmatpush2.msra.mxu0 %v2564
    %2648 = vmatprep.subr.mxu0 0.0
    %2649 = vmatpush2.msra.mxu0 %v2563
    %2650 = vmatprep.subr.mxu0 0.0
    %2651 = vmatpush2.msra.mxu0 %v2562
    %2652 = vmatprep.subr.mxu0 0.0
    %2653 = vmatpush2.msra.mxu0 %v2561
    %2654 = vmatprep.subr.mxu0 0.0
    %2655 = vmatpush2.msra.mxu0 %v2560
    %2656 = vmatprep.subr.mxu0 0.0
    %2657 = vmatpush2.msra.mxu0 %v2559
    %2658 = vmatprep.subr.mxu0 0.0
    %2659 = vmatpush2.msra.mxu0 %v2558
    %2660 = vmatprep.mubr.f32.mxu0 %v2595
    %2661 = vmatmul.mubr.f32.gmra.mxu0 %v2592
    %v2662 = vpop.f32.mrf.mxu0
    %v2663 = vadd.f32 0.0, %v2662
    %v2664 = vpop.f32.mrf.mxu0
    %2665 = vdwg.mxu0
    %v2666 = vsel %vm322, %v2663, -inf
    %2667 = vmax.xlane.f32.xlu0 %v2666
    %v2668 = vpop.xlane.xlu0 %2667
    %v2669 = vsub.f32 %v2663, %v2668
    %v2670 = vmul.f32 %v2669, 1.442695
    %v2671 = vpow.pop %v2670
    %v2672 = vsel %vm322, %v2671, 0.0
    %2673 = vadd.xlane.f32.xlu0 %v2672
    %v2674 = vpop.xlane.xlu0 %2673
    %v2675 = vrcp.pop %v2674
    %v2676 = vmul.f32 %v2671, %v2675
    %2678 = vset.pattern.permute.xlu0 0
    %2679 = vperm.xlu0 %2678, %v2676
    %v2680 = vpop.permute.xlu0 %2679
    %v2682 = vmul.f32 %v2680, %v708
    %v2683 = vadd.f32 %v2682, 0.0
    %2684 = vset.pattern.permute.xlu0 1
    %2685 = vperm.xlu0 %2684, %v2676
    %v2686 = vpop.permute.xlu0 %2685
    %v2688 = vmul.f32 %v2686, %v808
    %v2689 = vadd.f32 %v2683, %v2688
    %2690 = vset.pattern.permute.xlu0 2
    %2691 = vperm.xlu0 %2690, %v2676
    %v2692 = vpop.permute.xlu0 %2691
    %v2694 = vmul.f32 %v2692, %v908
    %v2695 = vadd.f32 %v2689, %v2694
    %2696 = vset.pattern.permute.xlu0 3
    %2697 = vperm.xlu0 %2696, %v2676
    %v2698 = vpop.permute.xlu0 %2697
    %v2700 = vmul.f32 %v2698, %v1008
    %v2701 = vadd.f32 %v2695, %v2700
    %2702 = vset.pattern.permute.xlu0 4
    %2703 = vperm.xlu0 %2702, %v2676
    %v2704 = vpop.permute.xlu0 %2703
    %v2706 = vmul.f32 %v2704, %v1108
    %v2707 = vadd.f32 %v2701, %v2706
    %2708 = vset.pattern.permute.xlu0 5
    %2709 = vperm.xlu0 %2708, %v2676
    %v2710 = vpop.permute.xlu0 %2709
    %v2712 = vmul.f32 %v2710, %v1208
    %v2713 = vadd.f32 %v2707, %v2712
    %2714 = vset.pattern.permute.xlu0 6
    %2715 = vperm.xlu0 %2714, %v2676
    %v2716 = vpop.permute.xlu0 %2715
    %v2718 = vmul.f32 %v2716, %v1308
    %v2719 = vadd.f32 %v2713, %v2718
    %2720 = vset.pattern.permute.xlu0 7
    %2721 = vperm.xlu0 %2720, %v2676
    %v2722 = vpop.permute.xlu0 %2721
    %v2724 = vmul.f32 %v2722, %v1408
    %v2725 = vadd.f32 %v2719, %v2724
    %v2726 = vld [vmem:[%s10] sm:$0xff]
    %v2727 = vld [vmem:[%s10 + $0x8] sm:$0xff]
    %v2728 = vld [vmem:[%s10 + $0x10] sm:$0xff]
    %v2729 = vld [vmem:[%s10 + $0x18] sm:$0xff]
    %v2730 = vld [vmem:[%s10 + $0x20] sm:$0xff]
    %v2731 = vld [vmem:[%s10 + $0x28] sm:$0xff]
    %v2732 = vld [vmem:[%s10 + $0x30] sm:$0xff]
    %v2733 = vld [vmem:[%s10 + $0x38] sm:$0xff]
    %v2734 = vld [vmem:[%s10 + $0x40] sm:$0xff]
    %v2735 = vld [vmem:[%s10 + $0x48] sm:$0xff]
    %v2736 = vld [vmem:[%s10 + $0x50] sm:$0xff]
    %v2737 = vld [vmem:[%s10 + $0x58] sm:$0xff]
    %v2738 = vld [vmem:[%s10 + $0x60] sm:$0xff]
    %v2739 = vld [vmem:[%s10 + $0x68] sm:$0xff]
    %v2740 = vld [vmem:[%s10 + $0x70] sm:$0xff]
    %v2741 = vld [vmem:[%s10 + $0x78] sm:$0xff]
    %v2742 = vld [vmem:[%s10 + $0x80] sm:$0xff]
    %v2743 = vld [vmem:[%s10 + $0x88] sm:$0xff]
    %v2744 = vld [vmem:[%s10 + $0x90] sm:$0xff]
    %v2745 = vld [vmem:[%s10 + $0x98] sm:$0xff]
    %v2746 = vld [vmem:[%s10 + $0xa0] sm:$0xff]
    %v2747 = vld [vmem:[%s10 + $0xa8] sm:$0xff]
    %v2748 = vld [vmem:[%s10 + $0xb0] sm:$0xff]
    %v2749 = vld [vmem:[%s10 + $0xb8] sm:$0xff]
    %v2750 = vld [vmem:[%s10 + $0xc0] sm:$0xff]
    %v2751 = vld [vmem:[%s10 + $0xc8] sm:$0xff]
    %v2752 = vld [vmem:[%s10 + $0xd0] sm:$0xff]
    %v2753 = vld [vmem:[%s10 + $0xd8] sm:$0xff]
    %v2754 = vld [vmem:[%s10 + $0xe0] sm:$0xff]
    %v2755 = vld [vmem:[%s10 + $0xe8] sm:$0xff]
    %v2756 = vld [vmem:[%s10 + $0xf0] sm:$0xff]
    %v2757 = vld [vmem:[%s10 + $0xf8] sm:$0xff]
    %2759 = vrot.lane.b32.xlu0 %v2541, 32
    %v2760 = vpop.permute.xlu0 %2759
    %2762 = vrot.lane.b32.xlu0 %v2441, 64
    %v2763 = vpop.permute.xlu0 %2762
    %2765 = vrot.lane.b32.xlu0 %v2341, 96
    %v2766 = vpop.permute.xlu0 %2765
    %2769 = vrot.lane.b32.xlu0 %v2041, 64
    %v2770 = vpop.permute.xlu0 %2769
    %2772 = vrot.lane.b32.xlu0 %v1941, 96
    %v2773 = vpop.permute.xlu0 %2772
    %v2775 = vsel %vm610, %v2760, %v2763
    %v2776 = vsel %vm2589, %v2775, %v2766
    %v2777 = vsel %vm2591, %v2776, %v2241
    %v2778 = vsel %vm610, %v2144, %v2770
    %v2779 = vsel %vm2589, %v2778, %v2773
    %v2780 = vsel %vm2591, %v2779, %v1841
    %2781 = vmatprep.subr.mxu0 0.0
    %2782 = vmatpush1.msra.mxu0 %v2741
    %2783 = vmatprep.subr.mxu0 0.0
    %2784 = vmatpush1.msra.mxu0 %v2740
    %2785 = vmatprep.subr.mxu0 0.0
    %2786 = vmatpush1.msra.mxu0 %v2739
    %2787 = vmatprep.subr.mxu0 0.0
    %2788 = vmatpush1.msra.mxu0 %v2738
    %2789 = vmatprep.subr.mxu0 0.0
    %2790 = vmatpush1.msra.mxu0 %v2737
    %2791 = vmatprep.subr.mxu0 0.0
    %2792 = vmatpush1.msra.mxu0 %v2736
    %2793 = vmatprep.subr.mxu0 0.0
    %2794 = vmatpush1.msra.mxu0 %v2735
    %2795 = vmatprep.subr.mxu0 0.0
    %2796 = vmatpush1.msra.mxu0 %v2734
    %2797 = vmatprep.subr.mxu0 0.0
    %2798 = vmatpush1.msra.mxu0 %v2733
    %2799 = vmatprep.subr.mxu0 0.0
    %2800 = vmatpush1.msra.mxu0 %v2732
    %2801 = vmatprep.subr.mxu0 0.0
    %2802 = vmatpush1.msra.mxu0 %v2731
    %2803 = vmatprep.subr.mxu0 0.0
    %2804 = vmatpush1.msra.mxu0 %v2730
    %2805 = vmatprep.subr.mxu0 0.0
    %2806 = vmatpush1.msra.mxu0 %v2729
    %2807 = vmatprep.subr.mxu0 0.0
    %2808 = vmatpush1.msra.mxu0 %v2728
    %2809 = vmatprep.subr.mxu0 0.0
    %2810 = vmatpush1.msra.mxu0 %v2727
    %2811 = vmatprep.subr.mxu0 0.0
    %2812 = vmatpush1.msra.mxu0 %v2726
    %2813 = vmatprep.subr.mxu0 0.0
    %2814 = vmatpush2.msra.mxu0 %v2757
    %2815 = vmatprep.subr.mxu0 0.0
    %2816 = vmatpush2.msra.mxu0 %v2756
    %2817 = vmatprep.subr.mxu0 0.0
    %2818 = vmatpush2.msra.mxu0 %v2755
    %2819 = vmatprep.subr.mxu0 0.0
    %2820 = vmatpush2.msra.mxu0 %v2754
    %2821 = vmatprep.subr.mxu0 0.0
    %2822 = vmatpush2.msra.mxu0 %v2753
    %2823 = vmatprep.subr.mxu0 0.0
    %2824 = vmatpush2.msra.mxu0 %v2752
    %2825 = vmatprep.subr.mxu0 0.0
    %2826 = vmatpush2.msra.mxu0 %v2751
    %2827 = vmatprep.subr.mxu0 0.0
    %2828 = vmatpush2.msra.mxu0 %v2750
    %2829 = vmatprep.subr.mxu0 0.0
    %2830 = vmatpush2.msra.mxu0 %v2749
    %2831 = vmatprep.subr.mxu0 0.0
    %2832 = vmatpush2.msra.mxu0 %v2748
    %2833 = vmatprep.subr.mxu0 0.0
    %2834 = vmatpush2.msra.mxu0 %v2747
    %2835 = vmatprep.subr.mxu0 0.0
    %2836 = vmatpush2.msra.mxu0 %v2746
    %2837 = vmatprep.subr.mxu0 0.0
    %2838 = vmatpush2.msra.mxu0 %v2745
    %2839 = vmatprep.subr.mxu0 0.0
    %2840 = vmatpush2.msra.mxu0 %v2744
    %2841 = vmatprep.subr.mxu0 0.0
    %2842 = vmatpush2.msra.mxu0 %v2743
    %2843 = vmatprep.subr.mxu0 0.0
    %2844 = vmatpush2.msra.mxu0 %v2742
    %2845 = vmatprep.mubr.f32.mxu0 %v2780
    %2846 = vmatmul.mubr.f32.gmra.mxu0 %v2777
    %v2847 = vpop.f32.mrf.mxu0
    %v2848 = vadd.f32 0.0, %v2847
    %v2849 = vpop.f32.mrf.mxu0
    %2850 = vdwg.mxu0
    %v2851 = vsel %vm322, %v2848, -inf
    %2852 = vmax.xlane.f32.xlu0 %v2851
    %v2853 = vpop.xlane.xlu0 %2852
    %v2854 = vsub.f32 %v2848, %v2853
    %v2855 = vmul.f32 %v2854, 1.442695
    %v2856 = vpow.pop %v2855
    %v2857 = vsel %vm322, %v2856, 0.0
    %2858 = vadd.xlane.f32.xlu0 %v2857
    %v2859 = vpop.xlane.xlu0 %2858
    %v2860 = vrcp.pop %v2859
    %v2861 = vmul.f32 %v2856, %v2860
    %2863 = vset.pattern.permute.xlu0 0
    %2864 = vperm.xlu0 %2863, %v2861
    %v2865 = vpop.permute.xlu0 %2864
    %v2867 = vmul.f32 %v2865, %v2541
    %v2868 = vadd.f32 %v2867, 0.0
    %2869 = vset.pattern.permute.xlu0 1
    %2870 = vperm.xlu0 %2869, %v2861
    %v2871 = vpop.permute.xlu0 %2870
    %v2873 = vmul.f32 %v2871, %v2441
    %v2874 = vadd.f32 %v2868, %v2873
    %2875 = vset.pattern.permute.xlu0 2
    %2876 = vperm.xlu0 %2875, %v2861
    %v2877 = vpop.permute.xlu0 %2876
    %v2879 = vmul.f32 %v2877, %v2341
    %v2880 = vadd.f32 %v2874, %v2879
    %2881 = vset.pattern.permute.xlu0 3
    %2882 = vperm.xlu0 %2881, %v2861
    %v2883 = vpop.permute.xlu0 %2882
    %v2885 = vmul.f32 %v2883, %v2241
    %v2886 = vadd.f32 %v2880, %v2885
    %2887 = vset.pattern.permute.xlu0 4
    %2888 = vperm.xlu0 %2887, %v2861
    %v2889 = vpop.permute.xlu0 %2888
    %v2891 = vmul.f32 %v2889, %v2141
    %v2892 = vadd.f32 %v2886, %v2891
    %2893 = vset.pattern.permute.xlu0 5
    %2894 = vperm.xlu0 %2893, %v2861
    %v2895 = vpop.permute.xlu0 %2894
    %v2897 = vmul.f32 %v2895, %v2041
    %v2898 = vadd.f32 %v2892, %v2897
    %2899 = vset.pattern.permute.xlu0 6
    %2900 = vperm.xlu0 %2899, %v2861
    %v2901 = vpop.permute.xlu0 %2900
    %v2903 = vmul.f32 %v2901, %v1941
    %v2904 = vadd.f32 %v2898, %v2903
    %2905 = vset.pattern.permute.xlu0 7
    %2906 = vperm.xlu0 %2905, %v2861
    %v2907 = vpop.permute.xlu0 %2906
    %v2909 = vmul.f32 %v2907, %v1841
    %v2910 = vadd.f32 %v2904, %v2909
    %v2911 = vld [vmem:[%s11] sm:$0xff]
    %v2912 = vld [vmem:[%s11 + $0x8] sm:$0xff]
    %v2913 = vld [vmem:[%s11 + $0x10] sm:$0xff]
    %v2914 = vld [vmem:[%s11 + $0x18] sm:$0xff]
    %v2915 = vld [vmem:[%s11 + $0x20] sm:$0xff]
    %v2916 = vld [vmem:[%s11 + $0x28] sm:$0xff]
    %v2917 = vld [vmem:[%s11 + $0x30] sm:$0xff]
    %v2918 = vld [vmem:[%s11 + $0x38] sm:$0xff]
    %v2919 = vld [vmem:[%s12] sm:$0xff]
    %v2920 = vld [vmem:[%s12 + $0x8] sm:$0xff]
    %v2921 = vld [vmem:[%s12 + $0x10] sm:$0xff]
    %v2922 = vld [vmem:[%s12 + $0x18] sm:$0xff]
    %v2923 = vld [vmem:[%s12 + $0x20] sm:$0xff]
    %v2924 = vld [vmem:[%s12 + $0x28] sm:$0xff]
    %v2925 = vld [vmem:[%s12 + $0x30] sm:$0xff]
    %v2926 = vld [vmem:[%s12 + $0x38] sm:$0xff]
    %2928 = vrot.lane.b32.xlu0 %v2910, 32
    %v2929 = vpop.permute.xlu0 %2928
    %v2930 = vsel %vm610, %v2929, 0
    %2932 = vmatprep.subr.mxu0 0.0
    %2933 = vmatpush1.msra.mxu0 0.0
    %2934 = vmatprep.subr.mxu0 0.0
    %2935 = vmatpush1.msra.mxu0 0.0
    %2936 = vmatprep.subr.mxu0 0.0
    %2937 = vmatpush1.msra.mxu0 0.0
    %2938 = vmatprep.subr.mxu0 0.0
    %2939 = vmatpush1.msra.mxu0 0.0
    %2940 = vmatprep.subr.mxu0 0.0
    %2941 = vmatpush1.msra.mxu0 0.0
    %2942 = vmatprep.subr.mxu0 0.0
    %2943 = vmatpush1.msra.mxu0 0.0
    %2944 = vmatprep.subr.mxu0 0.0
    %2945 = vmatpush1.msra.mxu0 0.0
    %2946 = vmatprep.subr.mxu0 0.0
    %2947 = vmatpush1.msra.mxu0 0.0
    %2948 = vmatprep.subr.mxu0 0.0
    %2949 = vmatpush1.msra.mxu0 0.0
    %2950 = vmatprep.subr.mxu0 0.0
    %2951 = vmatpush1.msra.mxu0 0.0
    %2952 = vmatprep.subr.mxu0 0.0
    %2953 = vmatpush1.msra.mxu0 0.0
    %2954 = vmatprep.subr.mxu0 0.0
    %2955 = vmatpush1.msra.mxu0 0.0
    %2956 = vmatprep.subr.mxu0 %v2926
    %2957 = vmatpush1.msra.mxu0 %v2925
    %2958 = vmatprep.subr.mxu0 %v2924
    %2959 = vmatpush1.msra.mxu0 %v2923
    %2960 = vmatprep.subr.mxu0 %v2922
    %2961 = vmatpush1.msra.mxu0 %v2921
    %2962 = vmatprep.subr.mxu0 %v2920
    %2963 = vmatpush1.msra.mxu0 %v2919
    %2964 = vmatprep.subr.mxu0 0.0
    %2965 = vmatpush2.msra.mxu0 0.0
    %2966 = vmatprep.subr.mxu0 0.0
    %2967 = vmatpush2.msra.mxu0 0.0
    %2968 = vmatprep.subr.mxu0 0.0
    %2969 = vmatpush2.msra.mxu0 0.0
    %2970 = vmatprep.subr.mxu0 0.0
    %2971 = vmatpush2.msra.mxu0 0.0
    %2972 = vmatprep.subr.mxu0 0.0
    %2973 = vmatpush2.msra.mxu0 0.0
    %2974 = vmatprep.subr.mxu0 0.0
    %2975 = vmatpush2.msra.mxu0 0.0
    %2976 = vmatprep.subr.mxu0 0.0
    %2977 = vmatpush2.msra.mxu0 0.0
    %2978 = vmatprep.subr.mxu0 0.0
    %2979 = vmatpush2.msra.mxu0 0.0
    %2980 = vmatprep.subr.mxu0 0.0
    %2981 = vmatpush2.msra.mxu0 0.0
    %2982 = vmatprep.subr.mxu0 0.0
    %2983 = vmatpush2.msra.mxu0 0.0
    %2984 = vmatprep.subr.mxu0 0.0
    %2985 = vmatpush2.msra.mxu0 0.0
    %2986 = vmatprep.subr.mxu0 0.0
    %2987 = vmatpush2.msra.mxu0 0.0
    %2988 = vmatprep.subr.mxu0 0.0
    %2989 = vmatpush2.msra.mxu0 0.0
    %2990 = vmatprep.subr.mxu0 0.0
    %2991 = vmatpush2.msra.mxu0 0.0
    %2992 = vmatprep.subr.mxu0 0.0
    %2993 = vmatpush2.msra.mxu0 0.0
    %2994 = vmatprep.subr.mxu0 0.0
    %2995 = vmatpush2.msra.mxu0 0.0
    %2996 = vmatprep.mubr.f32.mxu0 0.0
    %2997 = vmatmul.mubr.f32.gmra.mxu0 %v2930
    %v2998 = vpop.f32.mrf.mxu0
    %v2999 = vadd.f32 0.0, %v2998
    %v3000 = vpop.f32.mrf.mxu0
    %v3001 = vadd.f32 0.0, %v3000
    %3002 = vdwg.mxu0
    %3004 = vrot.lane.b32.xlu0 %v2725, 32
    %v3005 = vpop.permute.xlu0 %3004
    %v3006 = vsel %vm610, %v3005, 0
    %3008 = vmatprep.subr.mxu0 0.0
    %3009 = vmatpush1.msra.mxu0 0.0
    %3010 = vmatprep.subr.mxu0 0.0
    %3011 = vmatpush1.msra.mxu0 0.0
    %3012 = vmatprep.subr.mxu0 0.0
    %3013 = vmatpush1.msra.mxu0 0.0
    %3014 = vmatprep.subr.mxu0 0.0
    %3015 = vmatpush1.msra.mxu0 0.0
    %3016 = vmatprep.subr.mxu0 0.0
    %3017 = vmatpush1.msra.mxu0 0.0
    %3018 = vmatprep.subr.mxu0 0.0
    %3019 = vmatpush1.msra.mxu0 0.0
    %3020 = vmatprep.subr.mxu0 0.0
    %3021 = vmatpush1.msra.mxu0 0.0
    %3022 = vmatprep.subr.mxu0 0.0
    %3023 = vmatpush1.msra.mxu0 0.0
    %3024 = vmatprep.subr.mxu0 0.0
    %3025 = vmatpush1.msra.mxu0 0.0
    %3026 = vmatprep.subr.mxu0 0.0
    %3027 = vmatpush1.msra.mxu0 0.0
    %3028 = vmatprep.subr.mxu0 0.0
    %3029 = vmatpush1.msra.mxu0 0.0
    %3030 = vmatprep.subr.mxu0 0.0
    %3031 = vmatpush1.msra.mxu0 0.0
    %3032 = vmatprep.subr.mxu0 %v2918
    %3033 = vmatpush1.msra.mxu0 %v2917
    %3034 = vmatprep.subr.mxu0 %v2916
    %3035 = vmatpush1.msra.mxu0 %v2915
    %3036 = vmatprep.subr.mxu0 %v2914
    %3037 = vmatpush1.msra.mxu0 %v2913
    %3038 = vmatprep.subr.mxu0 %v2912
    %3039 = vmatpush1.msra.mxu0 %v2911
    %3040 = vmatprep.subr.mxu0 0.0
    %3041 = vmatpush2.msra.mxu0 0.0
    %3042 = vmatprep.subr.mxu0 0.0
    %3043 = vmatpush2.msra.mxu0 0.0
    %3044 = vmatprep.subr.mxu0 0.0
    %3045 = vmatpush2.msra.mxu0 0.0
    %3046 = vmatprep.subr.mxu0 0.0
    %3047 = vmatpush2.msra.mxu0 0.0
    %3048 = vmatprep.subr.mxu0 0.0
    %3049 = vmatpush2.msra.mxu0 0.0
    %3050 = vmatprep.subr.mxu0 0.0
    %3051 = vmatpush2.msra.mxu0 0.0
    %3052 = vmatprep.subr.mxu0 0.0
    %3053 = vmatpush2.msra.mxu0 0.0
    %3054 = vmatprep.subr.mxu0 0.0
    %3055 = vmatpush2.msra.mxu0 0.0
    %3056 = vmatprep.subr.mxu0 0.0
    %3057 = vmatpush2.msra.mxu0 0.0
    %3058 = vmatprep.subr.mxu0 0.0
    %3059 = vmatpush2.msra.mxu0 0.0
    %3060 = vmatprep.subr.mxu0 0.0
    %3061 = vmatpush2.msra.mxu0 0.0
    %3062 = vmatprep.subr.mxu0 0.0
    %3063 = vmatpush2.msra.mxu0 0.0
    %3064 = vmatprep.subr.mxu0 0.0
    %3065 = vmatpush2.msra.mxu0 0.0
    %3066 = vmatprep.subr.mxu0 0.0
    %3067 = vmatpush2.msra.mxu0 0.0
    %3068 = vmatprep.subr.mxu0 0.0
    %3069 = vmatpush2.msra.mxu0 0.0
    %3070 = vmatprep.subr.mxu0 0.0
    %3071 = vmatpush2.msra.mxu0 0.0
    %3072 = vmatprep.mubr.f32.mxu0 0.0
    %3073 = vmatmul.mubr.f32.gmra.mxu0 %v3006
    %v3074 = vpop.f32.mrf.mxu0
    %v3075 = vadd.f32 %v2999, %v3074
    %v3076 = vpop.f32.mrf.mxu0
    %v3077 = vadd.f32 %v3001, %v3076
    %3078 = vdwg.mxu0
    %v3079 = vld [vmem:[%s13] sm:$0x3]
    %v3081 = vlaneseq
    %v3082 = vshrl.u32 %v3081, 7
    %v3083 = vsub.s32 0, %v3082
    %v3084 = vrot.slane %v3079, %v3083
    %v3085 = vlaneseq
    %v3086 = vshrl.u32 %v3085, 7
    %v3087 = vsub.s32 1, %v3086
    %v3088 = vrot.slane %v3079, %v3087
    %v3091 = vadd.f32 %v3075, %v3084
    %v3092 = vadd.f32 %v3077, %v3088
    %v3093 = vmax.f32 %v3091, %v3092
    %3094 = vmax.xlane.f32.xlu0 %v3093
    %v3095 = vpop.xlane.xlu0 %3094
    %v3096 = vsub.f32 %v3091, %v3095
    %v3097 = vsub.f32 %v3092, %v3095
    %v3098 = vmul.f32 %v3096, 1.442695
    %v3099 = vpow.pop %v3098
    %v3100 = vmul.f32 %v3097, 1.442695
    %v3101 = vpow.pop %v3100
    %v3102 = vadd.f32 %v3099, %v3101
    %3103 = vadd.xlane.f32.xlu0 %v3102
    %v3104 = vpop.xlane.xlu0 %3103
    %v3105 = vrcp.pop %v3104
    %v3106 = vmul.f32 %v3099, %v3105
    %v3107 = vmul.f32 %v3101, %v3105
    %3108 = vst [vmem:[#allocation2] sm:$0xff] %v3106
    %3109 = vst [vmem:[#allocation2 + $0x8] sm:$0xff] %v3107
    // Predicated region
    $region58: #{tpu_custom_call.1} parent=1 // pred_check
      _
    $region59: #{tpu_custom_call.1} parent=1 // pred_check_branch
      %3111 = sbr.rel (0) target = $region61
    $region60: #{tpu_custom_call.1} parent=1 // pred_region
      %s3113 = ssub.s32 256, 256
      %3114 = vsyncadd [#allocation3], %s3113
      %s3116 = sshll.u32 [#allocation2], 4
      %s3117 = int_to_ptr.vmem [resolvable:$true] %s3116
      %3119 = dma.vmem_to_hbm [thread:$0]  %s3117, 256, %s14, [#allocation3]
    $region61: #{tpu_custom_call.1} parent=1 // pred_fallthru
      _
    // Predicated region
    $region62: #{tpu_custom_call.1} parent=1 // pred_check
      _
    $region63: #{tpu_custom_call.1} parent=1 // pred_check_branch
      %3121 = sbr.rel (0) target = $region65
    $region64: #{tpu_custom_call.1} parent=1 // pred_region
      %3122 = dma.done [#allocation3], 256
    $region65: #{tpu_custom_call.1} parent=1 // pred_fallthru
      _
    %3123 = vsyncpa [#allocation3], 1

</llo_original>
